<compile_context>
chip_gen: v7x
topology: tpu7x:2x2x1
jax: 0.10.0
libtpu: 0.0.40
codegen_flags: <defaults>
</compile_context>

<pallas_src>
import functools

import jax
import jax.numpy as jnp
from jax.experimental import pallas as pl
from jax.experimental.pallas import tpu as pltpu  # noqa: F401  (TPU backend)

# ---------------- problem sizes (small demo config) ----------------
B = 2            # batch
T = 4            # seq_length (also number of time-varying node embeddings)
N = 8            # num_nodes
D_IN = 2         # input_dim
H = 16           # rnn_units / dim_out
E = 4            # embed_dim
K = 2            # cheb_k
NUM_LAYERS = 1


def _sigmoid(x):
    # exp on the EUP + approx reciprocal on the EUP: keeps the divide off the
    # VPU critical path.
    return pl.reciprocal(1.0 + jnp.exp(-x), approx=True)


# ----------------------------- fused kernel --------------------------------
def _fused_ddgcn_kernel(cheb_k, b_sz, n_nodes,
                        x_ref, init_ref, emb_ref, embr_ref,
                        wlin_ref, blin_ref,
                        wx_ref, wzr_ref, wu_ref, ball_ref,
                        cur_ref, states_ref, lin_ref, hid_ref):
    t_len = x_ref.shape[0]
    h = wlin_ref.shape[1]
    e_dim = emb_ref.shape[-1]

    # Hoist all (tiny) weights out of the time loop.
    wx = wx_ref[...]          # (K*Din, E*3H)   x-path, heads [z|r|u]
    wzr = wzr_ref[...]        # (K*H,   E*2H)   state-path, heads [z|r]
    wu = wu_ref[...]          # (K*H,   E*H)    candidate state-path
    ball = ball_ref[...]      # (E, 3H)         biases [z|r|u]
    wlin = wlin_ref[...]      # (Din, H)
    blin = blin_ref[...]      # (1, H)

    def apply_support(p_mat, v):
        # kron(I_B, P) @ v without materializing the block-diagonal matrix:
        # per-batch (N, N) @ (N, C) dots on sublane-aligned row blocks.
        parts = [jnp.dot(p_mat, v[b * n_nodes:(b + 1) * n_nodes, :],
                         preferred_element_type=jnp.float32)
                 for b in range(b_sz)]
        return jnp.concatenate(parts, axis=0)

    def cheb_concat(p_mat, v):
        # lane-concat of Chebyshev terms [v, Pv, 2P(Pv) - v, ...];
        # k = 0 identity support used directly (no eye matmul).
        outs = [v]
        if cheb_k > 1:
            outs.append(apply_support(p_mat, v))
        for _ in range(2, cheb_k):
            outs.append(2.0 * apply_support(p_mat, outs[-1]) - outs[-2])
        return jnp.concatenate(outs, axis=-1)              # (BN, K*C)

    def emb_reduce(emb_r, y, width):
        # out[r, o] = sum_d emb_r[r, d] * y[r, d*width + o]
        acc = emb_r[:, 0:1] * y[:, 0:width]
        for d in range(1, e_dim):
            acc = acc + emb_r[:, d:d + 1] * y[:, d * width:(d + 1) * width]
        return acc

    state = init_ref[...]                                  # (BN, H)

    for t in range(t_len):                                 # static unroll
        x2 = x_ref[t]                                      # (BN, Din)
        emb = emb_ref[t]                                   # (N, E)
        emb_r = embr_ref[t]                                # (BN, E)

        # supports = softmax(relu(emb @ emb.T)), computed ONCE per step.
        adj = jax.lax.dot_general(emb, emb, (((1,), (1,)), ((), ())),
                                  preferred_element_type=jnp.float32)
        adj = jnp.maximum(adj, 0.0)
        adj = adj - jnp.max(adj, axis=-1, keepdims=True)
        ea = jnp.exp(adj)
        p_mat = ea * pl.reciprocal(jnp.sum(ea, axis=-1, keepdims=True),
                                   approx=True)            # (N, N)

        xg_x = cheb_concat(p_mat, x2)                      # (BN, K*Din)
        xg_s = cheb_concat(p_mat, state)                   # (BN, K*H)

        # Merged-head contractions.
        yx = jnp.dot(xg_x, wx, preferred_element_type=jnp.float32)      # (BN, E*3H)
        ys = jnp.dot(xg_s, wzr, preferred_element_type=jnp.float32)     # (BN, E*2H)
        bias = jnp.dot(emb_r, ball, preferred_element_type=jnp.float32) # (BN, 3H)

        gx = emb_reduce(emb_r, yx, 3 * h)                  # (BN, 3H): [z|r|u]
        gs = emb_reduce(emb_r, ys, 2 * h)                  # (BN, 2H): [z|r]

        zr_pre = gx[:, :2 * h] + gs + bias[:, :2 * h]
        z = _sigmoid(zr_pre[:, :h])
        r = _sigmoid(zr_pre[:, h:2 * h])

        # Candidate DGCN on concat(x, z * state): x-part (gx[:, 2H:]) reused.
        xg_c = cheb_concat(p_mat, z * state)               # (BN, K*H)
        yu = jnp.dot(xg_c, wu, preferred_element_type=jnp.float32)      # (BN, E*H)
        gu = emb_reduce(emb_r, yu, h)                      # (BN, H)
        hc = jnp.tanh(gx[:, 2 * h:] + gu + bias[:, 2 * h:])

        state = r * state + (1.0 - r) * hc                 # (BN, H)

        # linear_p(x_t) fused in; residual current_inputs = states + linear_p.
        lin_t = jnp.dot(x2, wlin, preferred_element_type=jnp.float32) + blin
        cur_t = state + lin_t

        for b in range(b_sz):                              # sublane-aligned
            rows = slice(b * n_nodes, (b + 1) * n_nodes)
            states_ref[b, t] = state[rows]
            lin_ref[b, t] = lin_t[rows]
            cur_ref[b, t] = cur_t[rows]

    # Final hidden state: written once, after the whole time loop.
    for b in range(b_sz):
        hid_ref[0, b] = state[b * n_nodes:(b + 1) * n_nodes]


# --------------------------- host-side wrappers -----------------------------
def prepare_kernel_params(p):
    """One-time reshaping of the PyTorch-shaped parameters into the 2-D
    lane-friendly layout the fused kernel consumes.

    Row order of the flattened pools is (k, i) matching the in-kernel
    cheb_concat lane order; column order is (d, head_out) matching the
    in-kernel emb_reduce segments.
    """
    d_in, h = p["lin_w"].shape
    e, k, _, _ = p["gate_wp"].shape
    gw, uw = p["gate_wp"], p["upd_wp"]                     # (E,K,Cin,2H), (E,K,Cin,H)

    # x-path (i < Din), heads concatenated as [z | r | u].
    wx4 = jnp.concatenate([gw[:, :, :d_in, :], uw[:, :, :d_in, :]], axis=-1)
    wx = jnp.transpose(wx4, (1, 2, 0, 3)).reshape(k * d_in, e * 3 * h)
    # state-path for the gate (heads [z | r]).
    wzr = jnp.transpose(gw[:, :, d_in:, :], (1, 2, 0, 3)).reshape(k * h, e * 2 * h)
    # state-path for the candidate.
    wu = jnp.transpose(uw[:, :, d_in:, :], (1, 2, 0, 3)).reshape(k * h, e * h)
    # biases [z | r | u].
    ball = jnp.concatenate([p["gate_bp"], p["upd_bp"]], axis=-1)        # (E, 3H)

    return {
        "node_emb": p["node_emb"],
        "wlin": p["lin_w"],
        "blin": p["lin_b"].reshape(1, h),
        "wx": wx, "wzr": wzr, "wu": wu, "ball": ball,
    }


def ddgcn_forward(kp, x, init_state):
    """DDGCN.forward -> (current_inputs, output_hidden, layer_res)."""
    assert NUM_LAYERS == 1
    b, t_len, n, d_in = x.shape
    h = kp["wlin"].shape[1]
    e = kp["node_emb"].shape[-1]

    # Host-side layout plumbing (done once, outside the kernel):
    # time-major inputs with batch*node flattened onto sublanes.
    x_k = jnp.transpose(x, (1, 0, 2, 3)).reshape(t_len, b * n, d_in)
    init_flat = init_state[0].reshape(b * n, h)
    emb = kp["node_emb"]                                   # (T, N, E)
    emb_rep = jnp.concatenate([emb] * b, axis=1)           # (T, B*N, E)

    kern = functools.partial(_fused_ddgcn_kernel, K, b, n)

    cur, states, lin, hid = pl.pallas_call(
        kern,
        out_shape=[
            jax.ShapeDtypeStruct((b, t_len, n, h), jnp.float32),        # current_inputs
            jax.ShapeDtypeStruct((b, t_len, n, h), jnp.float32),        # inner states
            jax.ShapeDtypeStruct((b, t_len, n, h), jnp.float32),        # linear_p(x)
            jax.ShapeDtypeStruct((NUM_LAYERS, b, n, h), jnp.float32),   # output_hidden
        ],
    )(x_k, init_flat, emb, emb_rep,
      kp["wlin"], kp["blin"], kp["wx"], kp["wzr"], kp["wu"], kp["ball"])

    return cur, hid, (lin, states)


# ----------------------------- parameters -----------------------------------
def init_params(key):
    keys = jax.random.split(key, 7)
    s = 0.1
    cin = D_IN + H
    return {
        "node_emb": jax.random.normal(keys[0], (T, N, E), jnp.float32),
        "lin_w": jax.random.normal(keys[1], (D_IN, H), jnp.float32) * s,
        "lin_b": jax.random.normal(keys[2], (H,), jnp.float32) * s,
        "gate_wp": jax.random.normal(keys[3], (E, K, cin, 2 * H), jnp.float32) * s,
        "gate_bp": jax.random.normal(keys[4], (E, 2 * H), jnp.float32) * s,
        "upd_wp": jax.random.normal(keys[5], (E, K, cin, H), jnp.float32) * s,
        "upd_bp": jax.random.normal(keys[6], (E, H), jnp.float32) * s,
    }


# ------------------------- pure-JAX reference -------------------------------
def ddgcn_reference(p, x, init_state):
    """Direct transcription of the PyTorch DDGCN.forward (num_layers == 1)."""
    h_dim = p["lin_w"].shape[1]

    def dgcn(xin, emb, wp, bp):
        n = emb.shape[0]
        sup = jax.nn.softmax(jnp.maximum(emb @ emb.T, 0.0), axis=1)
        sset = [jnp.eye(n, dtype=jnp.float32), sup]
        for _ in range(2, K):
            sset.append(2.0 * sup @ sset[-1] - sset[-2])
        supports = jnp.stack(sset, axis=0)                     # (K, N, N)
        weights = jnp.einsum('nd,dkio->nkio', emb, wp)
        bias = emb @ bp
        x_g = jnp.einsum('knm,bmc->bknc', supports, xin)
        x_g = jnp.transpose(x_g, (0, 2, 1, 3))
        return jnp.einsum('bnki,nkio->bno', x_g, weights) + bias

    with jax.default_matmul_precision("float32"):
        lin = jnp.einsum('btni,io->btno', x, p["lin_w"]) + p["lin_b"]
        state = init_state[0]
        states = []
        for t in range(x.shape[1]):
            emb = p["node_emb"][t]
            xt = x[:, t]
            z_r = jax.nn.sigmoid(dgcn(jnp.concatenate([xt, state], axis=-1),
                                      emb, p["gate_wp"], p["gate_bp"]))
            z, r = z_r[..., :h_dim], z_r[..., h_dim:]
            hc = jnp.tanh(dgcn(jnp.concatenate([xt, z * state], axis=-1),
                               emb, p["upd_wp"], p["upd_bp"]))
            state = r * state + (1.0 - r) * hc
            states.append(state)
        inner = jnp.stack(states, axis=1)
        cur = inner + lin
        hid = state[None]
    return cur, hid, (lin, inner)


if __name__ == "__main__":
    root = jax.random.PRNGKey(0)
    pkey, xkey, skey = jax.random.split(root, 3)
    params = init_params(pkey)
    x = jax.random.normal(xkey, (B, T, N, D_IN), jnp.float32)
    init_state = 0.1 * jax.random.normal(skey, (NUM_LAYERS, B, N, H), jnp.float32)

    kp = prepare_kernel_params(params)
    fwd = jax.jit(ddgcn_forward)
    cur, hid, (lin, inner) = fwd(kp, x, init_state)
    jax.block_until_ready((cur, hid, lin, inner))

    assert cur.shape == (B, T, N, H), cur.shape
    assert hid.shape == (NUM_LAYERS, B, N, H), hid.shape
    assert lin.shape == (B, T, N, H) and inner.shape == (B, T, N, H)

    ref_cur, ref_hid, (ref_lin, ref_inner) = ddgcn_reference(params, x, init_state)
    for got, want in ((cur, ref_cur), (hid, ref_hid),
                      (lin, ref_lin), (inner, ref_inner)):
        assert bool(jnp.all(jnp.isfinite(got)))
        err = float(jnp.max(jnp.abs(got - want)))
        assert bool(jnp.allclose(got, want, atol=1e-2, rtol=1e-2)), err

    print("KERNEL_OK")
</pallas_src>

<mosaic_0001>
module attributes {stable_mosaic.version = 11 : i64} {
  func.func @_fused_ddgcn_kernel(%arg0: memref<4x16x2xf32, #tpu.memory_space<vmem>>, %arg1: memref<16x16xf32, #tpu.memory_space<vmem>>, %arg2: memref<4x8x4xf32, #tpu.memory_space<vmem>>, %arg3: memref<4x16x4xf32, #tpu.memory_space<vmem>>, %arg4: memref<2x16xf32, #tpu.memory_space<vmem>>, %arg5: memref<1x16xf32, #tpu.memory_space<vmem>>, %arg6: memref<4x192xf32, #tpu.memory_space<vmem>>, %arg7: memref<32x128xf32, #tpu.memory_space<vmem>>, %arg8: memref<32x64xf32, #tpu.memory_space<vmem>>, %arg9: memref<4x48xf32, #tpu.memory_space<vmem>>, %arg10: memref<2x4x8x16xf32, #tpu.memory_space<vmem>>, %arg11: memref<2x4x8x16xf32, #tpu.memory_space<vmem>>, %arg12: memref<2x4x8x16xf32, #tpu.memory_space<vmem>>, %arg13: memref<1x2x8x16xf32, #tpu.memory_space<vmem>>) attributes {dimension_semantics = [], scalar_prefetch = 0 : i64, scratch_operands = 0 : i64, tpu.core_type = #tpu.core_type<tc>} {
    %c0 = arith.constant 0 : index
    %c0_0 = arith.constant 0 : index
    %0 = vector.load %arg6[%c0, %c0_0] : memref<4x192xf32, #tpu.memory_space<vmem>>, vector<4x192xf32>
    %c0_1 = arith.constant 0 : index
    %c0_2 = arith.constant 0 : index
    %1 = vector.load %arg7[%c0_1, %c0_2] : memref<32x128xf32, #tpu.memory_space<vmem>>, vector<32x128xf32>
    %c0_3 = arith.constant 0 : index
    %c0_4 = arith.constant 0 : index
    %2 = vector.load %arg8[%c0_3, %c0_4] : memref<32x64xf32, #tpu.memory_space<vmem>>, vector<32x64xf32>
    %c0_5 = arith.constant 0 : index
    %c0_6 = arith.constant 0 : index
    %3 = vector.load %arg9[%c0_5, %c0_6] : memref<4x48xf32, #tpu.memory_space<vmem>>, vector<4x48xf32>
    %c0_7 = arith.constant 0 : index
    %c0_8 = arith.constant 0 : index
    %4 = vector.load %arg4[%c0_7, %c0_8] : memref<2x16xf32, #tpu.memory_space<vmem>>, vector<2x16xf32>
    %c0_9 = arith.constant 0 : index
    %c0_10 = arith.constant 0 : index
    %5 = vector.load %arg5[%c0_9, %c0_10] : memref<1x16xf32, #tpu.memory_space<vmem>>, vector<1x16xf32>
    %c0_11 = arith.constant 0 : index
    %c0_12 = arith.constant 0 : index
    %6 = vector.load %arg1[%c0_11, %c0_12] : memref<16x16xf32, #tpu.memory_space<vmem>>, vector<16x16xf32>
    %c0_13 = arith.constant 0 : index
    %c0_14 = arith.constant 0 : index
    %c0_15 = arith.constant 0 : index
    %7 = vector.load %arg0[%c0_13, %c0_14, %c0_15] : memref<4x16x2xf32, #tpu.memory_space<vmem>>, vector<1x16x2xf32>
    %8 = vector.shape_cast %7 : vector<1x16x2xf32> to vector<16x2xf32>
    %c0_16 = arith.constant 0 : index
    %c0_17 = arith.constant 0 : index
    %c0_18 = arith.constant 0 : index
    %9 = vector.load %arg2[%c0_16, %c0_17, %c0_18] : memref<4x8x4xf32, #tpu.memory_space<vmem>>, vector<1x8x4xf32>
    %10 = vector.shape_cast %9 : vector<1x8x4xf32> to vector<8x4xf32>
    %c0_19 = arith.constant 0 : index
    %c0_20 = arith.constant 0 : index
    %c0_21 = arith.constant 0 : index
    %11 = vector.load %arg3[%c0_19, %c0_20, %c0_21] : memref<4x16x4xf32, #tpu.memory_space<vmem>>, vector<1x16x4xf32>
    %12 = vector.shape_cast %11 : vector<1x16x4xf32> to vector<16x4xf32>
    %cst = arith.constant dense<0.000000e+00> : vector<8x8xf32>
    %13 = tpu.matmul %10, %10, %cst {dimension_numbers = #tpu.dot_dimension_numbers<[1], [1], [0], [0], [0, 0, 1, 0], [], []>} : vector<8x4xf32>, vector<8x4xf32>, vector<8x8xf32> -> vector<8x8xf32>
    %cst_22 = arith.constant 0.000000e+00 : f32
    %14 = vector.broadcast %cst_22 : f32 to vector<8x8xf32>
    %15 = arith.maximumf %13, %14 : vector<8x8xf32>
    %cst_23 = arith.constant dense<0xFF800000> : vector<8xf32>
    %16 = vector.multi_reduction <maximumf>, %15, %cst_23 [1] : vector<8x8xf32> to vector<8xf32>
    %17 = vector.shape_cast %16 : vector<8xf32> to vector<8x1xf32>
    %18 = vector.broadcast %17 : vector<8x1xf32> to vector<8x8xf32>
    %19 = arith.subf %15, %18 : vector<8x8xf32>
    %20 = math.exp %19 : vector<8x8xf32>
    %cst_24 = arith.constant dense<0.000000e+00> : vector<8xf32>
    %21 = vector.multi_reduction <add>, %20, %cst_24 [1] : vector<8x8xf32> to vector<8xf32>
    %22 = vector.shape_cast %21 : vector<8xf32> to vector<8x1xf32>
    %23 = tpu.reciprocal %22 {approx = true} : vector<8x1xf32> -> vector<8x1xf32>
    %24 = vector.broadcast %23 : vector<8x1xf32> to vector<8x8xf32>
    %25 = arith.mulf %20, %24 : vector<8x8xf32>
    %26 = vector.extract_strided_slice %8 {offsets = [0, 0], sizes = [8, 2], strides = [1, 1]} : vector<16x2xf32> to vector<8x2xf32>
    %cst_25 = arith.constant dense<0.000000e+00> : vector<8x2xf32>
    %27 = tpu.matmul %25, %26, %cst_25 {dimension_numbers = #tpu.dot_dimension_numbers<[1], [0], [0], [1], [0, 0, 1, 1], [], []>} : vector<8x8xf32>, vector<8x2xf32>, vector<8x2xf32> -> vector<8x2xf32>
    %28 = vector.extract_strided_slice %8 {offsets = [8, 0], sizes = [8, 2], strides = [1, 1]} : vector<16x2xf32> to vector<8x2xf32>
    %cst_26 = arith.constant dense<0.000000e+00> : vector<8x2xf32>
    %29 = tpu.matmul %25, %28, %cst_26 {dimension_numbers = #tpu.dot_dimension_numbers<[1], [0], [0], [1], [0, 0, 1, 1], [], []>} : vector<8x8xf32>, vector<8x2xf32>, vector<8x2xf32> -> vector<8x2xf32>
    %30 = tpu.concatenate %27, %29 in 0 : vector<8x2xf32>, vector<8x2xf32> -> vector<16x2xf32>
    %31 = tpu.concatenate %8, %30 in 1 : vector<16x2xf32>, vector<16x2xf32> -> vector<16x4xf32>
    %32 = vector.extract_strided_slice %6 {offsets = [0, 0], sizes = [8, 16], strides = [1, 1]} : vector<16x16xf32> to vector<8x16xf32>
    %cst_27 = arith.constant dense<0.000000e+00> : vector<8x16xf32>
    %33 = tpu.matmul %25, %32, %cst_27 {dimension_numbers = #tpu.dot_dimension_numbers<[1], [0], [0], [1], [0, 0, 1, 1], [], []>} : vector<8x8xf32>, vector<8x16xf32>, vector<8x16xf32> -> vector<8x16xf32>
    %34 = vector.extract_strided_slice %6 {offsets = [8, 0], sizes = [8, 16], strides = [1, 1]} : vector<16x16xf32> to vector<8x16xf32>
    %cst_28 = arith.constant dense<0.000000e+00> : vector<8x16xf32>
    %35 = tpu.matmul %25, %34, %cst_28 {dimension_numbers = #tpu.dot_dimension_numbers<[1], [0], [0], [1], [0, 0, 1, 1], [], []>} : vector<8x8xf32>, vector<8x16xf32>, vector<8x16xf32> -> vector<8x16xf32>
    %36 = tpu.concatenate %33, %35 in 0 : vector<8x16xf32>, vector<8x16xf32> -> vector<16x16xf32>
    %37 = tpu.concatenate %6, %36 in 1 : vector<16x16xf32>, vector<16x16xf32> -> vector<16x32xf32>
    %cst_29 = arith.constant dense<0.000000e+00> : vector<16x192xf32>
    %38 = tpu.matmul %31, %0, %cst_29 {dimension_numbers = #tpu.dot_dimension_numbers<[1], [0], [0], [1], [0, 0, 1, 1], [], []>} : vector<16x4xf32>, vector<4x192xf32>, vector<16x192xf32> -> vector<16x192xf32>
    %cst_30 = arith.constant dense<0.000000e+00> : vector<16x128xf32>
    %39 = tpu.matmul %37, %1, %cst_30 {dimension_numbers = #tpu.dot_dimension_numbers<[1], [0], [0], [1], [0, 0, 1, 1], [], []>} : vector<16x32xf32>, vector<32x128xf32>, vector<16x128xf32> -> vector<16x128xf32>
    %cst_31 = arith.constant dense<0.000000e+00> : vector<16x48xf32>
    %40 = tpu.matmul %12, %3, %cst_31 {dimension_numbers = #tpu.dot_dimension_numbers<[1], [0], [0], [1], [0, 0, 1, 1], [], []>} : vector<16x4xf32>, vector<4x48xf32>, vector<16x48xf32> -> vector<16x48xf32>
    %41 = vector.extract_strided_slice %12 {offsets = [0, 0], sizes = [16, 1], strides = [1, 1]} : vector<16x4xf32> to vector<16x1xf32>
    %42 = vector.extract_strided_slice %38 {offsets = [0, 0], sizes = [16, 48], strides = [1, 1]} : vector<16x192xf32> to vector<16x48xf32>
    %43 = vector.broadcast %41 : vector<16x1xf32> to vector<16x48xf32>
    %44 = arith.mulf %43, %42 : vector<16x48xf32>
    %45 = vector.extract_strided_slice %12 {offsets = [0, 1], sizes = [16, 1], strides = [1, 1]} : vector<16x4xf32> to vector<16x1xf32>
    %46 = vector.extract_strided_slice %38 {offsets = [0, 48], sizes = [16, 48], strides = [1, 1]} : vector<16x192xf32> to vector<16x48xf32>
    %47 = vector.broadcast %45 : vector<16x1xf32> to vector<16x48xf32>
    %48 = arith.mulf %47, %46 : vector<16x48xf32>
    %49 = arith.addf %44, %48 : vector<16x48xf32>
    %50 = vector.extract_strided_slice %12 {offsets = [0, 2], sizes = [16, 1], strides = [1, 1]} : vector<16x4xf32> to vector<16x1xf32>
    %51 = vector.extract_strided_slice %38 {offsets = [0, 96], sizes = [16, 48], strides = [1, 1]} : vector<16x192xf32> to vector<16x48xf32>
    %52 = vector.broadcast %50 : vector<16x1xf32> to vector<16x48xf32>
    %53 = arith.mulf %52, %51 : vector<16x48xf32>
    %54 = arith.addf %49, %53 : vector<16x48xf32>
    %55 = vector.extract_strided_slice %12 {offsets = [0, 3], sizes = [16, 1], strides = [1, 1]} : vector<16x4xf32> to vector<16x1xf32>
    %56 = vector.extract_strided_slice %38 {offsets = [0, 144], sizes = [16, 48], strides = [1, 1]} : vector<16x192xf32> to vector<16x48xf32>
    %57 = vector.broadcast %55 : vector<16x1xf32> to vector<16x48xf32>
    %58 = arith.mulf %57, %56 : vector<16x48xf32>
    %59 = arith.addf %54, %58 : vector<16x48xf32>
    %60 = vector.extract_strided_slice %12 {offsets = [0, 0], sizes = [16, 1], strides = [1, 1]} : vector<16x4xf32> to vector<16x1xf32>
    %61 = vector.extract_strided_slice %39 {offsets = [0, 0], sizes = [16, 32], strides = [1, 1]} : vector<16x128xf32> to vector<16x32xf32>
    %62 = vector.broadcast %60 : vector<16x1xf32> to vector<16x32xf32>
    %63 = arith.mulf %62, %61 : vector<16x32xf32>
    %64 = vector.extract_strided_slice %12 {offsets = [0, 1], sizes = [16, 1], strides = [1, 1]} : vector<16x4xf32> to vector<16x1xf32>
    %65 = vector.extract_strided_slice %39 {offsets = [0, 32], sizes = [16, 32], strides = [1, 1]} : vector<16x128xf32> to vector<16x32xf32>
    %66 = vector.broadcast %64 : vector<16x1xf32> to vector<16x32xf32>
    %67 = arith.mulf %66, %65 : vector<16x32xf32>
    %68 = arith.addf %63, %67 : vector<16x32xf32>
    %69 = vector.extract_strided_slice %12 {offsets = [0, 2], sizes = [16, 1], strides = [1, 1]} : vector<16x4xf32> to vector<16x1xf32>
    %70 = vector.extract_strided_slice %39 {offsets = [0, 64], sizes = [16, 32], strides = [1, 1]} : vector<16x128xf32> to vector<16x32xf32>
    %71 = vector.broadcast %69 : vector<16x1xf32> to vector<16x32xf32>
    %72 = arith.mulf %71, %70 : vector<16x32xf32>
    %73 = arith.addf %68, %72 : vector<16x32xf32>
    %74 = vector.extract_strided_slice %12 {offsets = [0, 3], sizes = [16, 1], strides = [1, 1]} : vector<16x4xf32> to vector<16x1xf32>
    %75 = vector.extract_strided_slice %39 {offsets = [0, 96], sizes = [16, 32], strides = [1, 1]} : vector<16x128xf32> to vector<16x32xf32>
    %76 = vector.broadcast %74 : vector<16x1xf32> to vector<16x32xf32>
    %77 = arith.mulf %76, %75 : vector<16x32xf32>
    %78 = arith.addf %73, %77 : vector<16x32xf32>
    %79 = vector.extract_strided_slice %59 {offsets = [0, 0], sizes = [16, 32], strides = [1, 1]} : vector<16x48xf32> to vector<16x32xf32>
    %80 = arith.addf %79, %78 : vector<16x32xf32>
    %81 = vector.extract_strided_slice %40 {offsets = [0, 0], sizes = [16, 32], strides = [1, 1]} : vector<16x48xf32> to vector<16x32xf32>
    %82 = arith.addf %80, %81 : vector<16x32xf32>
    %83 = vector.extract_strided_slice %82 {offsets = [0, 0], sizes = [16, 16], strides = [1, 1]} : vector<16x32xf32> to vector<16x16xf32>
    %cst_32 = arith.constant 0.000000e+00 : f32
    %84 = vector.broadcast %cst_32 : f32 to vector<16x16xf32>
    %85 = arith.subf %84, %83 : vector<16x16xf32>
    %86 = math.exp %85 : vector<16x16xf32>
    %cst_33 = arith.constant 1.000000e+00 : f32
    %87 = vector.broadcast %cst_33 : f32 to vector<16x16xf32>
    %88 = arith.addf %87, %86 : vector<16x16xf32>
    %89 = tpu.reciprocal %88 {approx = true} : vector<16x16xf32> -> vector<16x16xf32>
    %90 = vector.extract_strided_slice %82 {offsets = [0, 16], sizes = [16, 16], strides = [1, 1]} : vector<16x32xf32> to vector<16x16xf32>
    %cst_34 = arith.constant 0.000000e+00 : f32
    %91 = vector.broadcast %cst_34 : f32 to vector<16x16xf32>
    %92 = arith.subf %91, %90 : vector<16x16xf32>
    %93 = math.exp %92 : vector<16x16xf32>
    %cst_35 = arith.constant 1.000000e+00 : f32
    %94 = vector.broadcast %cst_35 : f32 to vector<16x16xf32>
    %95 = arith.addf %94, %93 : vector<16x16xf32>
    %96 = tpu.reciprocal %95 {approx = true} : vector<16x16xf32> -> vector<16x16xf32>
    %97 = arith.mulf %89, %6 : vector<16x16xf32>
    %98 = vector.extract_strided_slice %97 {offsets = [0, 0], sizes = [8, 16], strides = [1, 1]} : vector<16x16xf32> to vector<8x16xf32>
    %cst_36 = arith.constant dense<0.000000e+00> : vector<8x16xf32>
    %99 = tpu.matmul %25, %98, %cst_36 {dimension_numbers = #tpu.dot_dimension_numbers<[1], [0], [0], [1], [0, 0, 1, 1], [], []>} : vector<8x8xf32>, vector<8x16xf32>, vector<8x16xf32> -> vector<8x16xf32>
    %100 = vector.extract_strided_slice %97 {offsets = [8, 0], sizes = [8, 16], strides = [1, 1]} : vector<16x16xf32> to vector<8x16xf32>
    %cst_37 = arith.constant dense<0.000000e+00> : vector<8x16xf32>
    %101 = tpu.matmul %25, %100, %cst_37 {dimension_numbers = #tpu.dot_dimension_numbers<[1], [0], [0], [1], [0, 0, 1, 1], [], []>} : vector<8x8xf32>, vector<8x16xf32>, vector<8x16xf32> -> vector<8x16xf32>
    %102 = tpu.concatenate %99, %101 in 0 : vector<8x16xf32>, vector<8x16xf32> -> vector<16x16xf32>
    %103 = tpu.concatenate %97, %102 in 1 : vector<16x16xf32>, vector<16x16xf32> -> vector<16x32xf32>
    %cst_38 = arith.constant dense<0.000000e+00> : vector<16x64xf32>
    %104 = tpu.matmul %103, %2, %cst_38 {dimension_numbers = #tpu.dot_dimension_numbers<[1], [0], [0], [1], [0, 0, 1, 1], [], []>} : vector<16x32xf32>, vector<32x64xf32>, vector<16x64xf32> -> vector<16x64xf32>
    %105 = vector.extract_strided_slice %12 {offsets = [0, 0], sizes = [16, 1], strides = [1, 1]} : vector<16x4xf32> to vector<16x1xf32>
    %106 = vector.extract_strided_slice %104 {offsets = [0, 0], sizes = [16, 16], strides = [1, 1]} : vector<16x64xf32> to vector<16x16xf32>
    %107 = vector.broadcast %105 : vector<16x1xf32> to vector<16x16xf32>
    %108 = arith.mulf %107, %106 : vector<16x16xf32>
    %109 = vector.extract_strided_slice %12 {offsets = [0, 1], sizes = [16, 1], strides = [1, 1]} : vector<16x4xf32> to vector<16x1xf32>
    %110 = vector.extract_strided_slice %104 {offsets = [0, 16], sizes = [16, 16], strides = [1, 1]} : vector<16x64xf32> to vector<16x16xf32>
    %111 = vector.broadcast %109 : vector<16x1xf32> to vector<16x16xf32>
    %112 = arith.mulf %111, %110 : vector<16x16xf32>
    %113 = arith.addf %108, %112 : vector<16x16xf32>
    %114 = vector.extract_strided_slice %12 {offsets = [0, 2], sizes = [16, 1], strides = [1, 1]} : vector<16x4xf32> to vector<16x1xf32>
    %115 = vector.extract_strided_slice %104 {offsets = [0, 32], sizes = [16, 16], strides = [1, 1]} : vector<16x64xf32> to vector<16x16xf32>
    %116 = vector.broadcast %114 : vector<16x1xf32> to vector<16x16xf32>
    %117 = arith.mulf %116, %115 : vector<16x16xf32>
    %118 = arith.addf %113, %117 : vector<16x16xf32>
    %119 = vector.extract_strided_slice %12 {offsets = [0, 3], sizes = [16, 1], strides = [1, 1]} : vector<16x4xf32> to vector<16x1xf32>
    %120 = vector.extract_strided_slice %104 {offsets = [0, 48], sizes = [16, 16], strides = [1, 1]} : vector<16x64xf32> to vector<16x16xf32>
    %121 = vector.broadcast %119 : vector<16x1xf32> to vector<16x16xf32>
    %122 = arith.mulf %121, %120 : vector<16x16xf32>
    %123 = arith.addf %118, %122 : vector<16x16xf32>
    %124 = vector.extract_strided_slice %59 {offsets = [0, 32], sizes = [16, 16], strides = [1, 1]} : vector<16x48xf32> to vector<16x16xf32>
    %125 = arith.addf %124, %123 : vector<16x16xf32>
    %126 = vector.extract_strided_slice %40 {offsets = [0, 32], sizes = [16, 16], strides = [1, 1]} : vector<16x48xf32> to vector<16x16xf32>
    %127 = arith.addf %125, %126 : vector<16x16xf32>
    %128 = math.tanh %127 : vector<16x16xf32>
    %129 = arith.mulf %96, %6 : vector<16x16xf32>
    %cst_39 = arith.constant 1.000000e+00 : f32
    %130 = vector.broadcast %cst_39 : f32 to vector<16x16xf32>
    %131 = arith.subf %130, %96 : vector<16x16xf32>
    %132 = arith.mulf %131, %128 : vector<16x16xf32>
    %133 = arith.addf %129, %132 : vector<16x16xf32>
    %cst_40 = arith.constant dense<0.000000e+00> : vector<16x16xf32>
    %134 = tpu.matmul %8, %4, %cst_40 {dimension_numbers = #tpu.dot_dimension_numbers<[1], [0], [0], [1], [0, 0, 1, 1], [], []>} : vector<16x2xf32>, vector<2x16xf32>, vector<16x16xf32> -> vector<16x16xf32>
    %135 = vector.broadcast %5 : vector<1x16xf32> to vector<16x16xf32>
    %136 = arith.addf %134, %135 : vector<16x16xf32>
    %137 = arith.addf %133, %136 : vector<16x16xf32>
    %138 = vector.extract_strided_slice %133 {offsets = [0, 0], sizes = [8, 16], strides = [1, 1]} : vector<16x16xf32> to vector<8x16xf32>
    %c0_41 = arith.constant 0 : index
    %c0_42 = arith.constant 0 : index
    %c0_43 = arith.constant 0 : index
    %c0_44 = arith.constant 0 : index
    %139 = vector.load %arg11[%c0_41, %c0_42, %c0_43, %c0_44] : memref<2x4x8x16xf32, #tpu.memory_space<vmem>>, vector<1x1x8x16xf32>
    %140 = vector.shape_cast %139 : vector<1x1x8x16xf32> to vector<8x16xf32>
    %141 = vector.shape_cast %138 : vector<8x16xf32> to vector<1x1x8x16xf32>
    tpu.vector_store %arg11[%c0_41, %c0_42, %c0_43, %c0_44], %141 {strides = array<i32>} : memref<2x4x8x16xf32, #tpu.memory_space<vmem>>, vector<1x1x8x16xf32>,
    %142 = vector.extract_strided_slice %136 {offsets = [0, 0], sizes = [8, 16], strides = [1, 1]} : vector<16x16xf32> to vector<8x16xf32>
    %c0_45 = arith.constant 0 : index
    %c0_46 = arith.constant 0 : index
    %c0_47 = arith.constant 0 : index
    %c0_48 = arith.constant 0 : index
    %143 = vector.load %arg12[%c0_45, %c0_46, %c0_47, %c0_48] : memref<2x4x8x16xf32, #tpu.memory_space<vmem>>, vector<1x1x8x16xf32>
    %144 = vector.shape_cast %143 : vector<1x1x8x16xf32> to vector<8x16xf32>
    %145 = vector.shape_cast %142 : vector<8x16xf32> to vector<1x1x8x16xf32>
    tpu.vector_store %arg12[%c0_45, %c0_46, %c0_47, %c0_48], %145 {strides = array<i32>} : memref<2x4x8x16xf32, #tpu.memory_space<vmem>>, vector<1x1x8x16xf32>,
    %146 = vector.extract_strided_slice %137 {offsets = [0, 0], sizes = [8, 16], strides = [1, 1]} : vector<16x16xf32> to vector<8x16xf32>
    %c0_49 = arith.constant 0 : index
    %c0_50 = arith.constant 0 : index
    %c0_51 = arith.constant 0 : index
    %c0_52 = arith.constant 0 : index
    %147 = vector.load %arg10[%c0_49, %c0_50, %c0_51, %c0_52] : memref<2x4x8x16xf32, #tpu.memory_space<vmem>>, vector<1x1x8x16xf32>
    %148 = vector.shape_cast %147 : vector<1x1x8x16xf32> to vector<8x16xf32>
    %149 = vector.shape_cast %146 : vector<8x16xf32> to vector<1x1x8x16xf32>
    tpu.vector_store %arg10[%c0_49, %c0_50, %c0_51, %c0_52], %149 {strides = array<i32>} : memref<2x4x8x16xf32, #tpu.memory_space<vmem>>, vector<1x1x8x16xf32>,
    %150 = vector.extract_strided_slice %133 {offsets = [8, 0], sizes = [8, 16], strides = [1, 1]} : vector<16x16xf32> to vector<8x16xf32>
    %c1 = arith.constant 1 : index
    %c0_53 = arith.constant 0 : index
    %c0_54 = arith.constant 0 : index
    %c0_55 = arith.constant 0 : index
    %151 = vector.load %arg11[%c1, %c0_53, %c0_54, %c0_55] : memref<2x4x8x16xf32, #tpu.memory_space<vmem>>, vector<1x1x8x16xf32>
    %152 = vector.shape_cast %151 : vector<1x1x8x16xf32> to vector<8x16xf32>
    %153 = vector.shape_cast %150 : vector<8x16xf32> to vector<1x1x8x16xf32>
    tpu.vector_store %arg11[%c1, %c0_53, %c0_54, %c0_55], %153 {strides = array<i32>} : memref<2x4x8x16xf32, #tpu.memory_space<vmem>>, vector<1x1x8x16xf32>,
    %154 = vector.extract_strided_slice %136 {offsets = [8, 0], sizes = [8, 16], strides = [1, 1]} : vector<16x16xf32> to vector<8x16xf32>
    %c1_56 = arith.constant 1 : index
    %c0_57 = arith.constant 0 : index
    %c0_58 = arith.constant 0 : index
    %c0_59 = arith.constant 0 : index
    %155 = vector.load %arg12[%c1_56, %c0_57, %c0_58, %c0_59] : memref<2x4x8x16xf32, #tpu.memory_space<vmem>>, vector<1x1x8x16xf32>
    %156 = vector.shape_cast %155 : vector<1x1x8x16xf32> to vector<8x16xf32>
    %157 = vector.shape_cast %154 : vector<8x16xf32> to vector<1x1x8x16xf32>
    tpu.vector_store %arg12[%c1_56, %c0_57, %c0_58, %c0_59], %157 {strides = array<i32>} : memref<2x4x8x16xf32, #tpu.memory_space<vmem>>, vector<1x1x8x16xf32>,
    %158 = vector.extract_strided_slice %137 {offsets = [8, 0], sizes = [8, 16], strides = [1, 1]} : vector<16x16xf32> to vector<8x16xf32>
    %c1_60 = arith.constant 1 : index
    %c0_61 = arith.constant 0 : index
    %c0_62 = arith.constant 0 : index
    %c0_63 = arith.constant 0 : index
    %159 = vector.load %arg10[%c1_60, %c0_61, %c0_62, %c0_63] : memref<2x4x8x16xf32, #tpu.memory_space<vmem>>, vector<1x1x8x16xf32>
    %160 = vector.shape_cast %159 : vector<1x1x8x16xf32> to vector<8x16xf32>
    %161 = vector.shape_cast %158 : vector<8x16xf32> to vector<1x1x8x16xf32>
    tpu.vector_store %arg10[%c1_60, %c0_61, %c0_62, %c0_63], %161 {strides = array<i32>} : memref<2x4x8x16xf32, #tpu.memory_space<vmem>>, vector<1x1x8x16xf32>,
    %c1_64 = arith.constant 1 : index
    %c0_65 = arith.constant 0 : index
    %c0_66 = arith.constant 0 : index
    %162 = vector.load %arg0[%c1_64, %c0_65, %c0_66] : memref<4x16x2xf32, #tpu.memory_space<vmem>>, vector<1x16x2xf32>
    %163 = vector.shape_cast %162 : vector<1x16x2xf32> to vector<16x2xf32>
    %c1_67 = arith.constant 1 : index
    %c0_68 = arith.constant 0 : index
    %c0_69 = arith.constant 0 : index
    %164 = vector.load %arg2[%c1_67, %c0_68, %c0_69] : memref<4x8x4xf32, #tpu.memory_space<vmem>>, vector<1x8x4xf32>
    %165 = vector.shape_cast %164 : vector<1x8x4xf32> to vector<8x4xf32>
    %c1_70 = arith.constant 1 : index
    %c0_71 = arith.constant 0 : index
    %c0_72 = arith.constant 0 : index
    %166 = vector.load %arg3[%c1_70, %c0_71, %c0_72] : memref<4x16x4xf32, #tpu.memory_space<vmem>>, vector<1x16x4xf32>
    %167 = vector.shape_cast %166 : vector<1x16x4xf32> to vector<16x4xf32>
    %cst_73 = arith.constant dense<0.000000e+00> : vector<8x8xf32>
    %168 = tpu.matmul %165, %165, %cst_73 {dimension_numbers = #tpu.dot_dimension_numbers<[1], [1], [0], [0], [0, 0, 1, 0], [], []>} : vector<8x4xf32>, vector<8x4xf32>, vector<8x8xf32> -> vector<8x8xf32>
    %cst_74 = arith.constant 0.000000e+00 : f32
    %169 = vector.broadcast %cst_74 : f32 to vector<8x8xf32>
    %170 = arith.maximumf %168, %169 : vector<8x8xf32>
    %cst_75 = arith.constant dense<0xFF800000> : vector<8xf32>
    %171 = vector.multi_reduction <maximumf>, %170, %cst_75 [1] : vector<8x8xf32> to vector<8xf32>
    %172 = vector.shape_cast %171 : vector<8xf32> to vector<8x1xf32>
    %173 = vector.broadcast %172 : vector<8x1xf32> to vector<8x8xf32>
    %174 = arith.subf %170, %173 : vector<8x8xf32>
    %175 = math.exp %174 : vector<8x8xf32>
    %cst_76 = arith.constant dense<0.000000e+00> : vector<8xf32>
    %176 = vector.multi_reduction <add>, %175, %cst_76 [1] : vector<8x8xf32> to vector<8xf32>
    %177 = vector.shape_cast %176 : vector<8xf32> to vector<8x1xf32>
    %178 = tpu.reciprocal %177 {approx = true} : vector<8x1xf32> -> vector<8x1xf32>
    %179 = vector.broadcast %178 : vector<8x1xf32> to vector<8x8xf32>
    %180 = arith.mulf %175, %179 : vector<8x8xf32>
    %181 = vector.extract_strided_slice %163 {offsets = [0, 0], sizes = [8, 2], strides = [1, 1]} : vector<16x2xf32> to vector<8x2xf32>
    %cst_77 = arith.constant dense<0.000000e+00> : vector<8x2xf32>
    %182 = tpu.matmul %180, %181, %cst_77 {dimension_numbers = #tpu.dot_dimension_numbers<[1], [0], [0], [1], [0, 0, 1, 1], [], []>} : vector<8x8xf32>, vector<8x2xf32>, vector<8x2xf32> -> vector<8x2xf32>
    %183 = vector.extract_strided_slice %163 {offsets = [8, 0], sizes = [8, 2], strides = [1, 1]} : vector<16x2xf32> to vector<8x2xf32>
    %cst_78 = arith.constant dense<0.000000e+00> : vector<8x2xf32>
    %184 = tpu.matmul %180, %183, %cst_78 {dimension_numbers = #tpu.dot_dimension_numbers<[1], [0], [0], [1], [0, 0, 1, 1], [], []>} : vector<8x8xf32>, vector<8x2xf32>, vector<8x2xf32> -> vector<8x2xf32>
    %185 = tpu.concatenate %182, %184 in 0 : vector<8x2xf32>, vector<8x2xf32> -> vector<16x2xf32>
    %186 = tpu.concatenate %163, %185 in 1 : vector<16x2xf32>, vector<16x2xf32> -> vector<16x4xf32>
    %187 = vector.extract_strided_slice %133 {offsets = [0, 0], sizes = [8, 16], strides = [1, 1]} : vector<16x16xf32> to vector<8x16xf32>
    %cst_79 = arith.constant dense<0.000000e+00> : vector<8x16xf32>
    %188 = tpu.matmul %180, %187, %cst_79 {dimension_numbers = #tpu.dot_dimension_numbers<[1], [0], [0], [1], [0, 0, 1, 1], [], []>} : vector<8x8xf32>, vector<8x16xf32>, vector<8x16xf32> -> vector<8x16xf32>
    %189 = vector.extract_strided_slice %133 {offsets = [8, 0], sizes = [8, 16], strides = [1, 1]} : vector<16x16xf32> to vector<8x16xf32>
    %cst_80 = arith.constant dense<0.000000e+00> : vector<8x16xf32>
    %190 = tpu.matmul %180, %189, %cst_80 {dimension_numbers = #tpu.dot_dimension_numbers<[1], [0], [0], [1], [0, 0, 1, 1], [], []>} : vector<8x8xf32>, vector<8x16xf32>, vector<8x16xf32> -> vector<8x16xf32>
    %191 = tpu.concatenate %188, %190 in 0 : vector<8x16xf32>, vector<8x16xf32> -> vector<16x16xf32>
    %192 = tpu.concatenate %133, %191 in 1 : vector<16x16xf32>, vector<16x16xf32> -> vector<16x32xf32>
    %cst_81 = arith.constant dense<0.000000e+00> : vector<16x192xf32>
    %193 = tpu.matmul %186, %0, %cst_81 {dimension_numbers = #tpu.dot_dimension_numbers<[1], [0], [0], [1], [0, 0, 1, 1], [], []>} : vector<16x4xf32>, vector<4x192xf32>, vector<16x192xf32> -> vector<16x192xf32>
    %cst_82 = arith.constant dense<0.000000e+00> : vector<16x128xf32>
    %194 = tpu.matmul %192, %1, %cst_82 {dimension_numbers = #tpu.dot_dimension_numbers<[1], [0], [0], [1], [0, 0, 1, 1], [], []>} : vector<16x32xf32>, vector<32x128xf32>, vector<16x128xf32> -> vector<16x128xf32>
    %cst_83 = arith.constant dense<0.000000e+00> : vector<16x48xf32>
    %195 = tpu.matmul %167, %3, %cst_83 {dimension_numbers = #tpu.dot_dimension_numbers<[1], [0], [0], [1], [0, 0, 1, 1], [], []>} : vector<16x4xf32>, vector<4x48xf32>, vector<16x48xf32> -> vector<16x48xf32>
    %196 = vector.extract_strided_slice %167 {offsets = [0, 0], sizes = [16, 1], strides = [1, 1]} : vector<16x4xf32> to vector<16x1xf32>
    %197 = vector.extract_strided_slice %193 {offsets = [0, 0], sizes = [16, 48], strides = [1, 1]} : vector<16x192xf32> to vector<16x48xf32>
    %198 = vector.broadcast %196 : vector<16x1xf32> to vector<16x48xf32>
    %199 = arith.mulf %198, %197 : vector<16x48xf32>
    %200 = vector.extract_strided_slice %167 {offsets = [0, 1], sizes = [16, 1], strides = [1, 1]} : vector<16x4xf32> to vector<16x1xf32>
    %201 = vector.extract_strided_slice %193 {offsets = [0, 48], sizes = [16, 48], strides = [1, 1]} : vector<16x192xf32> to vector<16x48xf32>
    %202 = vector.broadcast %200 : vector<16x1xf32> to vector<16x48xf32>
    %203 = arith.mulf %202, %201 : vector<16x48xf32>
    %204 = arith.addf %199, %203 : vector<16x48xf32>
    %205 = vector.extract_strided_slice %167 {offsets = [0, 2], sizes = [16, 1], strides = [1, 1]} : vector<16x4xf32> to vector<16x1xf32>
    %206 = vector.extract_strided_slice %193 {offsets = [0, 96], sizes = [16, 48], strides = [1, 1]} : vector<16x192xf32> to vector<16x48xf32>
    %207 = vector.broadcast %205 : vector<16x1xf32> to vector<16x48xf32>
    %208 = arith.mulf %207, %206 : vector<16x48xf32>
    %209 = arith.addf %204, %208 : vector<16x48xf32>
    %210 = vector.extract_strided_slice %167 {offsets = [0, 3], sizes = [16, 1], strides = [1, 1]} : vector<16x4xf32> to vector<16x1xf32>
    %211 = vector.extract_strided_slice %193 {offsets = [0, 144], sizes = [16, 48], strides = [1, 1]} : vector<16x192xf32> to vector<16x48xf32>
    %212 = vector.broadcast %210 : vector<16x1xf32> to vector<16x48xf32>
    %213 = arith.mulf %212, %211 : vector<16x48xf32>
    %214 = arith.addf %209, %213 : vector<16x48xf32>
    %215 = vector.extract_strided_slice %167 {offsets = [0, 0], sizes = [16, 1], strides = [1, 1]} : vector<16x4xf32> to vector<16x1xf32>
    %216 = vector.extract_strided_slice %194 {offsets = [0, 0], sizes = [16, 32], strides = [1, 1]} : vector<16x128xf32> to vector<16x32xf32>
    %217 = vector.broadcast %215 : vector<16x1xf32> to vector<16x32xf32>
    %218 = arith.mulf %217, %216 : vector<16x32xf32>
    %219 = vector.extract_strided_slice %167 {offsets = [0, 1], sizes = [16, 1], strides = [1, 1]} : vector<16x4xf32> to vector<16x1xf32>
    %220 = vector.extract_strided_slice %194 {offsets = [0, 32], sizes = [16, 32], strides = [1, 1]} : vector<16x128xf32> to vector<16x32xf32>
    %221 = vector.broadcast %219 : vector<16x1xf32> to vector<16x32xf32>
    %222 = arith.mulf %221, %220 : vector<16x32xf32>
    %223 = arith.addf %218, %222 : vector<16x32xf32>
    %224 = vector.extract_strided_slice %167 {offsets = [0, 2], sizes = [16, 1], strides = [1, 1]} : vector<16x4xf32> to vector<16x1xf32>
    %225 = vector.extract_strided_slice %194 {offsets = [0, 64], sizes = [16, 32], strides = [1, 1]} : vector<16x128xf32> to vector<16x32xf32>
    %226 = vector.broadcast %224 : vector<16x1xf32> to vector<16x32xf32>
    %227 = arith.mulf %226, %225 : vector<16x32xf32>
    %228 = arith.addf %223, %227 : vector<16x32xf32>
    %229 = vector.extract_strided_slice %167 {offsets = [0, 3], sizes = [16, 1], strides = [1, 1]} : vector<16x4xf32> to vector<16x1xf32>
    %230 = vector.extract_strided_slice %194 {offsets = [0, 96], sizes = [16, 32], strides = [1, 1]} : vector<16x128xf32> to vector<16x32xf32>
    %231 = vector.broadcast %229 : vector<16x1xf32> to vector<16x32xf32>
    %232 = arith.mulf %231, %230 : vector<16x32xf32>
    %233 = arith.addf %228, %232 : vector<16x32xf32>
    %234 = vector.extract_strided_slice %214 {offsets = [0, 0], sizes = [16, 32], strides = [1, 1]} : vector<16x48xf32> to vector<16x32xf32>
    %235 = arith.addf %234, %233 : vector<16x32xf32>
    %236 = vector.extract_strided_slice %195 {offsets = [0, 0], sizes = [16, 32], strides = [1, 1]} : vector<16x48xf32> to vector<16x32xf32>
    %237 = arith.addf %235, %236 : vector<16x32xf32>
    %238 = vector.extract_strided_slice %237 {offsets = [0, 0], sizes = [16, 16], strides = [1, 1]} : vector<16x32xf32> to vector<16x16xf32>
    %cst_84 = arith.constant 0.000000e+00 : f32
    %239 = vector.broadcast %cst_84 : f32 to vector<16x16xf32>
    %240 = arith.subf %239, %238 : vector<16x16xf32>
    %241 = math.exp %240 : vector<16x16xf32>
    %cst_85 = arith.constant 1.000000e+00 : f32
    %242 = vector.broadcast %cst_85 : f32 to vector<16x16xf32>
    %243 = arith.addf %242, %241 : vector<16x16xf32>
    %244 = tpu.reciprocal %243 {approx = true} : vector<16x16xf32> -> vector<16x16xf32>
    %245 = vector.extract_strided_slice %237 {offsets = [0, 16], sizes = [16, 16], strides = [1, 1]} : vector<16x32xf32> to vector<16x16xf32>
    %cst_86 = arith.constant 0.000000e+00 : f32
    %246 = vector.broadcast %cst_86 : f32 to vector<16x16xf32>
    %247 = arith.subf %246, %245 : vector<16x16xf32>
    %248 = math.exp %247 : vector<16x16xf32>
    %cst_87 = arith.constant 1.000000e+00 : f32
    %249 = vector.broadcast %cst_87 : f32 to vector<16x16xf32>
    %250 = arith.addf %249, %248 : vector<16x16xf32>
    %251 = tpu.reciprocal %250 {approx = true} : vector<16x16xf32> -> vector<16x16xf32>
    %252 = arith.mulf %244, %133 : vector<16x16xf32>
    %253 = vector.extract_strided_slice %252 {offsets = [0, 0], sizes = [8, 16], strides = [1, 1]} : vector<16x16xf32> to vector<8x16xf32>
    %cst_88 = arith.constant dense<0.000000e+00> : vector<8x16xf32>
    %254 = tpu.matmul %180, %253, %cst_88 {dimension_numbers = #tpu.dot_dimension_numbers<[1], [0], [0], [1], [0, 0, 1, 1], [], []>} : vector<8x8xf32>, vector<8x16xf32>, vector<8x16xf32> -> vector<8x16xf32>
    %255 = vector.extract_strided_slice %252 {offsets = [8, 0], sizes = [8, 16], strides = [1, 1]} : vector<16x16xf32> to vector<8x16xf32>
    %cst_89 = arith.constant dense<0.000000e+00> : vector<8x16xf32>
    %256 = tpu.matmul %180, %255, %cst_89 {dimension_numbers = #tpu.dot_dimension_numbers<[1], [0], [0], [1], [0, 0, 1, 1], [], []>} : vector<8x8xf32>, vector<8x16xf32>, vector<8x16xf32> -> vector<8x16xf32>
    %257 = tpu.concatenate %254, %256 in 0 : vector<8x16xf32>, vector<8x16xf32> -> vector<16x16xf32>
    %258 = tpu.concatenate %252, %257 in 1 : vector<16x16xf32>, vector<16x16xf32> -> vector<16x32xf32>
    %cst_90 = arith.constant dense<0.000000e+00> : vector<16x64xf32>
    %259 = tpu.matmul %258, %2, %cst_90 {dimension_numbers = #tpu.dot_dimension_numbers<[1], [0], [0], [1], [0, 0, 1, 1], [], []>} : vector<16x32xf32>, vector<32x64xf32>, vector<16x64xf32> -> vector<16x64xf32>
    %260 = vector.extract_strided_slice %167 {offsets = [0, 0], sizes = [16, 1], strides = [1, 1]} : vector<16x4xf32> to vector<16x1xf32>
    %261 = vector.extract_strided_slice %259 {offsets = [0, 0], sizes = [16, 16], strides = [1, 1]} : vector<16x64xf32> to vector<16x16xf32>
    %262 = vector.broadcast %260 : vector<16x1xf32> to vector<16x16xf32>
    %263 = arith.mulf %262, %261 : vector<16x16xf32>
    %264 = vector.extract_strided_slice %167 {offsets = [0, 1], sizes = [16, 1], strides = [1, 1]} : vector<16x4xf32> to vector<16x1xf32>
    %265 = vector.extract_strided_slice %259 {offsets = [0, 16], sizes = [16, 16], strides = [1, 1]} : vector<16x64xf32> to vector<16x16xf32>
    %266 = vector.broadcast %264 : vector<16x1xf32> to vector<16x16xf32>
    %267 = arith.mulf %266, %265 : vector<16x16xf32>
    %268 = arith.addf %263, %267 : vector<16x16xf32>
    %269 = vector.extract_strided_slice %167 {offsets = [0, 2], sizes = [16, 1], strides = [1, 1]} : vector<16x4xf32> to vector<16x1xf32>
    %270 = vector.extract_strided_slice %259 {offsets = [0, 32], sizes = [16, 16], strides = [1, 1]} : vector<16x64xf32> to vector<16x16xf32>
    %271 = vector.broadcast %269 : vector<16x1xf32> to vector<16x16xf32>
    %272 = arith.mulf %271, %270 : vector<16x16xf32>
    %273 = arith.addf %268, %272 : vector<16x16xf32>
    %274 = vector.extract_strided_slice %167 {offsets = [0, 3], sizes = [16, 1], strides = [1, 1]} : vector<16x4xf32> to vector<16x1xf32>
    %275 = vector.extract_strided_slice %259 {offsets = [0, 48], sizes = [16, 16], strides = [1, 1]} : vector<16x64xf32> to vector<16x16xf32>
    %276 = vector.broadcast %274 : vector<16x1xf32> to vector<16x16xf32>
    %277 = arith.mulf %276, %275 : vector<16x16xf32>
    %278 = arith.addf %273, %277 : vector<16x16xf32>
    %279 = vector.extract_strided_slice %214 {offsets = [0, 32], sizes = [16, 16], strides = [1, 1]} : vector<16x48xf32> to vector<16x16xf32>
    %280 = arith.addf %279, %278 : vector<16x16xf32>
    %281 = vector.extract_strided_slice %195 {offsets = [0, 32], sizes = [16, 16], strides = [1, 1]} : vector<16x48xf32> to vector<16x16xf32>
    %282 = arith.addf %280, %281 : vector<16x16xf32>
    %283 = math.tanh %282 : vector<16x16xf32>
    %284 = arith.mulf %251, %133 : vector<16x16xf32>
    %cst_91 = arith.constant 1.000000e+00 : f32
    %285 = vector.broadcast %cst_91 : f32 to vector<16x16xf32>
    %286 = arith.subf %285, %251 : vector<16x16xf32>
    %287 = arith.mulf %286, %283 : vector<16x16xf32>
    %288 = arith.addf %284, %287 : vector<16x16xf32>
    %cst_92 = arith.constant dense<0.000000e+00> : vector<16x16xf32>
    %289 = tpu.matmul %163, %4, %cst_92 {dimension_numbers = #tpu.dot_dimension_numbers<[1], [0], [0], [1], [0, 0, 1, 1], [], []>} : vector<16x2xf32>, vector<2x16xf32>, vector<16x16xf32> -> vector<16x16xf32>
    %290 = vector.broadcast %5 : vector<1x16xf32> to vector<16x16xf32>
    %291 = arith.addf %289, %290 : vector<16x16xf32>
    %292 = arith.addf %288, %291 : vector<16x16xf32>
    %293 = vector.extract_strided_slice %288 {offsets = [0, 0], sizes = [8, 16], strides = [1, 1]} : vector<16x16xf32> to vector<8x16xf32>
    %c0_93 = arith.constant 0 : index
    %c1_94 = arith.constant 1 : index
    %c0_95 = arith.constant 0 : index
    %c0_96 = arith.constant 0 : index
    %294 = vector.load %arg11[%c0_93, %c1_94, %c0_95, %c0_96] : memref<2x4x8x16xf32, #tpu.memory_space<vmem>>, vector<1x1x8x16xf32>
    %295 = vector.shape_cast %294 : vector<1x1x8x16xf32> to vector<8x16xf32>
    %296 = vector.shape_cast %293 : vector<8x16xf32> to vector<1x1x8x16xf32>
    tpu.vector_store %arg11[%c0_93, %c1_94, %c0_95, %c0_96], %296 {strides = array<i32>} : memref<2x4x8x16xf32, #tpu.memory_space<vmem>>, vector<1x1x8x16xf32>,
    %297 = vector.extract_strided_slice %291 {offsets = [0, 0], sizes = [8, 16], strides = [1, 1]} : vector<16x16xf32> to vector<8x16xf32>
    %c0_97 = arith.constant 0 : index
    %c1_98 = arith.constant 1 : index
    %c0_99 = arith.constant 0 : index
    %c0_100 = arith.constant 0 : index
    %298 = vector.load %arg12[%c0_97, %c1_98, %c0_99, %c0_100] : memref<2x4x8x16xf32, #tpu.memory_space<vmem>>, vector<1x1x8x16xf32>
    %299 = vector.shape_cast %298 : vector<1x1x8x16xf32> to vector<8x16xf32>
    %300 = vector.shape_cast %297 : vector<8x16xf32> to vector<1x1x8x16xf32>
    tpu.vector_store %arg12[%c0_97, %c1_98, %c0_99, %c0_100], %300 {strides = array<i32>} : memref<2x4x8x16xf32, #tpu.memory_space<vmem>>, vector<1x1x8x16xf32>,
    %301 = vector.extract_strided_slice %292 {offsets = [0, 0], sizes = [8, 16], strides = [1, 1]} : vector<16x16xf32> to vector<8x16xf32>
    %c0_101 = arith.constant 0 : index
    %c1_102 = arith.constant 1 : index
    %c0_103 = arith.constant 0 : index
    %c0_104 = arith.constant 0 : index
    %302 = vector.load %arg10[%c0_101, %c1_102, %c0_103, %c0_104] : memref<2x4x8x16xf32, #tpu.memory_space<vmem>>, vector<1x1x8x16xf32>
    %303 = vector.shape_cast %302 : vector<1x1x8x16xf32> to vector<8x16xf32>
    %304 = vector.shape_cast %301 : vector<8x16xf32> to vector<1x1x8x16xf32>
    tpu.vector_store %arg10[%c0_101, %c1_102, %c0_103, %c0_104], %304 {strides = array<i32>} : memref<2x4x8x16xf32, #tpu.memory_space<vmem>>, vector<1x1x8x16xf32>,
    %305 = vector.extract_strided_slice %288 {offsets = [8, 0], sizes = [8, 16], strides = [1, 1]} : vector<16x16xf32> to vector<8x16xf32>
    %c1_105 = arith.constant 1 : index
    %c1_106 = arith.constant 1 : index
    %c0_107 = arith.constant 0 : index
    %c0_108 = arith.constant 0 : index
    %306 = vector.load %arg11[%c1_105, %c1_106, %c0_107, %c0_108] : memref<2x4x8x16xf32, #tpu.memory_space<vmem>>, vector<1x1x8x16xf32>
    %307 = vector.shape_cast %306 : vector<1x1x8x16xf32> to vector<8x16xf32>
    %308 = vector.shape_cast %305 : vector<8x16xf32> to vector<1x1x8x16xf32>
    tpu.vector_store %arg11[%c1_105, %c1_106, %c0_107, %c0_108], %308 {strides = array<i32>} : memref<2x4x8x16xf32, #tpu.memory_space<vmem>>, vector<1x1x8x16xf32>,
    %309 = vector.extract_strided_slice %291 {offsets = [8, 0], sizes = [8, 16], strides = [1, 1]} : vector<16x16xf32> to vector<8x16xf32>
    %c1_109 = arith.constant 1 : index
    %c1_110 = arith.constant 1 : index
    %c0_111 = arith.constant 0 : index
    %c0_112 = arith.constant 0 : index
    %310 = vector.load %arg12[%c1_109, %c1_110, %c0_111, %c0_112] : memref<2x4x8x16xf32, #tpu.memory_space<vmem>>, vector<1x1x8x16xf32>
    %311 = vector.shape_cast %310 : vector<1x1x8x16xf32> to vector<8x16xf32>
    %312 = vector.shape_cast %309 : vector<8x16xf32> to vector<1x1x8x16xf32>
    tpu.vector_store %arg12[%c1_109, %c1_110, %c0_111, %c0_112], %312 {strides = array<i32>} : memref<2x4x8x16xf32, #tpu.memory_space<vmem>>, vector<1x1x8x16xf32>,
    %313 = vector.extract_strided_slice %292 {offsets = [8, 0], sizes = [8, 16], strides = [1, 1]} : vector<16x16xf32> to vector<8x16xf32>
    %c1_113 = arith.constant 1 : index
    %c1_114 = arith.constant 1 : index
    %c0_115 = arith.constant 0 : index
    %c0_116 = arith.constant 0 : index
    %314 = vector.load %arg10[%c1_113, %c1_114, %c0_115, %c0_116] : memref<2x4x8x16xf32, #tpu.memory_space<vmem>>, vector<1x1x8x16xf32>
    %315 = vector.shape_cast %314 : vector<1x1x8x16xf32> to vector<8x16xf32>
    %316 = vector.shape_cast %313 : vector<8x16xf32> to vector<1x1x8x16xf32>
    tpu.vector_store %arg10[%c1_113, %c1_114, %c0_115, %c0_116], %316 {strides = array<i32>} : memref<2x4x8x16xf32, #tpu.memory_space<vmem>>, vector<1x1x8x16xf32>,
    %c2 = arith.constant 2 : index
    %c0_117 = arith.constant 0 : index
    %c0_118 = arith.constant 0 : index
    %317 = vector.load %arg0[%c2, %c0_117, %c0_118] : memref<4x16x2xf32, #tpu.memory_space<vmem>>, vector<1x16x2xf32>
    %318 = vector.shape_cast %317 : vector<1x16x2xf32> to vector<16x2xf32>
    %c2_119 = arith.constant 2 : index
    %c0_120 = arith.constant 0 : index
    %c0_121 = arith.constant 0 : index
    %319 = vector.load %arg2[%c2_119, %c0_120, %c0_121] : memref<4x8x4xf32, #tpu.memory_space<vmem>>, vector<1x8x4xf32>
    %320 = vector.shape_cast %319 : vector<1x8x4xf32> to vector<8x4xf32>
    %c2_122 = arith.constant 2 : index
    %c0_123 = arith.constant 0 : index
    %c0_124 = arith.constant 0 : index
    %321 = vector.load %arg3[%c2_122, %c0_123, %c0_124] : memref<4x16x4xf32, #tpu.memory_space<vmem>>, vector<1x16x4xf32>
    %322 = vector.shape_cast %321 : vector<1x16x4xf32> to vector<16x4xf32>
    %cst_125 = arith.constant dense<0.000000e+00> : vector<8x8xf32>
    %323 = tpu.matmul %320, %320, %cst_125 {dimension_numbers = #tpu.dot_dimension_numbers<[1], [1], [0], [0], [0, 0, 1, 0], [], []>} : vector<8x4xf32>, vector<8x4xf32>, vector<8x8xf32> -> vector<8x8xf32>
    %cst_126 = arith.constant 0.000000e+00 : f32
    %324 = vector.broadcast %cst_126 : f32 to vector<8x8xf32>
    %325 = arith.maximumf %323, %324 : vector<8x8xf32>
    %cst_127 = arith.constant dense<0xFF800000> : vector<8xf32>
    %326 = vector.multi_reduction <maximumf>, %325, %cst_127 [1] : vector<8x8xf32> to vector<8xf32>
    %327 = vector.shape_cast %326 : vector<8xf32> to vector<8x1xf32>
    %328 = vector.broadcast %327 : vector<8x1xf32> to vector<8x8xf32>
    %329 = arith.subf %325, %328 : vector<8x8xf32>
    %330 = math.exp %329 : vector<8x8xf32>
    %cst_128 = arith.constant dense<0.000000e+00> : vector<8xf32>
    %331 = vector.multi_reduction <add>, %330, %cst_128 [1] : vector<8x8xf32> to vector<8xf32>
    %332 = vector.shape_cast %331 : vector<8xf32> to vector<8x1xf32>
    %333 = tpu.reciprocal %332 {approx = true} : vector<8x1xf32> -> vector<8x1xf32>
    %334 = vector.broadcast %333 : vector<8x1xf32> to vector<8x8xf32>
    %335 = arith.mulf %330, %334 : vector<8x8xf32>
    %336 = vector.extract_strided_slice %318 {offsets = [0, 0], sizes = [8, 2], strides = [1, 1]} : vector<16x2xf32> to vector<8x2xf32>
    %cst_129 = arith.constant dense<0.000000e+00> : vector<8x2xf32>
    %337 = tpu.matmul %335, %336, %cst_129 {dimension_numbers = #tpu.dot_dimension_numbers<[1], [0], [0], [1], [0, 0, 1, 1], [], []>} : vector<8x8xf32>, vector<8x2xf32>, vector<8x2xf32> -> vector<8x2xf32>
    %338 = vector.extract_strided_slice %318 {offsets = [8, 0], sizes = [8, 2], strides = [1, 1]} : vector<16x2xf32> to vector<8x2xf32>
    %cst_130 = arith.constant dense<0.000000e+00> : vector<8x2xf32>
    %339 = tpu.matmul %335, %338, %cst_130 {dimension_numbers = #tpu.dot_dimension_numbers<[1], [0], [0], [1], [0, 0, 1, 1], [], []>} : vector<8x8xf32>, vector<8x2xf32>, vector<8x2xf32> -> vector<8x2xf32>
    %340 = tpu.concatenate %337, %339 in 0 : vector<8x2xf32>, vector<8x2xf32> -> vector<16x2xf32>
    %341 = tpu.concatenate %318, %340 in 1 : vector<16x2xf32>, vector<16x2xf32> -> vector<16x4xf32>
    %342 = vector.extract_strided_slice %288 {offsets = [0, 0], sizes = [8, 16], strides = [1, 1]} : vector<16x16xf32> to vector<8x16xf32>
    %cst_131 = arith.constant dense<0.000000e+00> : vector<8x16xf32>
    %343 = tpu.matmul %335, %342, %cst_131 {dimension_numbers = #tpu.dot_dimension_numbers<[1], [0], [0], [1], [0, 0, 1, 1], [], []>} : vector<8x8xf32>, vector<8x16xf32>, vector<8x16xf32> -> vector<8x16xf32>
    %344 = vector.extract_strided_slice %288 {offsets = [8, 0], sizes = [8, 16], strides = [1, 1]} : vector<16x16xf32> to vector<8x16xf32>
    %cst_132 = arith.constant dense<0.000000e+00> : vector<8x16xf32>
    %345 = tpu.matmul %335, %344, %cst_132 {dimension_numbers = #tpu.dot_dimension_numbers<[1], [0], [0], [1], [0, 0, 1, 1], [], []>} : vector<8x8xf32>, vector<8x16xf32>, vector<8x16xf32> -> vector<8x16xf32>
    %346 = tpu.concatenate %343, %345 in 0 : vector<8x16xf32>, vector<8x16xf32> -> vector<16x16xf32>
    %347 = tpu.concatenate %288, %346 in 1 : vector<16x16xf32>, vector<16x16xf32> -> vector<16x32xf32>
    %cst_133 = arith.constant dense<0.000000e+00> : vector<16x192xf32>
    %348 = tpu.matmul %341, %0, %cst_133 {dimension_numbers = #tpu.dot_dimension_numbers<[1], [0], [0], [1], [0, 0, 1, 1], [], []>} : vector<16x4xf32>, vector<4x192xf32>, vector<16x192xf32> -> vector<16x192xf32>
    %cst_134 = arith.constant dense<0.000000e+00> : vector<16x128xf32>
    %349 = tpu.matmul %347, %1, %cst_134 {dimension_numbers = #tpu.dot_dimension_numbers<[1], [0], [0], [1], [0, 0, 1, 1], [], []>} : vector<16x32xf32>, vector<32x128xf32>, vector<16x128xf32> -> vector<16x128xf32>
    %cst_135 = arith.constant dense<0.000000e+00> : vector<16x48xf32>
    %350 = tpu.matmul %322, %3, %cst_135 {dimension_numbers = #tpu.dot_dimension_numbers<[1], [0], [0], [1], [0, 0, 1, 1], [], []>} : vector<16x4xf32>, vector<4x48xf32>, vector<16x48xf32> -> vector<16x48xf32>
    %351 = vector.extract_strided_slice %322 {offsets = [0, 0], sizes = [16, 1], strides = [1, 1]} : vector<16x4xf32> to vector<16x1xf32>
    %352 = vector.extract_strided_slice %348 {offsets = [0, 0], sizes = [16, 48], strides = [1, 1]} : vector<16x192xf32> to vector<16x48xf32>
    %353 = vector.broadcast %351 : vector<16x1xf32> to vector<16x48xf32>
    %354 = arith.mulf %353, %352 : vector<16x48xf32>
    %355 = vector.extract_strided_slice %322 {offsets = [0, 1], sizes = [16, 1], strides = [1, 1]} : vector<16x4xf32> to vector<16x1xf32>
    %356 = vector.extract_strided_slice %348 {offsets = [0, 48], sizes = [16, 48], strides = [1, 1]} : vector<16x192xf32> to vector<16x48xf32>
    %357 = vector.broadcast %355 : vector<16x1xf32> to vector<16x48xf32>
    %358 = arith.mulf %357, %356 : vector<16x48xf32>
    %359 = arith.addf %354, %358 : vector<16x48xf32>
    %360 = vector.extract_strided_slice %322 {offsets = [0, 2], sizes = [16, 1], strides = [1, 1]} : vector<16x4xf32> to vector<16x1xf32>
    %361 = vector.extract_strided_slice %348 {offsets = [0, 96], sizes = [16, 48], strides = [1, 1]} : vector<16x192xf32> to vector<16x48xf32>
    %362 = vector.broadcast %360 : vector<16x1xf32> to vector<16x48xf32>
    %363 = arith.mulf %362, %361 : vector<16x48xf32>
    %364 = arith.addf %359, %363 : vector<16x48xf32>
    %365 = vector.extract_strided_slice %322 {offsets = [0, 3], sizes = [16, 1], strides = [1, 1]} : vector<16x4xf32> to vector<16x1xf32>
    %366 = vector.extract_strided_slice %348 {offsets = [0, 144], sizes = [16, 48], strides = [1, 1]} : vector<16x192xf32> to vector<16x48xf32>
    %367 = vector.broadcast %365 : vector<16x1xf32> to vector<16x48xf32>
    %368 = arith.mulf %367, %366 : vector<16x48xf32>
    %369 = arith.addf %364, %368 : vector<16x48xf32>
    %370 = vector.extract_strided_slice %322 {offsets = [0, 0], sizes = [16, 1], strides = [1, 1]} : vector<16x4xf32> to vector<16x1xf32>
    %371 = vector.extract_strided_slice %349 {offsets = [0, 0], sizes = [16, 32], strides = [1, 1]} : vector<16x128xf32> to vector<16x32xf32>
    %372 = vector.broadcast %370 : vector<16x1xf32> to vector<16x32xf32>
    %373 = arith.mulf %372, %371 : vector<16x32xf32>
    %374 = vector.extract_strided_slice %322 {offsets = [0, 1], sizes = [16, 1], strides = [1, 1]} : vector<16x4xf32> to vector<16x1xf32>
    %375 = vector.extract_strided_slice %349 {offsets = [0, 32], sizes = [16, 32], strides = [1, 1]} : vector<16x128xf32> to vector<16x32xf32>
    %376 = vector.broadcast %374 : vector<16x1xf32> to vector<16x32xf32>
    %377 = arith.mulf %376, %375 : vector<16x32xf32>
    %378 = arith.addf %373, %377 : vector<16x32xf32>
    %379 = vector.extract_strided_slice %322 {offsets = [0, 2], sizes = [16, 1], strides = [1, 1]} : vector<16x4xf32> to vector<16x1xf32>
    %380 = vector.extract_strided_slice %349 {offsets = [0, 64], sizes = [16, 32], strides = [1, 1]} : vector<16x128xf32> to vector<16x32xf32>
    %381 = vector.broadcast %379 : vector<16x1xf32> to vector<16x32xf32>
    %382 = arith.mulf %381, %380 : vector<16x32xf32>
    %383 = arith.addf %378, %382 : vector<16x32xf32>
    %384 = vector.extract_strided_slice %322 {offsets = [0, 3], sizes = [16, 1], strides = [1, 1]} : vector<16x4xf32> to vector<16x1xf32>
    %385 = vector.extract_strided_slice %349 {offsets = [0, 96], sizes = [16, 32], strides = [1, 1]} : vector<16x128xf32> to vector<16x32xf32>
    %386 = vector.broadcast %384 : vector<16x1xf32> to vector<16x32xf32>
    %387 = arith.mulf %386, %385 : vector<16x32xf32>
    %388 = arith.addf %383, %387 : vector<16x32xf32>
    %389 = vector.extract_strided_slice %369 {offsets = [0, 0], sizes = [16, 32], strides = [1, 1]} : vector<16x48xf32> to vector<16x32xf32>
    %390 = arith.addf %389, %388 : vector<16x32xf32>
    %391 = vector.extract_strided_slice %350 {offsets = [0, 0], sizes = [16, 32], strides = [1, 1]} : vector<16x48xf32> to vector<16x32xf32>
    %392 = arith.addf %390, %391 : vector<16x32xf32>
    %393 = vector.extract_strided_slice %392 {offsets = [0, 0], sizes = [16, 16], strides = [1, 1]} : vector<16x32xf32> to vector<16x16xf32>
    %cst_136 = arith.constant 0.000000e+00 : f32
    %394 = vector.broadcast %cst_136 : f32 to vector<16x16xf32>
    %395 = arith.subf %394, %393 : vector<16x16xf32>
    %396 = math.exp %395 : vector<16x16xf32>
    %cst_137 = arith.constant 1.000000e+00 : f32
    %397 = vector.broadcast %cst_137 : f32 to vector<16x16xf32>
    %398 = arith.addf %397, %396 : vector<16x16xf32>
    %399 = tpu.reciprocal %398 {approx = true} : vector<16x16xf32> -> vector<16x16xf32>
    %400 = vector.extract_strided_slice %392 {offsets = [0, 16], sizes = [16, 16], strides = [1, 1]} : vector<16x32xf32> to vector<16x16xf32>
    %cst_138 = arith.constant 0.000000e+00 : f32
    %401 = vector.broadcast %cst_138 : f32 to vector<16x16xf32>
    %402 = arith.subf %401, %400 : vector<16x16xf32>
    %403 = math.exp %402 : vector<16x16xf32>
    %cst_139 = arith.constant 1.000000e+00 : f32
    %404 = vector.broadcast %cst_139 : f32 to vector<16x16xf32>
    %405 = arith.addf %404, %403 : vector<16x16xf32>
    %406 = tpu.reciprocal %405 {approx = true} : vector<16x16xf32> -> vector<16x16xf32>
    %407 = arith.mulf %399, %288 : vector<16x16xf32>
    %408 = vector.extract_strided_slice %407 {offsets = [0, 0], sizes = [8, 16], strides = [1, 1]} : vector<16x16xf32> to vector<8x16xf32>
    %cst_140 = arith.constant dense<0.000000e+00> : vector<8x16xf32>
    %409 = tpu.matmul %335, %408, %cst_140 {dimension_numbers = #tpu.dot_dimension_numbers<[1], [0], [0], [1], [0, 0, 1, 1], [], []>} : vector<8x8xf32>, vector<8x16xf32>, vector<8x16xf32> -> vector<8x16xf32>
    %410 = vector.extract_strided_slice %407 {offsets = [8, 0], sizes = [8, 16], strides = [1, 1]} : vector<16x16xf32> to vector<8x16xf32>
    %cst_141 = arith.constant dense<0.000000e+00> : vector<8x16xf32>
    %411 = tpu.matmul %335, %410, %cst_141 {dimension_numbers = #tpu.dot_dimension_numbers<[1], [0], [0], [1], [0, 0, 1, 1], [], []>} : vector<8x8xf32>, vector<8x16xf32>, vector<8x16xf32> -> vector<8x16xf32>
    %412 = tpu.concatenate %409, %411 in 0 : vector<8x16xf32>, vector<8x16xf32> -> vector<16x16xf32>
    %413 = tpu.concatenate %407, %412 in 1 : vector<16x16xf32>, vector<16x16xf32> -> vector<16x32xf32>
    %cst_142 = arith.constant dense<0.000000e+00> : vector<16x64xf32>
    %414 = tpu.matmul %413, %2, %cst_142 {dimension_numbers = #tpu.dot_dimension_numbers<[1], [0], [0], [1], [0, 0, 1, 1], [], []>} : vector<16x32xf32>, vector<32x64xf32>, vector<16x64xf32> -> vector<16x64xf32>
    %415 = vector.extract_strided_slice %322 {offsets = [0, 0], sizes = [16, 1], strides = [1, 1]} : vector<16x4xf32> to vector<16x1xf32>
    %416 = vector.extract_strided_slice %414 {offsets = [0, 0], sizes = [16, 16], strides = [1, 1]} : vector<16x64xf32> to vector<16x16xf32>
    %417 = vector.broadcast %415 : vector<16x1xf32> to vector<16x16xf32>
    %418 = arith.mulf %417, %416 : vector<16x16xf32>
    %419 = vector.extract_strided_slice %322 {offsets = [0, 1], sizes = [16, 1], strides = [1, 1]} : vector<16x4xf32> to vector<16x1xf32>
    %420 = vector.extract_strided_slice %414 {offsets = [0, 16], sizes = [16, 16], strides = [1, 1]} : vector<16x64xf32> to vector<16x16xf32>
    %421 = vector.broadcast %419 : vector<16x1xf32> to vector<16x16xf32>
    %422 = arith.mulf %421, %420 : vector<16x16xf32>
    %423 = arith.addf %418, %422 : vector<16x16xf32>
    %424 = vector.extract_strided_slice %322 {offsets = [0, 2], sizes = [16, 1], strides = [1, 1]} : vector<16x4xf32> to vector<16x1xf32>
    %425 = vector.extract_strided_slice %414 {offsets = [0, 32], sizes = [16, 16], strides = [1, 1]} : vector<16x64xf32> to vector<16x16xf32>
    %426 = vector.broadcast %424 : vector<16x1xf32> to vector<16x16xf32>
    %427 = arith.mulf %426, %425 : vector<16x16xf32>
    %428 = arith.addf %423, %427 : vector<16x16xf32>
    %429 = vector.extract_strided_slice %322 {offsets = [0, 3], sizes = [16, 1], strides = [1, 1]} : vector<16x4xf32> to vector<16x1xf32>
    %430 = vector.extract_strided_slice %414 {offsets = [0, 48], sizes = [16, 16], strides = [1, 1]} : vector<16x64xf32> to vector<16x16xf32>
    %431 = vector.broadcast %429 : vector<16x1xf32> to vector<16x16xf32>
    %432 = arith.mulf %431, %430 : vector<16x16xf32>
    %433 = arith.addf %428, %432 : vector<16x16xf32>
    %434 = vector.extract_strided_slice %369 {offsets = [0, 32], sizes = [16, 16], strides = [1, 1]} : vector<16x48xf32> to vector<16x16xf32>
    %435 = arith.addf %434, %433 : vector<16x16xf32>
    %436 = vector.extract_strided_slice %350 {offsets = [0, 32], sizes = [16, 16], strides = [1, 1]} : vector<16x48xf32> to vector<16x16xf32>
    %437 = arith.addf %435, %436 : vector<16x16xf32>
    %438 = math.tanh %437 : vector<16x16xf32>
    %439 = arith.mulf %406, %288 : vector<16x16xf32>
    %cst_143 = arith.constant 1.000000e+00 : f32
    %440 = vector.broadcast %cst_143 : f32 to vector<16x16xf32>
    %441 = arith.subf %440, %406 : vector<16x16xf32>
    %442 = arith.mulf %441, %438 : vector<16x16xf32>
    %443 = arith.addf %439, %442 : vector<16x16xf32>
    %cst_144 = arith.constant dense<0.000000e+00> : vector<16x16xf32>
    %444 = tpu.matmul %318, %4, %cst_144 {dimension_numbers = #tpu.dot_dimension_numbers<[1], [0], [0], [1], [0, 0, 1, 1], [], []>} : vector<16x2xf32>, vector<2x16xf32>, vector<16x16xf32> -> vector<16x16xf32>
    %445 = vector.broadcast %5 : vector<1x16xf32> to vector<16x16xf32>
    %446 = arith.addf %444, %445 : vector<16x16xf32>
    %447 = arith.addf %443, %446 : vector<16x16xf32>
    %448 = vector.extract_strided_slice %443 {offsets = [0, 0], sizes = [8, 16], strides = [1, 1]} : vector<16x16xf32> to vector<8x16xf32>
    %c0_145 = arith.constant 0 : index
    %c2_146 = arith.constant 2 : index
    %c0_147 = arith.constant 0 : index
    %c0_148 = arith.constant 0 : index
    %449 = vector.load %arg11[%c0_145, %c2_146, %c0_147, %c0_148] : memref<2x4x8x16xf32, #tpu.memory_space<vmem>>, vector<1x1x8x16xf32>
    %450 = vector.shape_cast %449 : vector<1x1x8x16xf32> to vector<8x16xf32>
    %451 = vector.shape_cast %448 : vector<8x16xf32> to vector<1x1x8x16xf32>
    tpu.vector_store %arg11[%c0_145, %c2_146, %c0_147, %c0_148], %451 {strides = array<i32>} : memref<2x4x8x16xf32, #tpu.memory_space<vmem>>, vector<1x1x8x16xf32>,
    %452 = vector.extract_strided_slice %446 {offsets = [0, 0], sizes = [8, 16], strides = [1, 1]} : vector<16x16xf32> to vector<8x16xf32>
    %c0_149 = arith.constant 0 : index
    %c2_150 = arith.constant 2 : index
    %c0_151 = arith.constant 0 : index
    %c0_152 = arith.constant 0 : index
    %453 = vector.load %arg12[%c0_149, %c2_150, %c0_151, %c0_152] : memref<2x4x8x16xf32, #tpu.memory_space<vmem>>, vector<1x1x8x16xf32>
    %454 = vector.shape_cast %453 : vector<1x1x8x16xf32> to vector<8x16xf32>
    %455 = vector.shape_cast %452 : vector<8x16xf32> to vector<1x1x8x16xf32>
    tpu.vector_store %arg12[%c0_149, %c2_150, %c0_151, %c0_152], %455 {strides = array<i32>} : memref<2x4x8x16xf32, #tpu.memory_space<vmem>>, vector<1x1x8x16xf32>,
    %456 = vector.extract_strided_slice %447 {offsets = [0, 0], sizes = [8, 16], strides = [1, 1]} : vector<16x16xf32> to vector<8x16xf32>
    %c0_153 = arith.constant 0 : index
    %c2_154 = arith.constant 2 : index
    %c0_155 = arith.constant 0 : index
    %c0_156 = arith.constant 0 : index
    %457 = vector.load %arg10[%c0_153, %c2_154, %c0_155, %c0_156] : memref<2x4x8x16xf32, #tpu.memory_space<vmem>>, vector<1x1x8x16xf32>
    %458 = vector.shape_cast %457 : vector<1x1x8x16xf32> to vector<8x16xf32>
    %459 = vector.shape_cast %456 : vector<8x16xf32> to vector<1x1x8x16xf32>
    tpu.vector_store %arg10[%c0_153, %c2_154, %c0_155, %c0_156], %459 {strides = array<i32>} : memref<2x4x8x16xf32, #tpu.memory_space<vmem>>, vector<1x1x8x16xf32>,
    %460 = vector.extract_strided_slice %443 {offsets = [8, 0], sizes = [8, 16], strides = [1, 1]} : vector<16x16xf32> to vector<8x16xf32>
    %c1_157 = arith.constant 1 : index
    %c2_158 = arith.constant 2 : index
    %c0_159 = arith.constant 0 : index
    %c0_160 = arith.constant 0 : index
    %461 = vector.load %arg11[%c1_157, %c2_158, %c0_159, %c0_160] : memref<2x4x8x16xf32, #tpu.memory_space<vmem>>, vector<1x1x8x16xf32>
    %462 = vector.shape_cast %461 : vector<1x1x8x16xf32> to vector<8x16xf32>
    %463 = vector.shape_cast %460 : vector<8x16xf32> to vector<1x1x8x16xf32>
    tpu.vector_store %arg11[%c1_157, %c2_158, %c0_159, %c0_160], %463 {strides = array<i32>} : memref<2x4x8x16xf32, #tpu.memory_space<vmem>>, vector<1x1x8x16xf32>,
    %464 = vector.extract_strided_slice %446 {offsets = [8, 0], sizes = [8, 16], strides = [1, 1]} : vector<16x16xf32> to vector<8x16xf32>
    %c1_161 = arith.constant 1 : index
    %c2_162 = arith.constant 2 : index
    %c0_163 = arith.constant 0 : index
    %c0_164 = arith.constant 0 : index
    %465 = vector.load %arg12[%c1_161, %c2_162, %c0_163, %c0_164] : memref<2x4x8x16xf32, #tpu.memory_space<vmem>>, vector<1x1x8x16xf32>
    %466 = vector.shape_cast %465 : vector<1x1x8x16xf32> to vector<8x16xf32>
    %467 = vector.shape_cast %464 : vector<8x16xf32> to vector<1x1x8x16xf32>
    tpu.vector_store %arg12[%c1_161, %c2_162, %c0_163, %c0_164], %467 {strides = array<i32>} : memref<2x4x8x16xf32, #tpu.memory_space<vmem>>, vector<1x1x8x16xf32>,
    %468 = vector.extract_strided_slice %447 {offsets = [8, 0], sizes = [8, 16], strides = [1, 1]} : vector<16x16xf32> to vector<8x16xf32>
    %c1_165 = arith.constant 1 : index
    %c2_166 = arith.constant 2 : index
    %c0_167 = arith.constant 0 : index
    %c0_168 = arith.constant 0 : index
    %469 = vector.load %arg10[%c1_165, %c2_166, %c0_167, %c0_168] : memref<2x4x8x16xf32, #tpu.memory_space<vmem>>, vector<1x1x8x16xf32>
    %470 = vector.shape_cast %469 : vector<1x1x8x16xf32> to vector<8x16xf32>
    %471 = vector.shape_cast %468 : vector<8x16xf32> to vector<1x1x8x16xf32>
    tpu.vector_store %arg10[%c1_165, %c2_166, %c0_167, %c0_168], %471 {strides = array<i32>} : memref<2x4x8x16xf32, #tpu.memory_space<vmem>>, vector<1x1x8x16xf32>,
    %c3 = arith.constant 3 : index
    %c0_169 = arith.constant 0 : index
    %c0_170 = arith.constant 0 : index
    %472 = vector.load %arg0[%c3, %c0_169, %c0_170] : memref<4x16x2xf32, #tpu.memory_space<vmem>>, vector<1x16x2xf32>
    %473 = vector.shape_cast %472 : vector<1x16x2xf32> to vector<16x2xf32>
    %c3_171 = arith.constant 3 : index
    %c0_172 = arith.constant 0 : index
    %c0_173 = arith.constant 0 : index
    %474 = vector.load %arg2[%c3_171, %c0_172, %c0_173] : memref<4x8x4xf32, #tpu.memory_space<vmem>>, vector<1x8x4xf32>
    %475 = vector.shape_cast %474 : vector<1x8x4xf32> to vector<8x4xf32>
    %c3_174 = arith.constant 3 : index
    %c0_175 = arith.constant 0 : index
    %c0_176 = arith.constant 0 : index
    %476 = vector.load %arg3[%c3_174, %c0_175, %c0_176] : memref<4x16x4xf32, #tpu.memory_space<vmem>>, vector<1x16x4xf32>
    %477 = vector.shape_cast %476 : vector<1x16x4xf32> to vector<16x4xf32>
    %cst_177 = arith.constant dense<0.000000e+00> : vector<8x8xf32>
    %478 = tpu.matmul %475, %475, %cst_177 {dimension_numbers = #tpu.dot_dimension_numbers<[1], [1], [0], [0], [0, 0, 1, 0], [], []>} : vector<8x4xf32>, vector<8x4xf32>, vector<8x8xf32> -> vector<8x8xf32>
    %cst_178 = arith.constant 0.000000e+00 : f32
    %479 = vector.broadcast %cst_178 : f32 to vector<8x8xf32>
    %480 = arith.maximumf %478, %479 : vector<8x8xf32>
    %cst_179 = arith.constant dense<0xFF800000> : vector<8xf32>
    %481 = vector.multi_reduction <maximumf>, %480, %cst_179 [1] : vector<8x8xf32> to vector<8xf32>
    %482 = vector.shape_cast %481 : vector<8xf32> to vector<8x1xf32>
    %483 = vector.broadcast %482 : vector<8x1xf32> to vector<8x8xf32>
    %484 = arith.subf %480, %483 : vector<8x8xf32>
    %485 = math.exp %484 : vector<8x8xf32>
    %cst_180 = arith.constant dense<0.000000e+00> : vector<8xf32>
    %486 = vector.multi_reduction <add>, %485, %cst_180 [1] : vector<8x8xf32> to vector<8xf32>
    %487 = vector.shape_cast %486 : vector<8xf32> to vector<8x1xf32>
    %488 = tpu.reciprocal %487 {approx = true} : vector<8x1xf32> -> vector<8x1xf32>
    %489 = vector.broadcast %488 : vector<8x1xf32> to vector<8x8xf32>
    %490 = arith.mulf %485, %489 : vector<8x8xf32>
    %491 = vector.extract_strided_slice %473 {offsets = [0, 0], sizes = [8, 2], strides = [1, 1]} : vector<16x2xf32> to vector<8x2xf32>
    %cst_181 = arith.constant dense<0.000000e+00> : vector<8x2xf32>
    %492 = tpu.matmul %490, %491, %cst_181 {dimension_numbers = #tpu.dot_dimension_numbers<[1], [0], [0], [1], [0, 0, 1, 1], [], []>} : vector<8x8xf32>, vector<8x2xf32>, vector<8x2xf32> -> vector<8x2xf32>
    %493 = vector.extract_strided_slice %473 {offsets = [8, 0], sizes = [8, 2], strides = [1, 1]} : vector<16x2xf32> to vector<8x2xf32>
    %cst_182 = arith.constant dense<0.000000e+00> : vector<8x2xf32>
    %494 = tpu.matmul %490, %493, %cst_182 {dimension_numbers = #tpu.dot_dimension_numbers<[1], [0], [0], [1], [0, 0, 1, 1], [], []>} : vector<8x8xf32>, vector<8x2xf32>, vector<8x2xf32> -> vector<8x2xf32>
    %495 = tpu.concatenate %492, %494 in 0 : vector<8x2xf32>, vector<8x2xf32> -> vector<16x2xf32>
    %496 = tpu.concatenate %473, %495 in 1 : vector<16x2xf32>, vector<16x2xf32> -> vector<16x4xf32>
    %497 = vector.extract_strided_slice %443 {offsets = [0, 0], sizes = [8, 16], strides = [1, 1]} : vector<16x16xf32> to vector<8x16xf32>
    %cst_183 = arith.constant dense<0.000000e+00> : vector<8x16xf32>
    %498 = tpu.matmul %490, %497, %cst_183 {dimension_numbers = #tpu.dot_dimension_numbers<[1], [0], [0], [1], [0, 0, 1, 1], [], []>} : vector<8x8xf32>, vector<8x16xf32>, vector<8x16xf32> -> vector<8x16xf32>
    %499 = vector.extract_strided_slice %443 {offsets = [8, 0], sizes = [8, 16], strides = [1, 1]} : vector<16x16xf32> to vector<8x16xf32>
    %cst_184 = arith.constant dense<0.000000e+00> : vector<8x16xf32>
    %500 = tpu.matmul %490, %499, %cst_184 {dimension_numbers = #tpu.dot_dimension_numbers<[1], [0], [0], [1], [0, 0, 1, 1], [], []>} : vector<8x8xf32>, vector<8x16xf32>, vector<8x16xf32> -> vector<8x16xf32>
    %501 = tpu.concatenate %498, %500 in 0 : vector<8x16xf32>, vector<8x16xf32> -> vector<16x16xf32>
    %502 = tpu.concatenate %443, %501 in 1 : vector<16x16xf32>, vector<16x16xf32> -> vector<16x32xf32>
    %cst_185 = arith.constant dense<0.000000e+00> : vector<16x192xf32>
    %503 = tpu.matmul %496, %0, %cst_185 {dimension_numbers = #tpu.dot_dimension_numbers<[1], [0], [0], [1], [0, 0, 1, 1], [], []>} : vector<16x4xf32>, vector<4x192xf32>, vector<16x192xf32> -> vector<16x192xf32>
    %cst_186 = arith.constant dense<0.000000e+00> : vector<16x128xf32>
    %504 = tpu.matmul %502, %1, %cst_186 {dimension_numbers = #tpu.dot_dimension_numbers<[1], [0], [0], [1], [0, 0, 1, 1], [], []>} : vector<16x32xf32>, vector<32x128xf32>, vector<16x128xf32> -> vector<16x128xf32>
    %cst_187 = arith.constant dense<0.000000e+00> : vector<16x48xf32>
    %505 = tpu.matmul %477, %3, %cst_187 {dimension_numbers = #tpu.dot_dimension_numbers<[1], [0], [0], [1], [0, 0, 1, 1], [], []>} : vector<16x4xf32>, vector<4x48xf32>, vector<16x48xf32> -> vector<16x48xf32>
    %506 = vector.extract_strided_slice %477 {offsets = [0, 0], sizes = [16, 1], strides = [1, 1]} : vector<16x4xf32> to vector<16x1xf32>
    %507 = vector.extract_strided_slice %503 {offsets = [0, 0], sizes = [16, 48], strides = [1, 1]} : vector<16x192xf32> to vector<16x48xf32>
    %508 = vector.broadcast %506 : vector<16x1xf32> to vector<16x48xf32>
    %509 = arith.mulf %508, %507 : vector<16x48xf32>
    %510 = vector.extract_strided_slice %477 {offsets = [0, 1], sizes = [16, 1], strides = [1, 1]} : vector<16x4xf32> to vector<16x1xf32>
    %511 = vector.extract_strided_slice %503 {offsets = [0, 48], sizes = [16, 48], strides = [1, 1]} : vector<16x192xf32> to vector<16x48xf32>
    %512 = vector.broadcast %510 : vector<16x1xf32> to vector<16x48xf32>
    %513 = arith.mulf %512, %511 : vector<16x48xf32>
    %514 = arith.addf %509, %513 : vector<16x48xf32>
    %515 = vector.extract_strided_slice %477 {offsets = [0, 2], sizes = [16, 1], strides = [1, 1]} : vector<16x4xf32> to vector<16x1xf32>
    %516 = vector.extract_strided_slice %503 {offsets = [0, 96], sizes = [16, 48], strides = [1, 1]} : vector<16x192xf32> to vector<16x48xf32>
    %517 = vector.broadcast %515 : vector<16x1xf32> to vector<16x48xf32>
    %518 = arith.mulf %517, %516 : vector<16x48xf32>
    %519 = arith.addf %514, %518 : vector<16x48xf32>
    %520 = vector.extract_strided_slice %477 {offsets = [0, 3], sizes = [16, 1], strides = [1, 1]} : vector<16x4xf32> to vector<16x1xf32>
    %521 = vector.extract_strided_slice %503 {offsets = [0, 144], sizes = [16, 48], strides = [1, 1]} : vector<16x192xf32> to vector<16x48xf32>
    %522 = vector.broadcast %520 : vector<16x1xf32> to vector<16x48xf32>
    %523 = arith.mulf %522, %521 : vector<16x48xf32>
    %524 = arith.addf %519, %523 : vector<16x48xf32>
    %525 = vector.extract_strided_slice %477 {offsets = [0, 0], sizes = [16, 1], strides = [1, 1]} : vector<16x4xf32> to vector<16x1xf32>
    %526 = vector.extract_strided_slice %504 {offsets = [0, 0], sizes = [16, 32], strides = [1, 1]} : vector<16x128xf32> to vector<16x32xf32>
    %527 = vector.broadcast %525 : vector<16x1xf32> to vector<16x32xf32>
    %528 = arith.mulf %527, %526 : vector<16x32xf32>
    %529 = vector.extract_strided_slice %477 {offsets = [0, 1], sizes = [16, 1], strides = [1, 1]} : vector<16x4xf32> to vector<16x1xf32>
    %530 = vector.extract_strided_slice %504 {offsets = [0, 32], sizes = [16, 32], strides = [1, 1]} : vector<16x128xf32> to vector<16x32xf32>
    %531 = vector.broadcast %529 : vector<16x1xf32> to vector<16x32xf32>
    %532 = arith.mulf %531, %530 : vector<16x32xf32>
    %533 = arith.addf %528, %532 : vector<16x32xf32>
    %534 = vector.extract_strided_slice %477 {offsets = [0, 2], sizes = [16, 1], strides = [1, 1]} : vector<16x4xf32> to vector<16x1xf32>
    %535 = vector.extract_strided_slice %504 {offsets = [0, 64], sizes = [16, 32], strides = [1, 1]} : vector<16x128xf32> to vector<16x32xf32>
    %536 = vector.broadcast %534 : vector<16x1xf32> to vector<16x32xf32>
    %537 = arith.mulf %536, %535 : vector<16x32xf32>
    %538 = arith.addf %533, %537 : vector<16x32xf32>
    %539 = vector.extract_strided_slice %477 {offsets = [0, 3], sizes = [16, 1], strides = [1, 1]} : vector<16x4xf32> to vector<16x1xf32>
    %540 = vector.extract_strided_slice %504 {offsets = [0, 96], sizes = [16, 32], strides = [1, 1]} : vector<16x128xf32> to vector<16x32xf32>
    %541 = vector.broadcast %539 : vector<16x1xf32> to vector<16x32xf32>
    %542 = arith.mulf %541, %540 : vector<16x32xf32>
    %543 = arith.addf %538, %542 : vector<16x32xf32>
    %544 = vector.extract_strided_slice %524 {offsets = [0, 0], sizes = [16, 32], strides = [1, 1]} : vector<16x48xf32> to vector<16x32xf32>
    %545 = arith.addf %544, %543 : vector<16x32xf32>
    %546 = vector.extract_strided_slice %505 {offsets = [0, 0], sizes = [16, 32], strides = [1, 1]} : vector<16x48xf32> to vector<16x32xf32>
    %547 = arith.addf %545, %546 : vector<16x32xf32>
    %548 = vector.extract_strided_slice %547 {offsets = [0, 0], sizes = [16, 16], strides = [1, 1]} : vector<16x32xf32> to vector<16x16xf32>
    %cst_188 = arith.constant 0.000000e+00 : f32
    %549 = vector.broadcast %cst_188 : f32 to vector<16x16xf32>
    %550 = arith.subf %549, %548 : vector<16x16xf32>
    %551 = math.exp %550 : vector<16x16xf32>
    %cst_189 = arith.constant 1.000000e+00 : f32
    %552 = vector.broadcast %cst_189 : f32 to vector<16x16xf32>
    %553 = arith.addf %552, %551 : vector<16x16xf32>
    %554 = tpu.reciprocal %553 {approx = true} : vector<16x16xf32> -> vector<16x16xf32>
    %555 = vector.extract_strided_slice %547 {offsets = [0, 16], sizes = [16, 16], strides = [1, 1]} : vector<16x32xf32> to vector<16x16xf32>
    %cst_190 = arith.constant 0.000000e+00 : f32
    %556 = vector.broadcast %cst_190 : f32 to vector<16x16xf32>
    %557 = arith.subf %556, %555 : vector<16x16xf32>
    %558 = math.exp %557 : vector<16x16xf32>
    %cst_191 = arith.constant 1.000000e+00 : f32
    %559 = vector.broadcast %cst_191 : f32 to vector<16x16xf32>
    %560 = arith.addf %559, %558 : vector<16x16xf32>
    %561 = tpu.reciprocal %560 {approx = true} : vector<16x16xf32> -> vector<16x16xf32>
    %562 = arith.mulf %554, %443 : vector<16x16xf32>
    %563 = vector.extract_strided_slice %562 {offsets = [0, 0], sizes = [8, 16], strides = [1, 1]} : vector<16x16xf32> to vector<8x16xf32>
    %cst_192 = arith.constant dense<0.000000e+00> : vector<8x16xf32>
    %564 = tpu.matmul %490, %563, %cst_192 {dimension_numbers = #tpu.dot_dimension_numbers<[1], [0], [0], [1], [0, 0, 1, 1], [], []>} : vector<8x8xf32>, vector<8x16xf32>, vector<8x16xf32> -> vector<8x16xf32>
    %565 = vector.extract_strided_slice %562 {offsets = [8, 0], sizes = [8, 16], strides = [1, 1]} : vector<16x16xf32> to vector<8x16xf32>
    %cst_193 = arith.constant dense<0.000000e+00> : vector<8x16xf32>
    %566 = tpu.matmul %490, %565, %cst_193 {dimension_numbers = #tpu.dot_dimension_numbers<[1], [0], [0], [1], [0, 0, 1, 1], [], []>} : vector<8x8xf32>, vector<8x16xf32>, vector<8x16xf32> -> vector<8x16xf32>
    %567 = tpu.concatenate %564, %566 in 0 : vector<8x16xf32>, vector<8x16xf32> -> vector<16x16xf32>
    %568 = tpu.concatenate %562, %567 in 1 : vector<16x16xf32>, vector<16x16xf32> -> vector<16x32xf32>
    %cst_194 = arith.constant dense<0.000000e+00> : vector<16x64xf32>
    %569 = tpu.matmul %568, %2, %cst_194 {dimension_numbers = #tpu.dot_dimension_numbers<[1], [0], [0], [1], [0, 0, 1, 1], [], []>} : vector<16x32xf32>, vector<32x64xf32>, vector<16x64xf32> -> vector<16x64xf32>
    %570 = vector.extract_strided_slice %477 {offsets = [0, 0], sizes = [16, 1], strides = [1, 1]} : vector<16x4xf32> to vector<16x1xf32>
    %571 = vector.extract_strided_slice %569 {offsets = [0, 0], sizes = [16, 16], strides = [1, 1]} : vector<16x64xf32> to vector<16x16xf32>
    %572 = vector.broadcast %570 : vector<16x1xf32> to vector<16x16xf32>
    %573 = arith.mulf %572, %571 : vector<16x16xf32>
    %574 = vector.extract_strided_slice %477 {offsets = [0, 1], sizes = [16, 1], strides = [1, 1]} : vector<16x4xf32> to vector<16x1xf32>
    %575 = vector.extract_strided_slice %569 {offsets = [0, 16], sizes = [16, 16], strides = [1, 1]} : vector<16x64xf32> to vector<16x16xf32>
    %576 = vector.broadcast %574 : vector<16x1xf32> to vector<16x16xf32>
    %577 = arith.mulf %576, %575 : vector<16x16xf32>
    %578 = arith.addf %573, %577 : vector<16x16xf32>
    %579 = vector.extract_strided_slice %477 {offsets = [0, 2], sizes = [16, 1], strides = [1, 1]} : vector<16x4xf32> to vector<16x1xf32>
    %580 = vector.extract_strided_slice %569 {offsets = [0, 32], sizes = [16, 16], strides = [1, 1]} : vector<16x64xf32> to vector<16x16xf32>
    %581 = vector.broadcast %579 : vector<16x1xf32> to vector<16x16xf32>
    %582 = arith.mulf %581, %580 : vector<16x16xf32>
    %583 = arith.addf %578, %582 : vector<16x16xf32>
    %584 = vector.extract_strided_slice %477 {offsets = [0, 3], sizes = [16, 1], strides = [1, 1]} : vector<16x4xf32> to vector<16x1xf32>
    %585 = vector.extract_strided_slice %569 {offsets = [0, 48], sizes = [16, 16], strides = [1, 1]} : vector<16x64xf32> to vector<16x16xf32>
    %586 = vector.broadcast %584 : vector<16x1xf32> to vector<16x16xf32>
    %587 = arith.mulf %586, %585 : vector<16x16xf32>
    %588 = arith.addf %583, %587 : vector<16x16xf32>
    %589 = vector.extract_strided_slice %524 {offsets = [0, 32], sizes = [16, 16], strides = [1, 1]} : vector<16x48xf32> to vector<16x16xf32>
    %590 = arith.addf %589, %588 : vector<16x16xf32>
    %591 = vector.extract_strided_slice %505 {offsets = [0, 32], sizes = [16, 16], strides = [1, 1]} : vector<16x48xf32> to vector<16x16xf32>
    %592 = arith.addf %590, %591 : vector<16x16xf32>
    %593 = math.tanh %592 : vector<16x16xf32>
    %594 = arith.mulf %561, %443 : vector<16x16xf32>
    %cst_195 = arith.constant 1.000000e+00 : f32
    %595 = vector.broadcast %cst_195 : f32 to vector<16x16xf32>
    %596 = arith.subf %595, %561 : vector<16x16xf32>
    %597 = arith.mulf %596, %593 : vector<16x16xf32>
    %598 = arith.addf %594, %597 : vector<16x16xf32>
    %cst_196 = arith.constant dense<0.000000e+00> : vector<16x16xf32>
    %599 = tpu.matmul %473, %4, %cst_196 {dimension_numbers = #tpu.dot_dimension_numbers<[1], [0], [0], [1], [0, 0, 1, 1], [], []>} : vector<16x2xf32>, vector<2x16xf32>, vector<16x16xf32> -> vector<16x16xf32>
    %600 = vector.broadcast %5 : vector<1x16xf32> to vector<16x16xf32>
    %601 = arith.addf %599, %600 : vector<16x16xf32>
    %602 = arith.addf %598, %601 : vector<16x16xf32>
    %603 = vector.extract_strided_slice %598 {offsets = [0, 0], sizes = [8, 16], strides = [1, 1]} : vector<16x16xf32> to vector<8x16xf32>
    %c0_197 = arith.constant 0 : index
    %c3_198 = arith.constant 3 : index
    %c0_199 = arith.constant 0 : index
    %c0_200 = arith.constant 0 : index
    %604 = vector.load %arg11[%c0_197, %c3_198, %c0_199, %c0_200] : memref<2x4x8x16xf32, #tpu.memory_space<vmem>>, vector<1x1x8x16xf32>
    %605 = vector.shape_cast %604 : vector<1x1x8x16xf32> to vector<8x16xf32>
    %606 = vector.shape_cast %603 : vector<8x16xf32> to vector<1x1x8x16xf32>
    tpu.vector_store %arg11[%c0_197, %c3_198, %c0_199, %c0_200], %606 {strides = array<i32>} : memref<2x4x8x16xf32, #tpu.memory_space<vmem>>, vector<1x1x8x16xf32>,
    %607 = vector.extract_strided_slice %601 {offsets = [0, 0], sizes = [8, 16], strides = [1, 1]} : vector<16x16xf32> to vector<8x16xf32>
    %c0_201 = arith.constant 0 : index
    %c3_202 = arith.constant 3 : index
    %c0_203 = arith.constant 0 : index
    %c0_204 = arith.constant 0 : index
    %608 = vector.load %arg12[%c0_201, %c3_202, %c0_203, %c0_204] : memref<2x4x8x16xf32, #tpu.memory_space<vmem>>, vector<1x1x8x16xf32>
    %609 = vector.shape_cast %608 : vector<1x1x8x16xf32> to vector<8x16xf32>
    %610 = vector.shape_cast %607 : vector<8x16xf32> to vector<1x1x8x16xf32>
    tpu.vector_store %arg12[%c0_201, %c3_202, %c0_203, %c0_204], %610 {strides = array<i32>} : memref<2x4x8x16xf32, #tpu.memory_space<vmem>>, vector<1x1x8x16xf32>,
    %611 = vector.extract_strided_slice %602 {offsets = [0, 0], sizes = [8, 16], strides = [1, 1]} : vector<16x16xf32> to vector<8x16xf32>
    %c0_205 = arith.constant 0 : index
    %c3_206 = arith.constant 3 : index
    %c0_207 = arith.constant 0 : index
    %c0_208 = arith.constant 0 : index
    %612 = vector.load %arg10[%c0_205, %c3_206, %c0_207, %c0_208] : memref<2x4x8x16xf32, #tpu.memory_space<vmem>>, vector<1x1x8x16xf32>
    %613 = vector.shape_cast %612 : vector<1x1x8x16xf32> to vector<8x16xf32>
    %614 = vector.shape_cast %611 : vector<8x16xf32> to vector<1x1x8x16xf32>
    tpu.vector_store %arg10[%c0_205, %c3_206, %c0_207, %c0_208], %614 {strides = array<i32>} : memref<2x4x8x16xf32, #tpu.memory_space<vmem>>, vector<1x1x8x16xf32>,
    %615 = vector.extract_strided_slice %598 {offsets = [8, 0], sizes = [8, 16], strides = [1, 1]} : vector<16x16xf32> to vector<8x16xf32>
    %c1_209 = arith.constant 1 : index
    %c3_210 = arith.constant 3 : index
    %c0_211 = arith.constant 0 : index
    %c0_212 = arith.constant 0 : index
    %616 = vector.load %arg11[%c1_209, %c3_210, %c0_211, %c0_212] : memref<2x4x8x16xf32, #tpu.memory_space<vmem>>, vector<1x1x8x16xf32>
    %617 = vector.shape_cast %616 : vector<1x1x8x16xf32> to vector<8x16xf32>
    %618 = vector.shape_cast %615 : vector<8x16xf32> to vector<1x1x8x16xf32>
    tpu.vector_store %arg11[%c1_209, %c3_210, %c0_211, %c0_212], %618 {strides = array<i32>} : memref<2x4x8x16xf32, #tpu.memory_space<vmem>>, vector<1x1x8x16xf32>,
    %619 = vector.extract_strided_slice %601 {offsets = [8, 0], sizes = [8, 16], strides = [1, 1]} : vector<16x16xf32> to vector<8x16xf32>
    %c1_213 = arith.constant 1 : index
    %c3_214 = arith.constant 3 : index
    %c0_215 = arith.constant 0 : index
    %c0_216 = arith.constant 0 : index
    %620 = vector.load %arg12[%c1_213, %c3_214, %c0_215, %c0_216] : memref<2x4x8x16xf32, #tpu.memory_space<vmem>>, vector<1x1x8x16xf32>
    %621 = vector.shape_cast %620 : vector<1x1x8x16xf32> to vector<8x16xf32>
    %622 = vector.shape_cast %619 : vector<8x16xf32> to vector<1x1x8x16xf32>
    tpu.vector_store %arg12[%c1_213, %c3_214, %c0_215, %c0_216], %622 {strides = array<i32>} : memref<2x4x8x16xf32, #tpu.memory_space<vmem>>, vector<1x1x8x16xf32>,
    %623 = vector.extract_strided_slice %602 {offsets = [8, 0], sizes = [8, 16], strides = [1, 1]} : vector<16x16xf32> to vector<8x16xf32>
    %c1_217 = arith.constant 1 : index
    %c3_218 = arith.constant 3 : index
    %c0_219 = arith.constant 0 : index
    %c0_220 = arith.constant 0 : index
    %624 = vector.load %arg10[%c1_217, %c3_218, %c0_219, %c0_220] : memref<2x4x8x16xf32, #tpu.memory_space<vmem>>, vector<1x1x8x16xf32>
    %625 = vector.shape_cast %624 : vector<1x1x8x16xf32> to vector<8x16xf32>
    %626 = vector.shape_cast %623 : vector<8x16xf32> to vector<1x1x8x16xf32>
    tpu.vector_store %arg10[%c1_217, %c3_218, %c0_219, %c0_220], %626 {strides = array<i32>} : memref<2x4x8x16xf32, #tpu.memory_space<vmem>>, vector<1x1x8x16xf32>,
    %627 = vector.extract_strided_slice %598 {offsets = [0, 0], sizes = [8, 16], strides = [1, 1]} : vector<16x16xf32> to vector<8x16xf32>
    %c0_221 = arith.constant 0 : index
    %c0_222 = arith.constant 0 : index
    %c0_223 = arith.constant 0 : index
    %c0_224 = arith.constant 0 : index
    %628 = vector.load %arg13[%c0_221, %c0_222, %c0_223, %c0_224] : memref<1x2x8x16xf32, #tpu.memory_space<vmem>>, vector<1x1x8x16xf32>
    %629 = vector.shape_cast %628 : vector<1x1x8x16xf32> to vector<8x16xf32>
    %630 = vector.shape_cast %627 : vector<8x16xf32> to vector<1x1x8x16xf32>
    tpu.vector_store %arg13[%c0_221, %c0_222, %c0_223, %c0_224], %630 {strides = array<i32>} : memref<1x2x8x16xf32, #tpu.memory_space<vmem>>, vector<1x1x8x16xf32>,
    %631 = vector.extract_strided_slice %598 {offsets = [8, 0], sizes = [8, 16], strides = [1, 1]} : vector<16x16xf32> to vector<8x16xf32>
    %c0_225 = arith.constant 0 : index
    %c1_226 = arith.constant 1 : index
    %c0_227 = arith.constant 0 : index
    %c0_228 = arith.constant 0 : index
    %632 = vector.load %arg13[%c0_225, %c1_226, %c0_227, %c0_228] : memref<1x2x8x16xf32, #tpu.memory_space<vmem>>, vector<1x1x8x16xf32>
    %633 = vector.shape_cast %632 : vector<1x1x8x16xf32> to vector<8x16xf32>
    %634 = vector.shape_cast %631 : vector<8x16xf32> to vector<1x1x8x16xf32>
    tpu.vector_store %arg13[%c0_225, %c1_226, %c0_227, %c0_228], %634 {strides = array<i32>} : memref<1x2x8x16xf32, #tpu.memory_space<vmem>>, vector<1x1x8x16xf32>,
    return
  }
}

</mosaic_0001>

<llo_original>
// kernel: ddgcn_forward.1
$region0: #{ddgcn_forward.1}
  #allocation0 [shape = 'u32[]', space=smem, size = 0x4, offset = 0x4, fixed_abs, tag = 'smem constant byte address 0x4 - core index']
  #allocation1 [shape = 'u32[144,128]{1,0:T(1,128)}', space=vmem, size = 0x12000, scoped, tag = 'internal scratch']
  %s0 = inlined_call_operand.vmem [shape: f32[4,16,2], index: 0, kind: input, shape index: {}]
  %s1 = inlined_call_operand.vmem [shape: f32[16,16], index: 1, kind: input, shape index: {}]
  %s2 = inlined_call_operand.vmem [shape: f32[4,8,4], index: 2, kind: input, shape index: {}]
  %s3 = inlined_call_operand.vmem [shape: f32[4,16,4], index: 3, kind: input, shape index: {}]
  %s4 = inlined_call_operand.vmem [shape: f32[2,16], index: 4, kind: input, shape index: {}]
  %s5 = inlined_call_operand.vmem [shape: f32[1,16], index: 5, kind: input, shape index: {}]
  %s6 = inlined_call_operand.vmem [shape: f32[4,192], index: 6, kind: input, shape index: {}]
  %s7 = inlined_call_operand.vmem [shape: f32[32,128], index: 7, kind: input, shape index: {}]
  %s8 = inlined_call_operand.vmem [shape: f32[32,64], index: 8, kind: input, shape index: {}]
  %s9 = inlined_call_operand.vmem [shape: f32[4,48], index: 9, kind: input, shape index: {}]
  %s10 = inlined_call_operand.hbm [shape: f32[2,4,8,16], index: 10, kind: output, shape index: {0}]
  %s11 = inlined_call_operand.hbm [shape: f32[2,4,8,16], index: 11, kind: output, shape index: {1}]
  %s12 = inlined_call_operand.hbm [shape: f32[2,4,8,16], index: 12, kind: output, shape index: {2}]
  %s13 = inlined_call_operand.hbm [shape: f32[1,2,8,16], index: 13, kind: output, shape index: {3}]
  %14 = xla_tuple %s10, %s11, %s12, %s13
  %s15 = sld [smem:[#allocation0]]
  $region74: #{ddgcn_forward.1} parent=0
    _
  %s17 = ssub.s32 1, %s15
  %s18 = scalar_select 0, %s17, %s15
  $region1: #{ddgcn_forward.1} parent=0
    #allocation2 [shape = 'u8[32768]{0}', space=vmem, size = 0x8000, scoped, tag = 'output window, operand 0, single buffered']
    #allocation3 [shape = 's32[1]{0}', space=sflag, size = 0x4, scoped, tag = 'scoped memory for ddgcn_forward.1']
    #allocation4 [shape = 'u8[32768]{0}', space=vmem, size = 0x8000, scoped, tag = 'output window, operand 1, single buffered']
    #allocation5 [shape = 's32[1]{0}', space=sflag, size = 0x4, scoped, tag = 'scoped memory for ddgcn_forward.1']
    #allocation6 [shape = 'u8[32768]{0}', space=vmem, size = 0x8000, scoped, tag = 'output window, operand 2, single buffered']
    #allocation7 [shape = 'u8[8192]{0}', space=vmem, size = 0x2000, scoped, tag = 'output window, operand 3, single buffered']
    #allocation8 [shape = 's32[1]{0}', space=sflag, size = 0x4, scoped, tag = 'scoped memory for ddgcn_forward.1']
    %19 = vsyncpa [#allocation3], 0
    %20 = vsyncpa [#allocation5], 0
    %21 = vsyncpa [#allocation8], 0
    // Predicated region
    $region2: #{ddgcn_forward.1} parent=1 // pred_check
      _
    $region3: #{ddgcn_forward.1} parent=1 // pred_check_branch
      %23 = sbr.rel (0) target = $region5
    $region4: #{ddgcn_forward.1} parent=1 // pred_region
      _
    $region5: #{ddgcn_forward.1} parent=1 // pred_fallthru
      _
    // Predicated region
    $region6: #{ddgcn_forward.1} parent=1 // pred_check
      _
    $region7: #{ddgcn_forward.1} parent=1 // pred_check_branch
      %25 = sbr.rel (0) target = $region9
    $region8: #{ddgcn_forward.1} parent=1 // pred_region
      _
    $region9: #{ddgcn_forward.1} parent=1 // pred_fallthru
      _
    // Predicated region
    $region10: #{ddgcn_forward.1} parent=1 // pred_check
      _
    $region11: #{ddgcn_forward.1} parent=1 // pred_check_branch
      %27 = sbr.rel (0) target = $region13
    $region12: #{ddgcn_forward.1} parent=1 // pred_region
      _
    $region13: #{ddgcn_forward.1} parent=1 // pred_fallthru
      _
    // Predicated region
    $region14: #{ddgcn_forward.1} parent=1 // pred_check
      _
    $region15: #{ddgcn_forward.1} parent=1 // pred_check_branch
      %29 = sbr.rel (0) target = $region17
    $region16: #{ddgcn_forward.1} parent=1 // pred_region
      _
    $region17: #{ddgcn_forward.1} parent=1 // pred_fallthru
      _
    // Predicated region
    $region18: #{ddgcn_forward.1} parent=1 // pred_check
      _
    $region19: #{ddgcn_forward.1} parent=1 // pred_check_branch
      %31 = sbr.rel (0) target = $region21
    $region20: #{ddgcn_forward.1} parent=1 // pred_region
      _
    $region21: #{ddgcn_forward.1} parent=1 // pred_fallthru
      _
    // Predicated region
    $region22: #{ddgcn_forward.1} parent=1 // pred_check
      _
    $region23: #{ddgcn_forward.1} parent=1 // pred_check_branch
      %33 = sbr.rel (0) target = $region25
    $region24: #{ddgcn_forward.1} parent=1 // pred_region
      _
    $region25: #{ddgcn_forward.1} parent=1 // pred_fallthru
      _
    // Predicated region
    $region26: #{ddgcn_forward.1} parent=1 // pred_check
      _
    $region27: #{ddgcn_forward.1} parent=1 // pred_check_branch
      %35 = sbr.rel (0) target = $region29
    $region28: #{ddgcn_forward.1} parent=1 // pred_region
      _
    $region29: #{ddgcn_forward.1} parent=1 // pred_fallthru
      _
    // Predicated region
    $region30: #{ddgcn_forward.1} parent=1 // pred_check
      _
    $region31: #{ddgcn_forward.1} parent=1 // pred_check_branch
      %37 = sbr.rel (0) target = $region33
    $region32: #{ddgcn_forward.1} parent=1 // pred_region
      _
    $region33: #{ddgcn_forward.1} parent=1 // pred_fallthru
      _
    // Predicated region
    $region34: #{ddgcn_forward.1} parent=1 // pred_check
      _
    $region35: #{ddgcn_forward.1} parent=1 // pred_check_branch
      %39 = sbr.rel (0) target = $region37
    $region36: #{ddgcn_forward.1} parent=1 // pred_region
      _
    $region37: #{ddgcn_forward.1} parent=1 // pred_fallthru
      _
    // Predicated region
    $region38: #{ddgcn_forward.1} parent=1 // pred_check
      _
    $region39: #{ddgcn_forward.1} parent=1 // pred_check_branch
      %41 = sbr.rel (0) target = $region41
    $region40: #{ddgcn_forward.1} parent=1 // pred_region
      _
    $region41: #{ddgcn_forward.1} parent=1 // pred_fallthru
      _
    %v42 = vld [vmem:[%s6] sm:$0xff]
    %v43 = vld [vmem:[%s7] sm:$0xff]
    %v44 = vld [vmem:[%s7 + $0x8] sm:$0xff]
    %v45 = vld [vmem:[%s7 + $0x10] sm:$0xff]
    %v46 = vld [vmem:[%s7 + $0x18] sm:$0xff]
    %v47 = vld [vmem:[%s8] sm:$0xff]
    %v48 = vld [vmem:[%s8 + $0x8] sm:$0xff]
    %v49 = vld [vmem:[%s8 + $0x10] sm:$0xff]
    %v50 = vld [vmem:[%s8 + $0x18] sm:$0xff]
    %v51 = vld [vmem:[%s9] sm:$0xf]
    %v52 = vld [vmem:[%s4] sm:$0x3]
    %v53 = vld [vmem:[%s5] sm:$0x1]
    %v54 = vld [vmem:[%s1] sm:$0xff]
    %v55 = vld [vmem:[%s1 + $0x8] sm:$0xff]
    %v56 = vld [vmem:[%s0] sm:$0xff]
    %v57 = vld [vmem:[%s0 + $0x8] sm:$0xff]
    %v58 = vld [vmem:[%s2] sm:$0xff]
    %v59 = vld [vmem:[%s3] sm:$0xff]
    %v60 = vld [vmem:[%s3 + $0x8] sm:$0xff]
    %vm61 = vcmask 31744
    %v63 = vsel %vm61, %v58, 0
    %65 = vmatprep.subr.mxu0 0.0
    %66 = vmatpush1.xpose.msra.mxu0 %v63
    %67 = vmatprep.subr.mxu0 0.0
    %68 = vmatpush1.xpose.msra.mxu0 0.0
    %69 = vmatprep.subr.mxu0 0.0
    %70 = vmatpush1.xpose.msra.mxu0 0.0
    %71 = vmatprep.subr.mxu0 0.0
    %72 = vmatpush1.xpose.msra.mxu0 0.0
    %73 = vmatprep.subr.mxu0 0.0
    %74 = vmatpush1.xpose.msra.mxu0 0.0
    %75 = vmatprep.subr.mxu0 0.0
    %76 = vmatpush1.xpose.msra.mxu0 0.0
    %77 = vmatprep.subr.mxu0 0.0
    %78 = vmatpush1.xpose.msra.mxu0 0.0
    %79 = vmatprep.subr.mxu0 0.0
    %80 = vmatpush1.xpose.msra.mxu0 0.0
    %81 = vmatprep.subr.mxu0 0.0
    %82 = vmatpush1.xpose.msra.mxu0 0.0
    %83 = vmatprep.subr.mxu0 0.0
    %84 = vmatpush1.xpose.msra.mxu0 0.0
    %85 = vmatprep.subr.mxu0 0.0
    %86 = vmatpush1.xpose.msra.mxu0 0.0
    %87 = vmatprep.subr.mxu0 0.0
    %88 = vmatpush1.xpose.msra.mxu0 0.0
    %89 = vmatprep.subr.mxu0 0.0
    %90 = vmatpush1.xpose.msra.mxu0 0.0
    %91 = vmatprep.subr.mxu0 0.0
    %92 = vmatpush1.xpose.msra.mxu0 0.0
    %93 = vmatprep.subr.mxu0 0.0
    %94 = vmatpush1.xpose.msra.mxu0 0.0
    %95 = vmatprep.subr.mxu0 0.0
    %96 = vmatpush1.xpose.msra.mxu0 0.0
    %97 = vmatprep.subr.mxu0 0.0
    %98 = vmatpush1.xpose.msra.mxu0 0.0
    %99 = vmatprep.subr.mxu0 0.0
    %100 = vmatpush1.xpose.msra.mxu0 0.0
    %101 = vmatprep.subr.mxu0 0.0
    %102 = vmatpush1.xpose.msra.mxu0 0.0
    %103 = vmatprep.subr.mxu0 0.0
    %104 = vmatpush1.xpose.msra.mxu0 0.0
    %105 = vmatprep.subr.mxu0 0.0
    %106 = vmatpush1.xpose.msra.mxu0 0.0
    %107 = vmatprep.subr.mxu0 0.0
    %108 = vmatpush1.xpose.msra.mxu0 0.0
    %109 = vmatprep.subr.mxu0 0.0
    %110 = vmatpush1.xpose.msra.mxu0 0.0
    %111 = vmatprep.subr.mxu0 0.0
    %112 = vmatpush1.xpose.msra.mxu0 0.0
    %113 = vmatprep.subr.mxu0 0.0
    %114 = vmatpush1.xpose.msra.mxu0 0.0
    %115 = vmatprep.subr.mxu0 0.0
    %116 = vmatpush1.xpose.msra.mxu0 0.0
    %117 = vmatprep.subr.mxu0 0.0
    %118 = vmatpush1.xpose.msra.mxu0 0.0
    %119 = vmatprep.subr.mxu0 0.0
    %120 = vmatpush1.xpose.msra.mxu0 0.0
    %121 = vmatprep.subr.mxu0 0.0
    %122 = vmatpush1.xpose.msra.mxu0 0.0
    %123 = vmatprep.subr.mxu0 0.0
    %124 = vmatpush1.xpose.msra.mxu0 0.0
    %125 = vmatprep.subr.mxu0 0.0
    %126 = vmatpush1.xpose.msra.mxu0 0.0
    %127 = vmatprep.subr.mxu0 0.0
    %128 = vmatpush1.xpose.msra.mxu0 0.0
    %129 = vmatprep.mubr.f32.mxu0 0.0
    %130 = vmatmul.mubr.f32.gmra.mrb[0].mxu0 %v63
    %v131 = vpop.f32.mrb[0].mxu0
    %v132 = vadd.f32 0.0, %v131
    %v133 = vpop.f32.mrb[0].mxu0
    %134 = vdwg.mxu0
    %v135 = vmax.f32 %v132, 0.0
    %vm136 = vcmask 64512
    %v137 = vsel %vm136, %v135, -inf
    %138 = vmax.xlane.f32.xlu0 %v137
    %v139 = vpop.xlane.xlu0 %138
    %v140 = vsub.f32 %v135, %v139
    %v141 = vmul.f32 %v140, 1.442695
    %v142 = vpow.pop %v141
    %v143 = vsel %vm136, %v142, 0.0
    %144 = vadd.xlane.f32.xlu0 %v143
    %v145 = vpop.xlane.xlu0 %144
    %v146 = vrcp.pop %v145
    %v147 = vmul.f32 %v142, %v146
    %v149 = vsel %vm136, %v147, 0
    %151 = vmatprep.subr.mxu0 0.0
    %152 = vmatpush1.msra.mxu0 %v56
    %153 = vmatprep.subr.mxu0 0.0
    %154 = vmatpush1.msra.mxu0 0.0
    %155 = vmatprep.subr.mxu0 0.0
    %156 = vmatpush1.msra.mxu0 0.0
    %157 = vmatprep.subr.mxu0 0.0
    %158 = vmatpush1.msra.mxu0 0.0
    %159 = vmatprep.subr.mxu0 0.0
    %160 = vmatpush1.msra.mxu0 0.0
    %161 = vmatprep.subr.mxu0 0.0
    %162 = vmatpush1.msra.mxu0 0.0
    %163 = vmatprep.subr.mxu0 0.0
    %164 = vmatpush1.msra.mxu0 0.0
    %165 = vmatprep.subr.mxu0 0.0
    %166 = vmatpush1.msra.mxu0 0.0
    %167 = vmatprep.subr.mxu0 0.0
    %168 = vmatpush1.msra.mxu0 0.0
    %169 = vmatprep.subr.mxu0 0.0
    %170 = vmatpush1.msra.mxu0 0.0
    %171 = vmatprep.subr.mxu0 0.0
    %172 = vmatpush1.msra.mxu0 0.0
    %173 = vmatprep.subr.mxu0 0.0
    %174 = vmatpush1.msra.mxu0 0.0
    %175 = vmatprep.subr.mxu0 0.0
    %176 = vmatpush1.msra.mxu0 0.0
    %177 = vmatprep.subr.mxu0 0.0
    %178 = vmatpush1.msra.mxu0 0.0
    %179 = vmatprep.subr.mxu0 0.0
    %180 = vmatpush1.msra.mxu0 0.0
    %181 = vmatprep.subr.mxu0 0.0
    %182 = vmatpush1.msra.mxu0 0.0
    %183 = vmatprep.subr.mxu0 0.0
    %184 = vmatpush1.msra.mxu0 0.0
    %185 = vmatprep.subr.mxu0 0.0
    %186 = vmatpush1.msra.mxu0 0.0
    %187 = vmatprep.subr.mxu0 0.0
    %188 = vmatpush1.msra.mxu0 0.0
    %189 = vmatprep.subr.mxu0 0.0
    %190 = vmatpush1.msra.mxu0 0.0
    %191 = vmatprep.subr.mxu0 0.0
    %192 = vmatpush1.msra.mxu0 0.0
    %193 = vmatprep.subr.mxu0 0.0
    %194 = vmatpush1.msra.mxu0 0.0
    %195 = vmatprep.subr.mxu0 0.0
    %196 = vmatpush1.msra.mxu0 0.0
    %197 = vmatprep.subr.mxu0 0.0
    %198 = vmatpush1.msra.mxu0 0.0
    %199 = vmatprep.subr.mxu0 0.0
    %200 = vmatpush1.msra.mxu0 0.0
    %201 = vmatprep.subr.mxu0 0.0
    %202 = vmatpush1.msra.mxu0 0.0
    %203 = vmatprep.subr.mxu0 0.0
    %204 = vmatpush1.msra.mxu0 0.0
    %205 = vmatprep.subr.mxu0 0.0
    %206 = vmatpush1.msra.mxu0 0.0
    %207 = vmatprep.subr.mxu0 0.0
    %208 = vmatpush1.msra.mxu0 0.0
    %209 = vmatprep.subr.mxu0 0.0
    %210 = vmatpush1.msra.mxu0 0.0
    %211 = vmatprep.subr.mxu0 0.0
    %212 = vmatpush1.msra.mxu0 0.0
    %213 = vmatprep.subr.mxu0 0.0
    %214 = vmatpush1.msra.mxu0 0.0
    %215 = vmatprep.mubr.f32.mxu0 0.0
    %216 = vmatmul.mubr.f32.gmra.mrb[0].mxu0 %v149
    %v217 = vpop.f32.mrb[0].mxu0
    %v218 = vadd.f32 0.0, %v217
    %v219 = vpop.f32.mrb[0].mxu0
    %220 = vdwg.mxu0
    %221 = vmatprep.subr.mxu0 0.0
    %222 = vmatpush1.msra.mxu0 %v57
    %223 = vmatprep.subr.mxu0 0.0
    %224 = vmatpush1.msra.mxu0 0.0
    %225 = vmatprep.subr.mxu0 0.0
    %226 = vmatpush1.msra.mxu0 0.0
    %227 = vmatprep.subr.mxu0 0.0
    %228 = vmatpush1.msra.mxu0 0.0
    %229 = vmatprep.subr.mxu0 0.0
    %230 = vmatpush1.msra.mxu0 0.0
    %231 = vmatprep.subr.mxu0 0.0
    %232 = vmatpush1.msra.mxu0 0.0
    %233 = vmatprep.subr.mxu0 0.0
    %234 = vmatpush1.msra.mxu0 0.0
    %235 = vmatprep.subr.mxu0 0.0
    %236 = vmatpush1.msra.mxu0 0.0
    %237 = vmatprep.subr.mxu0 0.0
    %238 = vmatpush1.msra.mxu0 0.0
    %239 = vmatprep.subr.mxu0 0.0
    %240 = vmatpush1.msra.mxu0 0.0
    %241 = vmatprep.subr.mxu0 0.0
    %242 = vmatpush1.msra.mxu0 0.0
    %243 = vmatprep.subr.mxu0 0.0
    %244 = vmatpush1.msra.mxu0 0.0
    %245 = vmatprep.subr.mxu0 0.0
    %246 = vmatpush1.msra.mxu0 0.0
    %247 = vmatprep.subr.mxu0 0.0
    %248 = vmatpush1.msra.mxu0 0.0
    %249 = vmatprep.subr.mxu0 0.0
    %250 = vmatpush1.msra.mxu0 0.0
    %251 = vmatprep.subr.mxu0 0.0
    %252 = vmatpush1.msra.mxu0 0.0
    %253 = vmatprep.subr.mxu0 0.0
    %254 = vmatpush1.msra.mxu0 0.0
    %255 = vmatprep.subr.mxu0 0.0
    %256 = vmatpush1.msra.mxu0 0.0
    %257 = vmatprep.subr.mxu0 0.0
    %258 = vmatpush1.msra.mxu0 0.0
    %259 = vmatprep.subr.mxu0 0.0
    %260 = vmatpush1.msra.mxu0 0.0
    %261 = vmatprep.subr.mxu0 0.0
    %262 = vmatpush1.msra.mxu0 0.0
    %263 = vmatprep.subr.mxu0 0.0
    %264 = vmatpush1.msra.mxu0 0.0
    %265 = vmatprep.subr.mxu0 0.0
    %266 = vmatpush1.msra.mxu0 0.0
    %267 = vmatprep.subr.mxu0 0.0
    %268 = vmatpush1.msra.mxu0 0.0
    %269 = vmatprep.subr.mxu0 0.0
    %270 = vmatpush1.msra.mxu0 0.0
    %271 = vmatprep.subr.mxu0 0.0
    %272 = vmatpush1.msra.mxu0 0.0
    %273 = vmatprep.subr.mxu0 0.0
    %274 = vmatpush1.msra.mxu0 0.0
    %275 = vmatprep.subr.mxu0 0.0
    %276 = vmatpush1.msra.mxu0 0.0
    %277 = vmatprep.subr.mxu0 0.0
    %278 = vmatpush1.msra.mxu0 0.0
    %279 = vmatprep.subr.mxu0 0.0
    %280 = vmatpush1.msra.mxu0 0.0
    %281 = vmatprep.subr.mxu0 0.0
    %282 = vmatpush1.msra.mxu0 0.0
    %283 = vmatprep.subr.mxu0 0.0
    %284 = vmatpush1.msra.mxu0 0.0
    %285 = vmatprep.mubr.f32.mxu0 0.0
    %286 = vmatmul.mubr.f32.gmra.mrb[0].mxu0 %v149
    %v287 = vpop.f32.mrb[0].mxu0
    %v288 = vadd.f32 0.0, %v287
    %v289 = vpop.f32.mrb[0].mxu0
    %290 = vdwg.mxu0
    %293 = vrot.lane.b32.xlu0 %v218, 2
    %v294 = vpop.permute.xlu0 %293
    %295 = vrot.lane.b32.xlu0 %v288, 2
    %v296 = vpop.permute.xlu0 %295
    %vm299 = vcmask 15360
    %v300 = vsel %vm299, %v56, %v294
    %v301 = vsel %vm299, %v57, %v296
    %302 = vmatprep.subr.mxu0 0.0
    %303 = vmatpush1.msra.mxu0 %v54
    %304 = vmatprep.subr.mxu0 0.0
    %305 = vmatpush1.msra.mxu0 0.0
    %306 = vmatprep.subr.mxu0 0.0
    %307 = vmatpush1.msra.mxu0 0.0
    %308 = vmatprep.subr.mxu0 0.0
    %309 = vmatpush1.msra.mxu0 0.0
    %310 = vmatprep.subr.mxu0 0.0
    %311 = vmatpush1.msra.mxu0 0.0
    %312 = vmatprep.subr.mxu0 0.0
    %313 = vmatpush1.msra.mxu0 0.0
    %314 = vmatprep.subr.mxu0 0.0
    %315 = vmatpush1.msra.mxu0 0.0
    %316 = vmatprep.subr.mxu0 0.0
    %317 = vmatpush1.msra.mxu0 0.0
    %318 = vmatprep.subr.mxu0 0.0
    %319 = vmatpush1.msra.mxu0 0.0
    %320 = vmatprep.subr.mxu0 0.0
    %321 = vmatpush1.msra.mxu0 0.0
    %322 = vmatprep.subr.mxu0 0.0
    %323 = vmatpush1.msra.mxu0 0.0
    %324 = vmatprep.subr.mxu0 0.0
    %325 = vmatpush1.msra.mxu0 0.0
    %326 = vmatprep.subr.mxu0 0.0
    %327 = vmatpush1.msra.mxu0 0.0
    %328 = vmatprep.subr.mxu0 0.0
    %329 = vmatpush1.msra.mxu0 0.0
    %330 = vmatprep.subr.mxu0 0.0
    %331 = vmatpush1.msra.mxu0 0.0
    %332 = vmatprep.subr.mxu0 0.0
    %333 = vmatpush1.msra.mxu0 0.0
    %334 = vmatprep.subr.mxu0 0.0
    %335 = vmatpush1.msra.mxu0 0.0
    %336 = vmatprep.subr.mxu0 0.0
    %337 = vmatpush1.msra.mxu0 0.0
    %338 = vmatprep.subr.mxu0 0.0
    %339 = vmatpush1.msra.mxu0 0.0
    %340 = vmatprep.subr.mxu0 0.0
    %341 = vmatpush1.msra.mxu0 0.0
    %342 = vmatprep.subr.mxu0 0.0
    %343 = vmatpush1.msra.mxu0 0.0
    %344 = vmatprep.subr.mxu0 0.0
    %345 = vmatpush1.msra.mxu0 0.0
    %346 = vmatprep.subr.mxu0 0.0
    %347 = vmatpush1.msra.mxu0 0.0
    %348 = vmatprep.subr.mxu0 0.0
    %349 = vmatpush1.msra.mxu0 0.0
    %350 = vmatprep.subr.mxu0 0.0
    %351 = vmatpush1.msra.mxu0 0.0
    %352 = vmatprep.subr.mxu0 0.0
    %353 = vmatpush1.msra.mxu0 0.0
    %354 = vmatprep.subr.mxu0 0.0
    %355 = vmatpush1.msra.mxu0 0.0
    %356 = vmatprep.subr.mxu0 0.0
    %357 = vmatpush1.msra.mxu0 0.0
    %358 = vmatprep.subr.mxu0 0.0
    %359 = vmatpush1.msra.mxu0 0.0
    %360 = vmatprep.subr.mxu0 0.0
    %361 = vmatpush1.msra.mxu0 0.0
    %362 = vmatprep.subr.mxu0 0.0
    %363 = vmatpush1.msra.mxu0 0.0
    %364 = vmatprep.subr.mxu0 0.0
    %365 = vmatpush1.msra.mxu0 0.0
    %366 = vmatprep.mubr.f32.mxu0 0.0
    %367 = vmatmul.mubr.f32.gmra.mrb[0].mxu0 %v149
    %v368 = vpop.f32.mrb[0].mxu0
    %v369 = vadd.f32 0.0, %v368
    %v370 = vpop.f32.mrb[0].mxu0
    %371 = vdwg.mxu0
    %372 = vmatprep.subr.mxu0 0.0
    %373 = vmatpush1.msra.mxu0 %v55
    %374 = vmatprep.subr.mxu0 0.0
    %375 = vmatpush1.msra.mxu0 0.0
    %376 = vmatprep.subr.mxu0 0.0
    %377 = vmatpush1.msra.mxu0 0.0
    %378 = vmatprep.subr.mxu0 0.0
    %379 = vmatpush1.msra.mxu0 0.0
    %380 = vmatprep.subr.mxu0 0.0
    %381 = vmatpush1.msra.mxu0 0.0
    %382 = vmatprep.subr.mxu0 0.0
    %383 = vmatpush1.msra.mxu0 0.0
    %384 = vmatprep.subr.mxu0 0.0
    %385 = vmatpush1.msra.mxu0 0.0
    %386 = vmatprep.subr.mxu0 0.0
    %387 = vmatpush1.msra.mxu0 0.0
    %388 = vmatprep.subr.mxu0 0.0
    %389 = vmatpush1.msra.mxu0 0.0
    %390 = vmatprep.subr.mxu0 0.0
    %391 = vmatpush1.msra.mxu0 0.0
    %392 = vmatprep.subr.mxu0 0.0
    %393 = vmatpush1.msra.mxu0 0.0
    %394 = vmatprep.subr.mxu0 0.0
    %395 = vmatpush1.msra.mxu0 0.0
    %396 = vmatprep.subr.mxu0 0.0
    %397 = vmatpush1.msra.mxu0 0.0
    %398 = vmatprep.subr.mxu0 0.0
    %399 = vmatpush1.msra.mxu0 0.0
    %400 = vmatprep.subr.mxu0 0.0
    %401 = vmatpush1.msra.mxu0 0.0
    %402 = vmatprep.subr.mxu0 0.0
    %403 = vmatpush1.msra.mxu0 0.0
    %404 = vmatprep.subr.mxu0 0.0
    %405 = vmatpush1.msra.mxu0 0.0
    %406 = vmatprep.subr.mxu0 0.0
    %407 = vmatpush1.msra.mxu0 0.0
    %408 = vmatprep.subr.mxu0 0.0
    %409 = vmatpush1.msra.mxu0 0.0
    %410 = vmatprep.subr.mxu0 0.0
    %411 = vmatpush1.msra.mxu0 0.0
    %412 = vmatprep.subr.mxu0 0.0
    %413 = vmatpush1.msra.mxu0 0.0
    %414 = vmatprep.subr.mxu0 0.0
    %415 = vmatpush1.msra.mxu0 0.0
    %416 = vmatprep.subr.mxu0 0.0
    %417 = vmatpush1.msra.mxu0 0.0
    %418 = vmatprep.subr.mxu0 0.0
    %419 = vmatpush1.msra.mxu0 0.0
    %420 = vmatprep.subr.mxu0 0.0
    %421 = vmatpush1.msra.mxu0 0.0
    %422 = vmatprep.subr.mxu0 0.0
    %423 = vmatpush1.msra.mxu0 0.0
    %424 = vmatprep.subr.mxu0 0.0
    %425 = vmatpush1.msra.mxu0 0.0
    %426 = vmatprep.subr.mxu0 0.0
    %427 = vmatpush1.msra.mxu0 0.0
    %428 = vmatprep.subr.mxu0 0.0
    %429 = vmatpush1.msra.mxu0 0.0
    %430 = vmatprep.subr.mxu0 0.0
    %431 = vmatpush1.msra.mxu0 0.0
    %432 = vmatprep.subr.mxu0 0.0
    %433 = vmatpush1.msra.mxu0 0.0
    %434 = vmatprep.subr.mxu0 0.0
    %435 = vmatpush1.msra.mxu0 0.0
    %436 = vmatprep.mubr.f32.mxu0 0.0
    %437 = vmatmul.mubr.f32.gmra.mrb[0].mxu0 %v149
    %v438 = vpop.f32.mrb[0].mxu0
    %v439 = vadd.f32 0.0, %v438
    %v440 = vpop.f32.mrb[0].mxu0
    %441 = vdwg.mxu0
    %444 = vrot.lane.b32.xlu0 %v369, 16
    %v445 = vpop.permute.xlu0 %444
    %446 = vrot.lane.b32.xlu0 %v439, 16
    %v447 = vpop.permute.xlu0 %446
    %vm450 = vcmask 130048
    %v451 = vsel %vm450, %v54, %v445
    %v452 = vsel %vm450, %v55, %v447
    %v454 = vcombine.high %v42, %v42
    %v456 = vsel %vm61, %v300, 0
    %v459 = vsel %vm61, %v301, 0
    %vm461 = vcmask 1043456
    %v462 = vsel %vm461, %v42, 0
    %v464 = vsel %vm461, %v454, 0
    %466 = vmatprep.subr.mxu0 %v464
    %467 = vmatpush1.msra.mxu0 %v462
    %468 = vmatprep.subr.mxu0 0.0
    %469 = vmatpush1.msra.mxu0 0.0
    %470 = vmatprep.subr.mxu0 0.0
    %471 = vmatpush1.msra.mxu0 0.0
    %472 = vmatprep.subr.mxu0 0.0
    %473 = vmatpush1.msra.mxu0 0.0
    %474 = vmatprep.subr.mxu0 0.0
    %475 = vmatpush1.msra.mxu0 0.0
    %476 = vmatprep.subr.mxu0 0.0
    %477 = vmatpush1.msra.mxu0 0.0
    %478 = vmatprep.subr.mxu0 0.0
    %479 = vmatpush1.msra.mxu0 0.0
    %480 = vmatprep.subr.mxu0 0.0
    %481 = vmatpush1.msra.mxu0 0.0
    %482 = vmatprep.subr.mxu0 0.0
    %483 = vmatpush1.msra.mxu0 0.0
    %484 = vmatprep.subr.mxu0 0.0
    %485 = vmatpush1.msra.mxu0 0.0
    %486 = vmatprep.subr.mxu0 0.0
    %487 = vmatpush1.msra.mxu0 0.0
    %488 = vmatprep.subr.mxu0 0.0
    %489 = vmatpush1.msra.mxu0 0.0
    %490 = vmatprep.subr.mxu0 0.0
    %491 = vmatpush1.msra.mxu0 0.0
    %492 = vmatprep.subr.mxu0 0.0
    %493 = vmatpush1.msra.mxu0 0.0
    %494 = vmatprep.subr.mxu0 0.0
    %495 = vmatpush1.msra.mxu0 0.0
    %496 = vmatprep.subr.mxu0 0.0
    %497 = vmatpush1.msra.mxu0 0.0
    %498 = vmatprep.subr.mxu0 0.0
    %499 = vmatpush1.msra.mxu0 0.0
    %500 = vmatprep.subr.mxu0 0.0
    %501 = vmatpush1.msra.mxu0 0.0
    %502 = vmatprep.subr.mxu0 0.0
    %503 = vmatpush1.msra.mxu0 0.0
    %504 = vmatprep.subr.mxu0 0.0
    %505 = vmatpush1.msra.mxu0 0.0
    %506 = vmatprep.subr.mxu0 0.0
    %507 = vmatpush1.msra.mxu0 0.0
    %508 = vmatprep.subr.mxu0 0.0
    %509 = vmatpush1.msra.mxu0 0.0
    %510 = vmatprep.subr.mxu0 0.0
    %511 = vmatpush1.msra.mxu0 0.0
    %512 = vmatprep.subr.mxu0 0.0
    %513 = vmatpush1.msra.mxu0 0.0
    %514 = vmatprep.subr.mxu0 0.0
    %515 = vmatpush1.msra.mxu0 0.0
    %516 = vmatprep.subr.mxu0 0.0
    %517 = vmatpush1.msra.mxu0 0.0
    %518 = vmatprep.subr.mxu0 0.0
    %519 = vmatpush1.msra.mxu0 0.0
    %520 = vmatprep.subr.mxu0 0.0
    %521 = vmatpush1.msra.mxu0 0.0
    %522 = vmatprep.subr.mxu0 0.0
    %523 = vmatpush1.msra.mxu0 0.0
    %524 = vmatprep.subr.mxu0 0.0
    %525 = vmatpush1.msra.mxu0 0.0
    %526 = vmatprep.subr.mxu0 0.0
    %527 = vmatpush1.msra.mxu0 0.0
    %528 = vmatprep.subr.mxu0 0.0
    %529 = vmatpush1.msra.mxu0 0.0
    %530 = vmatprep.mubr.f32.mxu0 0.0
    %531 = vmatmul.mubr.f32.gmra.mrb[0].mxu0 %v456
    %v532 = vpop.f32.mrb[0].mxu0
    %v533 = vadd.f32 0.0, %v532
    %v534 = vpop.f32.mrb[0].mxu0
    %v535 = vadd.f32 0.0, %v534
    %536 = vmatprep.mubr.f32.mxu0 0.0
    %537 = vmatmul.mubr.f32.gmra.mrb[0].mxu0 %v459
    %v538 = vpop.f32.mrb[0].mxu0
    %v539 = vadd.f32 0.0, %v538
    %v540 = vpop.f32.mrb[0].mxu0
    %v541 = vadd.f32 0.0, %v540
    %542 = vdwg.mxu0
    %vm543 = vcmask 261120
    %v545 = vsel %vm543, %v451, 0
    %v548 = vsel %vm543, %v452, 0
    %550 = vmatprep.subr.mxu0 0.0
    %551 = vmatpush1.msra.mxu0 %v43
    %552 = vmatprep.subr.mxu0 0.0
    %553 = vmatpush1.msra.mxu0 %v44
    %554 = vmatprep.subr.mxu0 0.0
    %555 = vmatpush1.msra.mxu0 %v45
    %556 = vmatprep.subr.mxu0 0.0
    %557 = vmatpush1.msra.mxu0 %v46
    %558 = vmatprep.subr.mxu0 0.0
    %559 = vmatpush1.msra.mxu0 0.0
    %560 = vmatprep.subr.mxu0 0.0
    %561 = vmatpush1.msra.mxu0 0.0
    %562 = vmatprep.subr.mxu0 0.0
    %563 = vmatpush1.msra.mxu0 0.0
    %564 = vmatprep.subr.mxu0 0.0
    %565 = vmatpush1.msra.mxu0 0.0
    %566 = vmatprep.subr.mxu0 0.0
    %567 = vmatpush1.msra.mxu0 0.0
    %568 = vmatprep.subr.mxu0 0.0
    %569 = vmatpush1.msra.mxu0 0.0
    %570 = vmatprep.subr.mxu0 0.0
    %571 = vmatpush1.msra.mxu0 0.0
    %572 = vmatprep.subr.mxu0 0.0
    %573 = vmatpush1.msra.mxu0 0.0
    %574 = vmatprep.subr.mxu0 0.0
    %575 = vmatpush1.msra.mxu0 0.0
    %576 = vmatprep.subr.mxu0 0.0
    %577 = vmatpush1.msra.mxu0 0.0
    %578 = vmatprep.subr.mxu0 0.0
    %579 = vmatpush1.msra.mxu0 0.0
    %580 = vmatprep.subr.mxu0 0.0
    %581 = vmatpush1.msra.mxu0 0.0
    %582 = vmatprep.subr.mxu0 0.0
    %583 = vmatpush1.msra.mxu0 0.0
    %584 = vmatprep.subr.mxu0 0.0
    %585 = vmatpush1.msra.mxu0 0.0
    %586 = vmatprep.subr.mxu0 0.0
    %587 = vmatpush1.msra.mxu0 0.0
    %588 = vmatprep.subr.mxu0 0.0
    %589 = vmatpush1.msra.mxu0 0.0
    %590 = vmatprep.subr.mxu0 0.0
    %591 = vmatpush1.msra.mxu0 0.0
    %592 = vmatprep.subr.mxu0 0.0
    %593 = vmatpush1.msra.mxu0 0.0
    %594 = vmatprep.subr.mxu0 0.0
    %595 = vmatpush1.msra.mxu0 0.0
    %596 = vmatprep.subr.mxu0 0.0
    %597 = vmatpush1.msra.mxu0 0.0
    %598 = vmatprep.subr.mxu0 0.0
    %599 = vmatpush1.msra.mxu0 0.0
    %600 = vmatprep.subr.mxu0 0.0
    %601 = vmatpush1.msra.mxu0 0.0
    %602 = vmatprep.subr.mxu0 0.0
    %603 = vmatpush1.msra.mxu0 0.0
    %604 = vmatprep.subr.mxu0 0.0
    %605 = vmatpush1.msra.mxu0 0.0
    %606 = vmatprep.subr.mxu0 0.0
    %607 = vmatpush1.msra.mxu0 0.0
    %608 = vmatprep.subr.mxu0 0.0
    %609 = vmatpush1.msra.mxu0 0.0
    %610 = vmatprep.subr.mxu0 0.0
    %611 = vmatpush1.msra.mxu0 0.0
    %612 = vmatprep.subr.mxu0 0.0
    %613 = vmatpush1.msra.mxu0 0.0
    %614 = vmatprep.mubr.f32.mxu0 0.0
    %615 = vmatmul.mubr.f32.gmra.mrb[0].mxu0 %v545
    %v616 = vpop.f32.mrb[0].mxu0
    %v617 = vadd.f32 0.0, %v616
    %v618 = vpop.f32.mrb[0].mxu0
    %619 = vmatprep.mubr.f32.mxu0 0.0
    %620 = vmatmul.mubr.f32.gmra.mrb[0].mxu0 %v548
    %v621 = vpop.f32.mrb[0].mxu0
    %v622 = vadd.f32 0.0, %v621
    %v623 = vpop.f32.mrb[0].mxu0
    %624 = vdwg.mxu0
    %v626 = vsel %vm61, %v59, 0
    %v629 = vsel %vm61, %v60, 0
    %v632 = vsel %vm461, %v51, 0
    %634 = vmatprep.subr.mxu0 0.0
    %635 = vmatpush1.msra.mxu0 %v632
    %636 = vmatprep.subr.mxu0 0.0
    %637 = vmatpush1.msra.mxu0 0.0
    %638 = vmatprep.subr.mxu0 0.0
    %639 = vmatpush1.msra.mxu0 0.0
    %640 = vmatprep.subr.mxu0 0.0
    %641 = vmatpush1.msra.mxu0 0.0
    %642 = vmatprep.subr.mxu0 0.0
    %643 = vmatpush1.msra.mxu0 0.0
    %644 = vmatprep.subr.mxu0 0.0
    %645 = vmatpush1.msra.mxu0 0.0
    %646 = vmatprep.subr.mxu0 0.0
    %647 = vmatpush1.msra.mxu0 0.0
    %648 = vmatprep.subr.mxu0 0.0
    %649 = vmatpush1.msra.mxu0 0.0
    %650 = vmatprep.subr.mxu0 0.0
    %651 = vmatpush1.msra.mxu0 0.0
    %652 = vmatprep.subr.mxu0 0.0
    %653 = vmatpush1.msra.mxu0 0.0
    %654 = vmatprep.subr.mxu0 0.0
    %655 = vmatpush1.msra.mxu0 0.0
    %656 = vmatprep.subr.mxu0 0.0
    %657 = vmatpush1.msra.mxu0 0.0
    %658 = vmatprep.subr.mxu0 0.0
    %659 = vmatpush1.msra.mxu0 0.0
    %660 = vmatprep.subr.mxu0 0.0
    %661 = vmatpush1.msra.mxu0 0.0
    %662 = vmatprep.subr.mxu0 0.0
    %663 = vmatpush1.msra.mxu0 0.0
    %664 = vmatprep.subr.mxu0 0.0
    %665 = vmatpush1.msra.mxu0 0.0
    %666 = vmatprep.subr.mxu0 0.0
    %667 = vmatpush1.msra.mxu0 0.0
    %668 = vmatprep.subr.mxu0 0.0
    %669 = vmatpush1.msra.mxu0 0.0
    %670 = vmatprep.subr.mxu0 0.0
    %671 = vmatpush1.msra.mxu0 0.0
    %672 = vmatprep.subr.mxu0 0.0
    %673 = vmatpush1.msra.mxu0 0.0
    %674 = vmatprep.subr.mxu0 0.0
    %675 = vmatpush1.msra.mxu0 0.0
    %676 = vmatprep.subr.mxu0 0.0
    %677 = vmatpush1.msra.mxu0 0.0
    %678 = vmatprep.subr.mxu0 0.0
    %679 = vmatpush1.msra.mxu0 0.0
    %680 = vmatprep.subr.mxu0 0.0
    %681 = vmatpush1.msra.mxu0 0.0
    %682 = vmatprep.subr.mxu0 0.0
    %683 = vmatpush1.msra.mxu0 0.0
    %684 = vmatprep.subr.mxu0 0.0
    %685 = vmatpush1.msra.mxu0 0.0
    %686 = vmatprep.subr.mxu0 0.0
    %687 = vmatpush1.msra.mxu0 0.0
    %688 = vmatprep.subr.mxu0 0.0
    %689 = vmatpush1.msra.mxu0 0.0
    %690 = vmatprep.subr.mxu0 0.0
    %691 = vmatpush1.msra.mxu0 0.0
    %692 = vmatprep.subr.mxu0 0.0
    %693 = vmatpush1.msra.mxu0 0.0
    %694 = vmatprep.subr.mxu0 0.0
    %695 = vmatpush1.msra.mxu0 0.0
    %696 = vmatprep.subr.mxu0 0.0
    %697 = vmatpush1.msra.mxu0 0.0
    %698 = vmatprep.mubr.f32.mxu0 0.0
    %699 = vmatmul.mubr.f32.gmra.mrb[0].mxu0 %v626
    %v700 = vpop.f32.mrb[0].mxu0
    %v701 = vadd.f32 0.0, %v700
    %v702 = vpop.f32.mrb[0].mxu0
    %703 = vmatprep.mubr.f32.mxu0 0.0
    %704 = vmatmul.mubr.f32.gmra.mrb[0].mxu0 %v629
    %v705 = vpop.f32.mrb[0].mxu0
    %v706 = vadd.f32 0.0, %v705
    %v707 = vpop.f32.mrb[0].mxu0
    %708 = vdwg.mxu0
    %709 = vset.pattern.permute.xlu0 0
    %710 = vperm.xlu0 %709, %v59
    %v711 = vpop.permute.xlu0 %710
    %713 = vset.pattern.permute.xlu0 0
    %714 = vperm.xlu0 %713, %v60
    %v715 = vpop.permute.xlu0 %714
    %v717 = vmul.f32 %v711, %v533
    %v718 = vmul.f32 %v715, %v539
    %719 = vset.pattern.permute.xlu0 1
    %720 = vperm.xlu0 %719, %v59
    %v721 = vpop.permute.xlu0 %720
    %723 = vset.pattern.permute.xlu0 1
    %724 = vperm.xlu0 %723, %v60
    %v725 = vpop.permute.xlu0 %724
    %v727 = vmul.f32 %v721, %v533
    %v728 = vmul.f32 %v725, %v539
    %731 = vrot.lane.b32.xlu0 %v727, 80
    %v732 = vpop.permute.xlu0 %731
    %733 = vrot.lane.b32.xlu0 %v728, 80
    %v734 = vpop.permute.xlu0 %733
    %v737 = vadd.f32 %v717, %v732
    %v738 = vadd.f32 %v718, %v734
    %739 = vset.pattern.permute.xlu0 2
    %740 = vperm.xlu0 %739, %v59
    %v741 = vpop.permute.xlu0 %740
    %743 = vset.pattern.permute.xlu0 2
    %744 = vperm.xlu0 %743, %v60
    %v745 = vpop.permute.xlu0 %744
    %v747 = vmul.f32 %v741, %v533
    %v748 = vmul.f32 %v741, %v535
    %v749 = vmul.f32 %v745, %v539
    %v750 = vmul.f32 %v745, %v541
    %755 = vrot.lane.b32.xlu0 %v747, 32
    %v756 = vpop.permute.xlu0 %755
    %757 = vrot.lane.b32.xlu0 %v748, 32
    %v758 = vpop.permute.xlu0 %757
    %759 = vrot.lane.b32.xlu0 %v749, 32
    %v760 = vpop.permute.xlu0 %759
    %761 = vrot.lane.b32.xlu0 %v750, 32
    %v762 = vpop.permute.xlu0 %761
    %v763 = vsel %vm543, %v756, %v758
    %v764 = vsel %vm543, %v760, %v762
    %v767 = vadd.f32 %v737, %v763
    %v768 = vadd.f32 %v738, %v764
    %769 = vset.pattern.permute.xlu0 3
    %770 = vperm.xlu0 %769, %v59
    %v771 = vpop.permute.xlu0 %770
    %773 = vset.pattern.permute.xlu0 3
    %774 = vperm.xlu0 %773, %v60
    %v775 = vpop.permute.xlu0 %774
    %v777 = vmul.f32 %v771, %v535
    %v778 = vmul.f32 %v775, %v541
    %781 = vrot.lane.b32.xlu0 %v777, 112
    %v782 = vpop.permute.xlu0 %781
    %783 = vrot.lane.b32.xlu0 %v778, 112
    %v784 = vpop.permute.xlu0 %783
    %v787 = vadd.f32 %v767, %v782
    %v788 = vadd.f32 %v768, %v784
    %v789 = vmul.f32 %v711, %v617
    %v790 = vmul.f32 %v715, %v622
    %v791 = vmul.f32 %v721, %v617
    %v792 = vmul.f32 %v725, %v622
    %795 = vrot.lane.b32.xlu0 %v791, 96
    %v796 = vpop.permute.xlu0 %795
    %797 = vrot.lane.b32.xlu0 %v792, 96
    %v798 = vpop.permute.xlu0 %797
    %v801 = vadd.f32 %v789, %v796
    %v802 = vadd.f32 %v790, %v798
    %v803 = vmul.f32 %v741, %v617
    %v804 = vmul.f32 %v745, %v622
    %807 = vrot.lane.b32.xlu0 %v803, 64
    %v808 = vpop.permute.xlu0 %807
    %809 = vrot.lane.b32.xlu0 %v804, 64
    %v810 = vpop.permute.xlu0 %809
    %v813 = vadd.f32 %v801, %v808
    %v814 = vadd.f32 %v802, %v810
    %v815 = vmul.f32 %v771, %v617
    %v816 = vmul.f32 %v775, %v622
    %819 = vrot.lane.b32.xlu0 %v815, 32
    %v820 = vpop.permute.xlu0 %819
    %821 = vrot.lane.b32.xlu0 %v816, 32
    %v822 = vpop.permute.xlu0 %821
    %v825 = vadd.f32 %v813, %v820
    %v826 = vadd.f32 %v814, %v822
    %v827 = vadd.f32 %v787, %v825
    %v828 = vadd.f32 %v788, %v826
    %v829 = vadd.f32 %v827, %v701
    %v830 = vadd.f32 %v828, %v706
    %v831 = vsub.f32 0.0, %v829
    %v832 = vsub.f32 0.0, %v830
    %v833 = vmul.f32 %v831, 1.442695
    %v834 = vpow.pop %v833
    %v835 = vmul.f32 %v832, 1.442695
    %v836 = vpow.pop %v835
    %v837 = vadd.f32 %v834, 1.0
    %v838 = vadd.f32 %v836, 1.0
    %v839 = vrcp.pop %v837
    %v840 = vrcp.pop %v838
    %v841 = vmul.f32 %v839, %v54
    %v842 = vmul.f32 %v840, %v55
    %843 = vmatprep.subr.mxu0 0.0
    %844 = vmatpush1.msra.mxu0 %v841
    %845 = vmatprep.subr.mxu0 0.0
    %846 = vmatpush1.msra.mxu0 0.0
    %847 = vmatprep.subr.mxu0 0.0
    %848 = vmatpush1.msra.mxu0 0.0
    %849 = vmatprep.subr.mxu0 0.0
    %850 = vmatpush1.msra.mxu0 0.0
    %851 = vmatprep.subr.mxu0 0.0
    %852 = vmatpush1.msra.mxu0 0.0
    %853 = vmatprep.subr.mxu0 0.0
    %854 = vmatpush1.msra.mxu0 0.0
    %855 = vmatprep.subr.mxu0 0.0
    %856 = vmatpush1.msra.mxu0 0.0
    %857 = vmatprep.subr.mxu0 0.0
    %858 = vmatpush1.msra.mxu0 0.0
    %859 = vmatprep.subr.mxu0 0.0
    %860 = vmatpush1.msra.mxu0 0.0
    %861 = vmatprep.subr.mxu0 0.0
    %862 = vmatpush1.msra.mxu0 0.0
    %863 = vmatprep.subr.mxu0 0.0
    %864 = vmatpush1.msra.mxu0 0.0
    %865 = vmatprep.subr.mxu0 0.0
    %866 = vmatpush1.msra.mxu0 0.0
    %867 = vmatprep.subr.mxu0 0.0
    %868 = vmatpush1.msra.mxu0 0.0
    %869 = vmatprep.subr.mxu0 0.0
    %870 = vmatpush1.msra.mxu0 0.0
    %871 = vmatprep.subr.mxu0 0.0
    %872 = vmatpush1.msra.mxu0 0.0
    %873 = vmatprep.subr.mxu0 0.0
    %874 = vmatpush1.msra.mxu0 0.0
    %875 = vmatprep.subr.mxu0 0.0
    %876 = vmatpush1.msra.mxu0 0.0
    %877 = vmatprep.subr.mxu0 0.0
    %878 = vmatpush1.msra.mxu0 0.0
    %879 = vmatprep.subr.mxu0 0.0
    %880 = vmatpush1.msra.mxu0 0.0
    %881 = vmatprep.subr.mxu0 0.0
    %882 = vmatpush1.msra.mxu0 0.0
    %883 = vmatprep.subr.mxu0 0.0
    %884 = vmatpush1.msra.mxu0 0.0
    %885 = vmatprep.subr.mxu0 0.0
    %886 = vmatpush1.msra.mxu0 0.0
    %887 = vmatprep.subr.mxu0 0.0
    %888 = vmatpush1.msra.mxu0 0.0
    %889 = vmatprep.subr.mxu0 0.0
    %890 = vmatpush1.msra.mxu0 0.0
    %891 = vmatprep.subr.mxu0 0.0
    %892 = vmatpush1.msra.mxu0 0.0
    %893 = vmatprep.subr.mxu0 0.0
    %894 = vmatpush1.msra.mxu0 0.0
    %895 = vmatprep.subr.mxu0 0.0
    %896 = vmatpush1.msra.mxu0 0.0
    %897 = vmatprep.subr.mxu0 0.0
    %898 = vmatpush1.msra.mxu0 0.0
    %899 = vmatprep.subr.mxu0 0.0
    %900 = vmatpush1.msra.mxu0 0.0
    %901 = vmatprep.subr.mxu0 0.0
    %902 = vmatpush1.msra.mxu0 0.0
    %903 = vmatprep.subr.mxu0 0.0
    %904 = vmatpush1.msra.mxu0 0.0
    %905 = vmatprep.subr.mxu0 0.0
    %906 = vmatpush1.msra.mxu0 0.0
    %907 = vmatprep.mubr.f32.mxu0 0.0
    %908 = vmatmul.mubr.f32.gmra.mrb[0].mxu0 %v149
    %v909 = vpop.f32.mrb[0].mxu0
    %v910 = vadd.f32 0.0, %v909
    %v911 = vpop.f32.mrb[0].mxu0
    %912 = vdwg.mxu0
    %913 = vmatprep.subr.mxu0 0.0
    %914 = vmatpush1.msra.mxu0 %v842
    %915 = vmatprep.subr.mxu0 0.0
    %916 = vmatpush1.msra.mxu0 0.0
    %917 = vmatprep.subr.mxu0 0.0
    %918 = vmatpush1.msra.mxu0 0.0
    %919 = vmatprep.subr.mxu0 0.0
    %920 = vmatpush1.msra.mxu0 0.0
    %921 = vmatprep.subr.mxu0 0.0
    %922 = vmatpush1.msra.mxu0 0.0
    %923 = vmatprep.subr.mxu0 0.0
    %924 = vmatpush1.msra.mxu0 0.0
    %925 = vmatprep.subr.mxu0 0.0
    %926 = vmatpush1.msra.mxu0 0.0
    %927 = vmatprep.subr.mxu0 0.0
    %928 = vmatpush1.msra.mxu0 0.0
    %929 = vmatprep.subr.mxu0 0.0
    %930 = vmatpush1.msra.mxu0 0.0
    %931 = vmatprep.subr.mxu0 0.0
    %932 = vmatpush1.msra.mxu0 0.0
    %933 = vmatprep.subr.mxu0 0.0
    %934 = vmatpush1.msra.mxu0 0.0
    %935 = vmatprep.subr.mxu0 0.0
    %936 = vmatpush1.msra.mxu0 0.0
    %937 = vmatprep.subr.mxu0 0.0
    %938 = vmatpush1.msra.mxu0 0.0
    %939 = vmatprep.subr.mxu0 0.0
    %940 = vmatpush1.msra.mxu0 0.0
    %941 = vmatprep.subr.mxu0 0.0
    %942 = vmatpush1.msra.mxu0 0.0
    %943 = vmatprep.subr.mxu0 0.0
    %944 = vmatpush1.msra.mxu0 0.0
    %945 = vmatprep.subr.mxu0 0.0
    %946 = vmatpush1.msra.mxu0 0.0
    %947 = vmatprep.subr.mxu0 0.0
    %948 = vmatpush1.msra.mxu0 0.0
    %949 = vmatprep.subr.mxu0 0.0
    %950 = vmatpush1.msra.mxu0 0.0
    %951 = vmatprep.subr.mxu0 0.0
    %952 = vmatpush1.msra.mxu0 0.0
    %953 = vmatprep.subr.mxu0 0.0
    %954 = vmatpush1.msra.mxu0 0.0
    %955 = vmatprep.subr.mxu0 0.0
    %956 = vmatpush1.msra.mxu0 0.0
    %957 = vmatprep.subr.mxu0 0.0
    %958 = vmatpush1.msra.mxu0 0.0
    %959 = vmatprep.subr.mxu0 0.0
    %960 = vmatpush1.msra.mxu0 0.0
    %961 = vmatprep.subr.mxu0 0.0
    %962 = vmatpush1.msra.mxu0 0.0
    %963 = vmatprep.subr.mxu0 0.0
    %964 = vmatpush1.msra.mxu0 0.0
    %965 = vmatprep.subr.mxu0 0.0
    %966 = vmatpush1.msra.mxu0 0.0
    %967 = vmatprep.subr.mxu0 0.0
    %968 = vmatpush1.msra.mxu0 0.0
    %969 = vmatprep.subr.mxu0 0.0
    %970 = vmatpush1.msra.mxu0 0.0
    %971 = vmatprep.subr.mxu0 0.0
    %972 = vmatpush1.msra.mxu0 0.0
    %973 = vmatprep.subr.mxu0 0.0
    %974 = vmatpush1.msra.mxu0 0.0
    %975 = vmatprep.subr.mxu0 0.0
    %976 = vmatpush1.msra.mxu0 0.0
    %977 = vmatprep.mubr.f32.mxu0 0.0
    %978 = vmatmul.mubr.f32.gmra.mrb[0].mxu0 %v149
    %v979 = vpop.f32.mrb[0].mxu0
    %v980 = vadd.f32 0.0, %v979
    %v981 = vpop.f32.mrb[0].mxu0
    %982 = vdwg.mxu0
    %985 = vrot.lane.b32.xlu0 %v910, 16
    %v986 = vpop.permute.xlu0 %985
    %987 = vrot.lane.b32.xlu0 %v980, 16
    %v988 = vpop.permute.xlu0 %987
    %v991 = vsel %vm450, %v841, %v986
    %v992 = vsel %vm450, %v842, %v988
    %v994 = vsel %vm543, %v991, 0
    %v997 = vsel %vm543, %v992, 0
    %999 = vmatprep.subr.mxu0 0.0
    %1000 = vmatpush1.msra.mxu0 %v47
    %1001 = vmatprep.subr.mxu0 0.0
    %1002 = vmatpush1.msra.mxu0 %v48
    %1003 = vmatprep.subr.mxu0 0.0
    %1004 = vmatpush1.msra.mxu0 %v49
    %1005 = vmatprep.subr.mxu0 0.0
    %1006 = vmatpush1.msra.mxu0 %v50
    %1007 = vmatprep.subr.mxu0 0.0
    %1008 = vmatpush1.msra.mxu0 0.0
    %1009 = vmatprep.subr.mxu0 0.0
    %1010 = vmatpush1.msra.mxu0 0.0
    %1011 = vmatprep.subr.mxu0 0.0
    %1012 = vmatpush1.msra.mxu0 0.0
    %1013 = vmatprep.subr.mxu0 0.0
    %1014 = vmatpush1.msra.mxu0 0.0
    %1015 = vmatprep.subr.mxu0 0.0
    %1016 = vmatpush1.msra.mxu0 0.0
    %1017 = vmatprep.subr.mxu0 0.0
    %1018 = vmatpush1.msra.mxu0 0.0
    %1019 = vmatprep.subr.mxu0 0.0
    %1020 = vmatpush1.msra.mxu0 0.0
    %1021 = vmatprep.subr.mxu0 0.0
    %1022 = vmatpush1.msra.mxu0 0.0
    %1023 = vmatprep.subr.mxu0 0.0
    %1024 = vmatpush1.msra.mxu0 0.0
    %1025 = vmatprep.subr.mxu0 0.0
    %1026 = vmatpush1.msra.mxu0 0.0
    %1027 = vmatprep.subr.mxu0 0.0
    %1028 = vmatpush1.msra.mxu0 0.0
    %1029 = vmatprep.subr.mxu0 0.0
    %1030 = vmatpush1.msra.mxu0 0.0
    %1031 = vmatprep.subr.mxu0 0.0
    %1032 = vmatpush1.msra.mxu0 0.0
    %1033 = vmatprep.subr.mxu0 0.0
    %1034 = vmatpush1.msra.mxu0 0.0
    %1035 = vmatprep.subr.mxu0 0.0
    %1036 = vmatpush1.msra.mxu0 0.0
    %1037 = vmatprep.subr.mxu0 0.0
    %1038 = vmatpush1.msra.mxu0 0.0
    %1039 = vmatprep.subr.mxu0 0.0
    %1040 = vmatpush1.msra.mxu0 0.0
    %1041 = vmatprep.subr.mxu0 0.0
    %1042 = vmatpush1.msra.mxu0 0.0
    %1043 = vmatprep.subr.mxu0 0.0
    %1044 = vmatpush1.msra.mxu0 0.0
    %1045 = vmatprep.subr.mxu0 0.0
    %1046 = vmatpush1.msra.mxu0 0.0
    %1047 = vmatprep.subr.mxu0 0.0
    %1048 = vmatpush1.msra.mxu0 0.0
    %1049 = vmatprep.subr.mxu0 0.0
    %1050 = vmatpush1.msra.mxu0 0.0
    %1051 = vmatprep.subr.mxu0 0.0
    %1052 = vmatpush1.msra.mxu0 0.0
    %1053 = vmatprep.subr.mxu0 0.0
    %1054 = vmatpush1.msra.mxu0 0.0
    %1055 = vmatprep.subr.mxu0 0.0
    %1056 = vmatpush1.msra.mxu0 0.0
    %1057 = vmatprep.subr.mxu0 0.0
    %1058 = vmatpush1.msra.mxu0 0.0
    %1059 = vmatprep.subr.mxu0 0.0
    %1060 = vmatpush1.msra.mxu0 0.0
    %1061 = vmatprep.subr.mxu0 0.0
    %1062 = vmatpush1.msra.mxu0 0.0
    %1063 = vmatprep.mubr.f32.mxu0 0.0
    %1064 = vmatmul.mubr.f32.gmra.mrb[0].mxu0 %v994
    %v1065 = vpop.f32.mrb[0].mxu0
    %v1066 = vadd.f32 0.0, %v1065
    %v1067 = vpop.f32.mrb[0].mxu0
    %1068 = vmatprep.mubr.f32.mxu0 0.0
    %1069 = vmatmul.mubr.f32.gmra.mrb[0].mxu0 %v997
    %v1070 = vpop.f32.mrb[0].mxu0
    %v1071 = vadd.f32 0.0, %v1070
    %v1072 = vpop.f32.mrb[0].mxu0
    %1073 = vdwg.mxu0
    %v1074 = vmul.f32 %v711, %v1066
    %v1075 = vmul.f32 %v715, %v1071
    %v1076 = vmul.f32 %v721, %v1066
    %v1077 = vmul.f32 %v725, %v1071
    %1080 = vrot.lane.b32.xlu0 %v1076, 112
    %v1081 = vpop.permute.xlu0 %1080
    %1082 = vrot.lane.b32.xlu0 %v1077, 112
    %v1083 = vpop.permute.xlu0 %1082
    %v1086 = vadd.f32 %v1074, %v1081
    %v1087 = vadd.f32 %v1075, %v1083
    %v1088 = vmul.f32 %v741, %v1066
    %v1089 = vmul.f32 %v745, %v1071
    %1092 = vrot.lane.b32.xlu0 %v1088, 96
    %v1093 = vpop.permute.xlu0 %1092
    %1094 = vrot.lane.b32.xlu0 %v1089, 96
    %v1095 = vpop.permute.xlu0 %1094
    %v1098 = vadd.f32 %v1086, %v1093
    %v1099 = vadd.f32 %v1087, %v1095
    %v1100 = vmul.f32 %v771, %v1066
    %v1101 = vmul.f32 %v775, %v1071
    %1104 = vrot.lane.b32.xlu0 %v1100, 80
    %v1105 = vpop.permute.xlu0 %1104
    %1106 = vrot.lane.b32.xlu0 %v1101, 80
    %v1107 = vpop.permute.xlu0 %1106
    %v1110 = vadd.f32 %v1098, %v1105
    %v1111 = vadd.f32 %v1099, %v1107
    %1114 = vrot.lane.b32.xlu0 %v1110, 32
    %v1115 = vpop.permute.xlu0 %1114
    %1116 = vrot.lane.b32.xlu0 %v1111, 32
    %v1117 = vpop.permute.xlu0 %1116
    %v1120 = vadd.f32 %v787, %v1115
    %v1121 = vadd.f32 %v788, %v1117
    %v1122 = vadd.f32 %v1120, %v701
    %v1123 = vadd.f32 %v1121, %v706
    %v1124 = vtanh.pop %v1122
    %v1125 = vtanh.pop %v1123
    %1128 = vrot.lane.b32.xlu0 %v54, 16
    %v1129 = vpop.permute.xlu0 %1128
    %1130 = vrot.lane.b32.xlu0 %v55, 16
    %v1131 = vpop.permute.xlu0 %1130
    %v1134 = vmul.f32 %v839, %v1129
    %v1135 = vmul.f32 %v840, %v1131
    %v1136 = vsub.f32 1.0, %v839
    %v1137 = vsub.f32 1.0, %v840
    %1140 = vrot.lane.b32.xlu0 %v1124, 112
    %v1141 = vpop.permute.xlu0 %1140
    %1142 = vrot.lane.b32.xlu0 %v1125, 112
    %v1143 = vpop.permute.xlu0 %1142
    %v1146 = vmul.f32 %v1136, %v1141
    %v1147 = vmul.f32 %v1137, %v1143
    %v1148 = vadd.f32 %v1134, %v1146
    %v1149 = vadd.f32 %v1135, %v1147
    %v1151 = vlaneseq
    %v1152 = vshrl.u32 %v1151, 7
    %v1153 = vsub.s32 0, %v1152
    %v1154 = vrot.slane %v53, %v1153
    %v1157 = vsel %vm299, %v56, 0
    %v1160 = vsel %vm299, %v57, 0
    %vm1162 = vcmask 1041408
    %v1164 = vsel %vm1162, %v52, 0
    %1166 = vmatprep.subr.mxu0 0.0
    %1167 = vmatpush1.msra.mxu0 %v1164
    %1168 = vmatprep.subr.mxu0 0.0
    %1169 = vmatpush1.msra.mxu0 0.0
    %1170 = vmatprep.subr.mxu0 0.0
    %1171 = vmatpush1.msra.mxu0 0.0
    %1172 = vmatprep.subr.mxu0 0.0
    %1173 = vmatpush1.msra.mxu0 0.0
    %1174 = vmatprep.subr.mxu0 0.0
    %1175 = vmatpush1.msra.mxu0 0.0
    %1176 = vmatprep.subr.mxu0 0.0
    %1177 = vmatpush1.msra.mxu0 0.0
    %1178 = vmatprep.subr.mxu0 0.0
    %1179 = vmatpush1.msra.mxu0 0.0
    %1180 = vmatprep.subr.mxu0 0.0
    %1181 = vmatpush1.msra.mxu0 0.0
    %1182 = vmatprep.subr.mxu0 0.0
    %1183 = vmatpush1.msra.mxu0 0.0
    %1184 = vmatprep.subr.mxu0 0.0
    %1185 = vmatpush1.msra.mxu0 0.0
    %1186 = vmatprep.subr.mxu0 0.0
    %1187 = vmatpush1.msra.mxu0 0.0
    %1188 = vmatprep.subr.mxu0 0.0
    %1189 = vmatpush1.msra.mxu0 0.0
    %1190 = vmatprep.subr.mxu0 0.0
    %1191 = vmatpush1.msra.mxu0 0.0
    %1192 = vmatprep.subr.mxu0 0.0
    %1193 = vmatpush1.msra.mxu0 0.0
    %1194 = vmatprep.subr.mxu0 0.0
    %1195 = vmatpush1.msra.mxu0 0.0
    %1196 = vmatprep.subr.mxu0 0.0
    %1197 = vmatpush1.msra.mxu0 0.0
    %1198 = vmatprep.subr.mxu0 0.0
    %1199 = vmatpush1.msra.mxu0 0.0
    %1200 = vmatprep.subr.mxu0 0.0
    %1201 = vmatpush1.msra.mxu0 0.0
    %1202 = vmatprep.subr.mxu0 0.0
    %1203 = vmatpush1.msra.mxu0 0.0
    %1204 = vmatprep.subr.mxu0 0.0
    %1205 = vmatpush1.msra.mxu0 0.0
    %1206 = vmatprep.subr.mxu0 0.0
    %1207 = vmatpush1.msra.mxu0 0.0
    %1208 = vmatprep.subr.mxu0 0.0
    %1209 = vmatpush1.msra.mxu0 0.0
    %1210 = vmatprep.subr.mxu0 0.0
    %1211 = vmatpush1.msra.mxu0 0.0
    %1212 = vmatprep.subr.mxu0 0.0
    %1213 = vmatpush1.msra.mxu0 0.0
    %1214 = vmatprep.subr.mxu0 0.0
    %1215 = vmatpush1.msra.mxu0 0.0
    %1216 = vmatprep.subr.mxu0 0.0
    %1217 = vmatpush1.msra.mxu0 0.0
    %1218 = vmatprep.subr.mxu0 0.0
    %1219 = vmatpush1.msra.mxu0 0.0
    %1220 = vmatprep.subr.mxu0 0.0
    %1221 = vmatpush1.msra.mxu0 0.0
    %1222 = vmatprep.subr.mxu0 0.0
    %1223 = vmatpush1.msra.mxu0 0.0
    %1224 = vmatprep.subr.mxu0 0.0
    %1225 = vmatpush1.msra.mxu0 0.0
    %1226 = vmatprep.subr.mxu0 0.0
    %1227 = vmatpush1.msra.mxu0 0.0
    %1228 = vmatprep.subr.mxu0 0.0
    %1229 = vmatpush1.msra.mxu0 0.0
    %1230 = vmatprep.mubr.f32.mxu0 0.0
    %1231 = vmatmul.mubr.f32.gmra.mrb[0].mxu0 %v1157
    %v1232 = vpop.f32.mrb[0].mxu0
    %v1233 = vadd.f32 %v1154, %v1232
    %v1234 = vpop.f32.mrb[0].mxu0
    %1235 = vmatprep.mubr.f32.mxu0 0.0
    %1236 = vmatmul.mubr.f32.gmra.mrb[0].mxu0 %v1160
    %v1237 = vpop.f32.mrb[0].mxu0
    %v1238 = vadd.f32 %v1154, %v1237
    %v1239 = vpop.f32.mrb[0].mxu0
    %1240 = vdwg.mxu0
    %1243 = vrot.lane.b32.xlu0 %v1233, 16
    %v1244 = vpop.permute.xlu0 %1243
    %1245 = vrot.lane.b32.xlu0 %v1238, 16
    %v1246 = vpop.permute.xlu0 %1245
    %v1249 = vadd.f32 %v1148, %v1244
    %v1250 = vadd.f32 %v1149, %v1246
    %1252 = vrot.lane.b32.xlu0 %v1148, 112
    %v1253 = vpop.permute.xlu0 %1252
    %1255 = vst.msk [vmem:[#allocation4] sm:$0xff] %vm450, %v1253
    %1256 = vst.msk [vmem:[#allocation6] sm:$0xff] %vm450, %v1233
    %1258 = vrot.lane.b32.xlu0 %v1249, 112
    %v1259 = vpop.permute.xlu0 %1258
    %1261 = vst.msk [vmem:[#allocation2] sm:$0xff] %vm450, %v1259
    %1263 = vrot.lane.b32.xlu0 %v1149, 112
    %v1264 = vpop.permute.xlu0 %1263
    %s1266 = scalar_lea.vmem [#allocation4], 32
    %1267 = vst.msk [vmem:[%s1266] sm:$0xff] %vm450, %v1264
    %s1268 = scalar_lea.vmem [#allocation6], 32
    %1269 = vst.msk [vmem:[%s1268] sm:$0xff] %vm450, %v1238
    %1271 = vrot.lane.b32.xlu0 %v1250, 112
    %v1272 = vpop.permute.xlu0 %1271
    %s1274 = scalar_lea.vmem [#allocation2], 32
    %1275 = vst.msk [vmem:[%s1274] sm:$0xff] %vm450, %v1272
    %s1276 = scalar_lea.vmem %s0, 16
    %v1277 = vld [vmem:[%s1276] sm:$0xff]
    %v1278 = vld [vmem:[%s1276 + $0x8] sm:$0xff]
    %s1279 = scalar_lea.vmem %s2, 8
    %v1280 = vld [vmem:[%s1279] sm:$0xff]
    %s1281 = scalar_lea.vmem %s3, 16
    %v1282 = vld [vmem:[%s1281] sm:$0xff]
    %v1283 = vld [vmem:[%s1281 + $0x8] sm:$0xff]
    %v1285 = vsel %vm61, %v1280, 0
    %1287 = vmatprep.subr.mxu0 0.0
    %1288 = vmatpush1.xpose.msra.mxu0 %v1285
    %1289 = vmatprep.subr.mxu0 0.0
    %1290 = vmatpush1.xpose.msra.mxu0 0.0
    %1291 = vmatprep.subr.mxu0 0.0
    %1292 = vmatpush1.xpose.msra.mxu0 0.0
    %1293 = vmatprep.subr.mxu0 0.0
    %1294 = vmatpush1.xpose.msra.mxu0 0.0
    %1295 = vmatprep.subr.mxu0 0.0
    %1296 = vmatpush1.xpose.msra.mxu0 0.0
    %1297 = vmatprep.subr.mxu0 0.0
    %1298 = vmatpush1.xpose.msra.mxu0 0.0
    %1299 = vmatprep.subr.mxu0 0.0
    %1300 = vmatpush1.xpose.msra.mxu0 0.0
    %1301 = vmatprep.subr.mxu0 0.0
    %1302 = vmatpush1.xpose.msra.mxu0 0.0
    %1303 = vmatprep.subr.mxu0 0.0
    %1304 = vmatpush1.xpose.msra.mxu0 0.0
    %1305 = vmatprep.subr.mxu0 0.0
    %1306 = vmatpush1.xpose.msra.mxu0 0.0
    %1307 = vmatprep.subr.mxu0 0.0
    %1308 = vmatpush1.xpose.msra.mxu0 0.0
    %1309 = vmatprep.subr.mxu0 0.0
    %1310 = vmatpush1.xpose.msra.mxu0 0.0
    %1311 = vmatprep.subr.mxu0 0.0
    %1312 = vmatpush1.xpose.msra.mxu0 0.0
    %1313 = vmatprep.subr.mxu0 0.0
    %1314 = vmatpush1.xpose.msra.mxu0 0.0
    %1315 = vmatprep.subr.mxu0 0.0
    %1316 = vmatpush1.xpose.msra.mxu0 0.0
    %1317 = vmatprep.subr.mxu0 0.0
    %1318 = vmatpush1.xpose.msra.mxu0 0.0
    %1319 = vmatprep.subr.mxu0 0.0
    %1320 = vmatpush1.xpose.msra.mxu0 0.0
    %1321 = vmatprep.subr.mxu0 0.0
    %1322 = vmatpush1.xpose.msra.mxu0 0.0
    %1323 = vmatprep.subr.mxu0 0.0
    %1324 = vmatpush1.xpose.msra.mxu0 0.0
    %1325 = vmatprep.subr.mxu0 0.0
    %1326 = vmatpush1.xpose.msra.mxu0 0.0
    %1327 = vmatprep.subr.mxu0 0.0
    %1328 = vmatpush1.xpose.msra.mxu0 0.0
    %1329 = vmatprep.subr.mxu0 0.0
    %1330 = vmatpush1.xpose.msra.mxu0 0.0
    %1331 = vmatprep.subr.mxu0 0.0
    %1332 = vmatpush1.xpose.msra.mxu0 0.0
    %1333 = vmatprep.subr.mxu0 0.0
    %1334 = vmatpush1.xpose.msra.mxu0 0.0
    %1335 = vmatprep.subr.mxu0 0.0
    %1336 = vmatpush1.xpose.msra.mxu0 0.0
    %1337 = vmatprep.subr.mxu0 0.0
    %1338 = vmatpush1.xpose.msra.mxu0 0.0
    %1339 = vmatprep.subr.mxu0 0.0
    %1340 = vmatpush1.xpose.msra.mxu0 0.0
    %1341 = vmatprep.subr.mxu0 0.0
    %1342 = vmatpush1.xpose.msra.mxu0 0.0
    %1343 = vmatprep.subr.mxu0 0.0
    %1344 = vmatpush1.xpose.msra.mxu0 0.0
    %1345 = vmatprep.subr.mxu0 0.0
    %1346 = vmatpush1.xpose.msra.mxu0 0.0
    %1347 = vmatprep.subr.mxu0 0.0
    %1348 = vmatpush1.xpose.msra.mxu0 0.0
    %1349 = vmatprep.subr.mxu0 0.0
    %1350 = vmatpush1.xpose.msra.mxu0 0.0
    %1351 = vmatprep.mubr.f32.mxu0 0.0
    %1352 = vmatmul.mubr.f32.gmra.mrb[0].mxu0 %v1285
    %v1353 = vpop.f32.mrb[0].mxu0
    %v1354 = vadd.f32 0.0, %v1353
    %v1355 = vpop.f32.mrb[0].mxu0
    %1356 = vdwg.mxu0
    %v1357 = vmax.f32 %v1354, 0.0
    %v1358 = vsel %vm136, %v1357, -inf
    %1359 = vmax.xlane.f32.xlu0 %v1358
    %v1360 = vpop.xlane.xlu0 %1359
    %v1361 = vsub.f32 %v1357, %v1360
    %v1362 = vmul.f32 %v1361, 1.442695
    %v1363 = vpow.pop %v1362
    %v1364 = vsel %vm136, %v1363, 0.0
    %1365 = vadd.xlane.f32.xlu0 %v1364
    %v1366 = vpop.xlane.xlu0 %1365
    %v1367 = vrcp.pop %v1366
    %v1368 = vmul.f32 %v1363, %v1367
    %v1370 = vsel %vm136, %v1368, 0
    %1372 = vmatprep.subr.mxu0 0.0
    %1373 = vmatpush1.msra.mxu0 %v1277
    %1374 = vmatprep.subr.mxu0 0.0
    %1375 = vmatpush1.msra.mxu0 0.0
    %1376 = vmatprep.subr.mxu0 0.0
    %1377 = vmatpush1.msra.mxu0 0.0
    %1378 = vmatprep.subr.mxu0 0.0
    %1379 = vmatpush1.msra.mxu0 0.0
    %1380 = vmatprep.subr.mxu0 0.0
    %1381 = vmatpush1.msra.mxu0 0.0
    %1382 = vmatprep.subr.mxu0 0.0
    %1383 = vmatpush1.msra.mxu0 0.0
    %1384 = vmatprep.subr.mxu0 0.0
    %1385 = vmatpush1.msra.mxu0 0.0
    %1386 = vmatprep.subr.mxu0 0.0
    %1387 = vmatpush1.msra.mxu0 0.0
    %1388 = vmatprep.subr.mxu0 0.0
    %1389 = vmatpush1.msra.mxu0 0.0
    %1390 = vmatprep.subr.mxu0 0.0
    %1391 = vmatpush1.msra.mxu0 0.0
    %1392 = vmatprep.subr.mxu0 0.0
    %1393 = vmatpush1.msra.mxu0 0.0
    %1394 = vmatprep.subr.mxu0 0.0
    %1395 = vmatpush1.msra.mxu0 0.0
    %1396 = vmatprep.subr.mxu0 0.0
    %1397 = vmatpush1.msra.mxu0 0.0
    %1398 = vmatprep.subr.mxu0 0.0
    %1399 = vmatpush1.msra.mxu0 0.0
    %1400 = vmatprep.subr.mxu0 0.0
    %1401 = vmatpush1.msra.mxu0 0.0
    %1402 = vmatprep.subr.mxu0 0.0
    %1403 = vmatpush1.msra.mxu0 0.0
    %1404 = vmatprep.subr.mxu0 0.0
    %1405 = vmatpush1.msra.mxu0 0.0
    %1406 = vmatprep.subr.mxu0 0.0
    %1407 = vmatpush1.msra.mxu0 0.0
    %1408 = vmatprep.subr.mxu0 0.0
    %1409 = vmatpush1.msra.mxu0 0.0
    %1410 = vmatprep.subr.mxu0 0.0
    %1411 = vmatpush1.msra.mxu0 0.0
    %1412 = vmatprep.subr.mxu0 0.0
    %1413 = vmatpush1.msra.mxu0 0.0
    %1414 = vmatprep.subr.mxu0 0.0
    %1415 = vmatpush1.msra.mxu0 0.0
    %1416 = vmatprep.subr.mxu0 0.0
    %1417 = vmatpush1.msra.mxu0 0.0
    %1418 = vmatprep.subr.mxu0 0.0
    %1419 = vmatpush1.msra.mxu0 0.0
    %1420 = vmatprep.subr.mxu0 0.0
    %1421 = vmatpush1.msra.mxu0 0.0
    %1422 = vmatprep.subr.mxu0 0.0
    %1423 = vmatpush1.msra.mxu0 0.0
    %1424 = vmatprep.subr.mxu0 0.0
    %1425 = vmatpush1.msra.mxu0 0.0
    %1426 = vmatprep.subr.mxu0 0.0
    %1427 = vmatpush1.msra.mxu0 0.0
    %1428 = vmatprep.subr.mxu0 0.0
    %1429 = vmatpush1.msra.mxu0 0.0
    %1430 = vmatprep.subr.mxu0 0.0
    %1431 = vmatpush1.msra.mxu0 0.0
    %1432 = vmatprep.subr.mxu0 0.0
    %1433 = vmatpush1.msra.mxu0 0.0
    %1434 = vmatprep.subr.mxu0 0.0
    %1435 = vmatpush1.msra.mxu0 0.0
    %1436 = vmatprep.mubr.f32.mxu0 0.0
    %1437 = vmatmul.mubr.f32.gmra.mrb[0].mxu0 %v1370
    %v1438 = vpop.f32.mrb[0].mxu0
    %v1439 = vadd.f32 0.0, %v1438
    %v1440 = vpop.f32.mrb[0].mxu0
    %1441 = vdwg.mxu0
    %1442 = vmatprep.subr.mxu0 0.0
    %1443 = vmatpush1.msra.mxu0 %v1278
    %1444 = vmatprep.subr.mxu0 0.0
    %1445 = vmatpush1.msra.mxu0 0.0
    %1446 = vmatprep.subr.mxu0 0.0
    %1447 = vmatpush1.msra.mxu0 0.0
    %1448 = vmatprep.subr.mxu0 0.0
    %1449 = vmatpush1.msra.mxu0 0.0
    %1450 = vmatprep.subr.mxu0 0.0
    %1451 = vmatpush1.msra.mxu0 0.0
    %1452 = vmatprep.subr.mxu0 0.0
    %1453 = vmatpush1.msra.mxu0 0.0
    %1454 = vmatprep.subr.mxu0 0.0
    %1455 = vmatpush1.msra.mxu0 0.0
    %1456 = vmatprep.subr.mxu0 0.0
    %1457 = vmatpush1.msra.mxu0 0.0
    %1458 = vmatprep.subr.mxu0 0.0
    %1459 = vmatpush1.msra.mxu0 0.0
    %1460 = vmatprep.subr.mxu0 0.0
    %1461 = vmatpush1.msra.mxu0 0.0
    %1462 = vmatprep.subr.mxu0 0.0
    %1463 = vmatpush1.msra.mxu0 0.0
    %1464 = vmatprep.subr.mxu0 0.0
    %1465 = vmatpush1.msra.mxu0 0.0
    %1466 = vmatprep.subr.mxu0 0.0
    %1467 = vmatpush1.msra.mxu0 0.0
    %1468 = vmatprep.subr.mxu0 0.0
    %1469 = vmatpush1.msra.mxu0 0.0
    %1470 = vmatprep.subr.mxu0 0.0
    %1471 = vmatpush1.msra.mxu0 0.0
    %1472 = vmatprep.subr.mxu0 0.0
    %1473 = vmatpush1.msra.mxu0 0.0
    %1474 = vmatprep.subr.mxu0 0.0
    %1475 = vmatpush1.msra.mxu0 0.0
    %1476 = vmatprep.subr.mxu0 0.0
    %1477 = vmatpush1.msra.mxu0 0.0
    %1478 = vmatprep.subr.mxu0 0.0
    %1479 = vmatpush1.msra.mxu0 0.0
    %1480 = vmatprep.subr.mxu0 0.0
    %1481 = vmatpush1.msra.mxu0 0.0
    %1482 = vmatprep.subr.mxu0 0.0
    %1483 = vmatpush1.msra.mxu0 0.0
    %1484 = vmatprep.subr.mxu0 0.0
    %1485 = vmatpush1.msra.mxu0 0.0
    %1486 = vmatprep.subr.mxu0 0.0
    %1487 = vmatpush1.msra.mxu0 0.0
    %1488 = vmatprep.subr.mxu0 0.0
    %1489 = vmatpush1.msra.mxu0 0.0
    %1490 = vmatprep.subr.mxu0 0.0
    %1491 = vmatpush1.msra.mxu0 0.0
    %1492 = vmatprep.subr.mxu0 0.0
    %1493 = vmatpush1.msra.mxu0 0.0
    %1494 = vmatprep.subr.mxu0 0.0
    %1495 = vmatpush1.msra.mxu0 0.0
    %1496 = vmatprep.subr.mxu0 0.0
    %1497 = vmatpush1.msra.mxu0 0.0
    %1498 = vmatprep.subr.mxu0 0.0
    %1499 = vmatpush1.msra.mxu0 0.0
    %1500 = vmatprep.subr.mxu0 0.0
    %1501 = vmatpush1.msra.mxu0 0.0
    %1502 = vmatprep.subr.mxu0 0.0
    %1503 = vmatpush1.msra.mxu0 0.0
    %1504 = vmatprep.subr.mxu0 0.0
    %1505 = vmatpush1.msra.mxu0 0.0
    %1506 = vmatprep.mubr.f32.mxu0 0.0
    %1507 = vmatmul.mubr.f32.gmra.mrb[0].mxu0 %v1370
    %v1508 = vpop.f32.mrb[0].mxu0
    %v1509 = vadd.f32 0.0, %v1508
    %v1510 = vpop.f32.mrb[0].mxu0
    %1511 = vdwg.mxu0
    %1514 = vrot.lane.b32.xlu0 %v1439, 2
    %v1515 = vpop.permute.xlu0 %1514
    %1516 = vrot.lane.b32.xlu0 %v1509, 2
    %v1517 = vpop.permute.xlu0 %1516
    %v1520 = vsel %vm299, %v1277, %v1515
    %v1521 = vsel %vm299, %v1278, %v1517
    %1522 = vmatprep.subr.mxu0 0.0
    %1523 = vmatpush1.msra.mxu0 %v1253
    %1524 = vmatprep.subr.mxu0 0.0
    %1525 = vmatpush1.msra.mxu0 0.0
    %1526 = vmatprep.subr.mxu0 0.0
    %1527 = vmatpush1.msra.mxu0 0.0
    %1528 = vmatprep.subr.mxu0 0.0
    %1529 = vmatpush1.msra.mxu0 0.0
    %1530 = vmatprep.subr.mxu0 0.0
    %1531 = vmatpush1.msra.mxu0 0.0
    %1532 = vmatprep.subr.mxu0 0.0
    %1533 = vmatpush1.msra.mxu0 0.0
    %1534 = vmatprep.subr.mxu0 0.0
    %1535 = vmatpush1.msra.mxu0 0.0
    %1536 = vmatprep.subr.mxu0 0.0
    %1537 = vmatpush1.msra.mxu0 0.0
    %1538 = vmatprep.subr.mxu0 0.0
    %1539 = vmatpush1.msra.mxu0 0.0
    %1540 = vmatprep.subr.mxu0 0.0
    %1541 = vmatpush1.msra.mxu0 0.0
    %1542 = vmatprep.subr.mxu0 0.0
    %1543 = vmatpush1.msra.mxu0 0.0
    %1544 = vmatprep.subr.mxu0 0.0
    %1545 = vmatpush1.msra.mxu0 0.0
    %1546 = vmatprep.subr.mxu0 0.0
    %1547 = vmatpush1.msra.mxu0 0.0
    %1548 = vmatprep.subr.mxu0 0.0
    %1549 = vmatpush1.msra.mxu0 0.0
    %1550 = vmatprep.subr.mxu0 0.0
    %1551 = vmatpush1.msra.mxu0 0.0
    %1552 = vmatprep.subr.mxu0 0.0
    %1553 = vmatpush1.msra.mxu0 0.0
    %1554 = vmatprep.subr.mxu0 0.0
    %1555 = vmatpush1.msra.mxu0 0.0
    %1556 = vmatprep.subr.mxu0 0.0
    %1557 = vmatpush1.msra.mxu0 0.0
    %1558 = vmatprep.subr.mxu0 0.0
    %1559 = vmatpush1.msra.mxu0 0.0
    %1560 = vmatprep.subr.mxu0 0.0
    %1561 = vmatpush1.msra.mxu0 0.0
    %1562 = vmatprep.subr.mxu0 0.0
    %1563 = vmatpush1.msra.mxu0 0.0
    %1564 = vmatprep.subr.mxu0 0.0
    %1565 = vmatpush1.msra.mxu0 0.0
    %1566 = vmatprep.subr.mxu0 0.0
    %1567 = vmatpush1.msra.mxu0 0.0
    %1568 = vmatprep.subr.mxu0 0.0
    %1569 = vmatpush1.msra.mxu0 0.0
    %1570 = vmatprep.subr.mxu0 0.0
    %1571 = vmatpush1.msra.mxu0 0.0
    %1572 = vmatprep.subr.mxu0 0.0
    %1573 = vmatpush1.msra.mxu0 0.0
    %1574 = vmatprep.subr.mxu0 0.0
    %1575 = vmatpush1.msra.mxu0 0.0
    %1576 = vmatprep.subr.mxu0 0.0
    %1577 = vmatpush1.msra.mxu0 0.0
    %1578 = vmatprep.subr.mxu0 0.0
    %1579 = vmatpush1.msra.mxu0 0.0
    %1580 = vmatprep.subr.mxu0 0.0
    %1581 = vmatpush1.msra.mxu0 0.0
    %1582 = vmatprep.subr.mxu0 0.0
    %1583 = vmatpush1.msra.mxu0 0.0
    %1584 = vmatprep.subr.mxu0 0.0
    %1585 = vmatpush1.msra.mxu0 0.0
    %1586 = vmatprep.mubr.f32.mxu0 0.0
    %1587 = vmatmul.mubr.f32.gmra.mrb[0].mxu0 %v1370
    %v1588 = vpop.f32.mrb[0].mxu0
    %v1589 = vadd.f32 0.0, %v1588
    %v1590 = vpop.f32.mrb[0].mxu0
    %1591 = vdwg.mxu0
    %1592 = vmatprep.subr.mxu0 0.0
    %1593 = vmatpush1.msra.mxu0 %v1264
    %1594 = vmatprep.subr.mxu0 0.0
    %1595 = vmatpush1.msra.mxu0 0.0
    %1596 = vmatprep.subr.mxu0 0.0
    %1597 = vmatpush1.msra.mxu0 0.0
    %1598 = vmatprep.subr.mxu0 0.0
    %1599 = vmatpush1.msra.mxu0 0.0
    %1600 = vmatprep.subr.mxu0 0.0
    %1601 = vmatpush1.msra.mxu0 0.0
    %1602 = vmatprep.subr.mxu0 0.0
    %1603 = vmatpush1.msra.mxu0 0.0
    %1604 = vmatprep.subr.mxu0 0.0
    %1605 = vmatpush1.msra.mxu0 0.0
    %1606 = vmatprep.subr.mxu0 0.0
    %1607 = vmatpush1.msra.mxu0 0.0
    %1608 = vmatprep.subr.mxu0 0.0
    %1609 = vmatpush1.msra.mxu0 0.0
    %1610 = vmatprep.subr.mxu0 0.0
    %1611 = vmatpush1.msra.mxu0 0.0
    %1612 = vmatprep.subr.mxu0 0.0
    %1613 = vmatpush1.msra.mxu0 0.0
    %1614 = vmatprep.subr.mxu0 0.0
    %1615 = vmatpush1.msra.mxu0 0.0
    %1616 = vmatprep.subr.mxu0 0.0
    %1617 = vmatpush1.msra.mxu0 0.0
    %1618 = vmatprep.subr.mxu0 0.0
    %1619 = vmatpush1.msra.mxu0 0.0
    %1620 = vmatprep.subr.mxu0 0.0
    %1621 = vmatpush1.msra.mxu0 0.0
    %1622 = vmatprep.subr.mxu0 0.0
    %1623 = vmatpush1.msra.mxu0 0.0
    %1624 = vmatprep.subr.mxu0 0.0
    %1625 = vmatpush1.msra.mxu0 0.0
    %1626 = vmatprep.subr.mxu0 0.0
    %1627 = vmatpush1.msra.mxu0 0.0
    %1628 = vmatprep.subr.mxu0 0.0
    %1629 = vmatpush1.msra.mxu0 0.0
    %1630 = vmatprep.subr.mxu0 0.0
    %1631 = vmatpush1.msra.mxu0 0.0
    %1632 = vmatprep.subr.mxu0 0.0
    %1633 = vmatpush1.msra.mxu0 0.0
    %1634 = vmatprep.subr.mxu0 0.0
    %1635 = vmatpush1.msra.mxu0 0.0
    %1636 = vmatprep.subr.mxu0 0.0
    %1637 = vmatpush1.msra.mxu0 0.0
    %1638 = vmatprep.subr.mxu0 0.0
    %1639 = vmatpush1.msra.mxu0 0.0
    %1640 = vmatprep.subr.mxu0 0.0
    %1641 = vmatpush1.msra.mxu0 0.0
    %1642 = vmatprep.subr.mxu0 0.0
    %1643 = vmatpush1.msra.mxu0 0.0
    %1644 = vmatprep.subr.mxu0 0.0
    %1645 = vmatpush1.msra.mxu0 0.0
    %1646 = vmatprep.subr.mxu0 0.0
    %1647 = vmatpush1.msra.mxu0 0.0
    %1648 = vmatprep.subr.mxu0 0.0
    %1649 = vmatpush1.msra.mxu0 0.0
    %1650 = vmatprep.subr.mxu0 0.0
    %1651 = vmatpush1.msra.mxu0 0.0
    %1652 = vmatprep.subr.mxu0 0.0
    %1653 = vmatpush1.msra.mxu0 0.0
    %1654 = vmatprep.subr.mxu0 0.0
    %1655 = vmatpush1.msra.mxu0 0.0
    %1656 = vmatprep.mubr.f32.mxu0 0.0
    %1657 = vmatmul.mubr.f32.gmra.mrb[0].mxu0 %v1370
    %v1658 = vpop.f32.mrb[0].mxu0
    %v1659 = vadd.f32 0.0, %v1658
    %v1660 = vpop.f32.mrb[0].mxu0
    %1661 = vdwg.mxu0
    %1664 = vrot.lane.b32.xlu0 %v1589, 16
    %v1665 = vpop.permute.xlu0 %1664
    %1666 = vrot.lane.b32.xlu0 %v1659, 16
    %v1667 = vpop.permute.xlu0 %1666
    %v1670 = vsel %vm450, %v1253, %v1665
    %v1671 = vsel %vm450, %v1264, %v1667
    %v1673 = vsel %vm61, %v1520, 0
    %v1676 = vsel %vm61, %v1521, 0
    %1678 = vmatprep.subr.mxu0 %v464
    %1679 = vmatpush1.msra.mxu0 %v462
    %1680 = vmatprep.subr.mxu0 0.0
    %1681 = vmatpush1.msra.mxu0 0.0
    %1682 = vmatprep.subr.mxu0 0.0
    %1683 = vmatpush1.msra.mxu0 0.0
    %1684 = vmatprep.subr.mxu0 0.0
    %1685 = vmatpush1.msra.mxu0 0.0
    %1686 = vmatprep.subr.mxu0 0.0
    %1687 = vmatpush1.msra.mxu0 0.0
    %1688 = vmatprep.subr.mxu0 0.0
    %1689 = vmatpush1.msra.mxu0 0.0
    %1690 = vmatprep.subr.mxu0 0.0
    %1691 = vmatpush1.msra.mxu0 0.0
    %1692 = vmatprep.subr.mxu0 0.0
    %1693 = vmatpush1.msra.mxu0 0.0
    %1694 = vmatprep.subr.mxu0 0.0
    %1695 = vmatpush1.msra.mxu0 0.0
    %1696 = vmatprep.subr.mxu0 0.0
    %1697 = vmatpush1.msra.mxu0 0.0
    %1698 = vmatprep.subr.mxu0 0.0
    %1699 = vmatpush1.msra.mxu0 0.0
    %1700 = vmatprep.subr.mxu0 0.0
    %1701 = vmatpush1.msra.mxu0 0.0
    %1702 = vmatprep.subr.mxu0 0.0
    %1703 = vmatpush1.msra.mxu0 0.0
    %1704 = vmatprep.subr.mxu0 0.0
    %1705 = vmatpush1.msra.mxu0 0.0
    %1706 = vmatprep.subr.mxu0 0.0
    %1707 = vmatpush1.msra.mxu0 0.0
    %1708 = vmatprep.subr.mxu0 0.0
    %1709 = vmatpush1.msra.mxu0 0.0
    %1710 = vmatprep.subr.mxu0 0.0
    %1711 = vmatpush1.msra.mxu0 0.0
    %1712 = vmatprep.subr.mxu0 0.0
    %1713 = vmatpush1.msra.mxu0 0.0
    %1714 = vmatprep.subr.mxu0 0.0
    %1715 = vmatpush1.msra.mxu0 0.0
    %1716 = vmatprep.subr.mxu0 0.0
    %1717 = vmatpush1.msra.mxu0 0.0
    %1718 = vmatprep.subr.mxu0 0.0
    %1719 = vmatpush1.msra.mxu0 0.0
    %1720 = vmatprep.subr.mxu0 0.0
    %1721 = vmatpush1.msra.mxu0 0.0
    %1722 = vmatprep.subr.mxu0 0.0
    %1723 = vmatpush1.msra.mxu0 0.0
    %1724 = vmatprep.subr.mxu0 0.0
    %1725 = vmatpush1.msra.mxu0 0.0
    %1726 = vmatprep.subr.mxu0 0.0
    %1727 = vmatpush1.msra.mxu0 0.0
    %1728 = vmatprep.subr.mxu0 0.0
    %1729 = vmatpush1.msra.mxu0 0.0
    %1730 = vmatprep.subr.mxu0 0.0
    %1731 = vmatpush1.msra.mxu0 0.0
    %1732 = vmatprep.subr.mxu0 0.0
    %1733 = vmatpush1.msra.mxu0 0.0
    %1734 = vmatprep.subr.mxu0 0.0
    %1735 = vmatpush1.msra.mxu0 0.0
    %1736 = vmatprep.subr.mxu0 0.0
    %1737 = vmatpush1.msra.mxu0 0.0
    %1738 = vmatprep.subr.mxu0 0.0
    %1739 = vmatpush1.msra.mxu0 0.0
    %1740 = vmatprep.subr.mxu0 0.0
    %1741 = vmatpush1.msra.mxu0 0.0
    %1742 = vmatprep.mubr.f32.mxu0 0.0
    %1743 = vmatmul.mubr.f32.gmra.mrb[0].mxu0 %v1673
    %v1744 = vpop.f32.mrb[0].mxu0
    %v1745 = vadd.f32 0.0, %v1744
    %v1746 = vpop.f32.mrb[0].mxu0
    %v1747 = vadd.f32 0.0, %v1746
    %1748 = vmatprep.mubr.f32.mxu0 0.0
    %1749 = vmatmul.mubr.f32.gmra.mrb[0].mxu0 %v1676
    %v1750 = vpop.f32.mrb[0].mxu0
    %v1751 = vadd.f32 0.0, %v1750
    %v1752 = vpop.f32.mrb[0].mxu0
    %v1753 = vadd.f32 0.0, %v1752
    %1754 = vdwg.mxu0
    %v1756 = vsel %vm543, %v1670, 0
    %v1759 = vsel %vm543, %v1671, 0
    %1761 = vmatprep.subr.mxu0 0.0
    %1762 = vmatpush1.msra.mxu0 %v43
    %1763 = vmatprep.subr.mxu0 0.0
    %1764 = vmatpush1.msra.mxu0 %v44
    %1765 = vmatprep.subr.mxu0 0.0
    %1766 = vmatpush1.msra.mxu0 %v45
    %1767 = vmatprep.subr.mxu0 0.0
    %1768 = vmatpush1.msra.mxu0 %v46
    %1769 = vmatprep.subr.mxu0 0.0
    %1770 = vmatpush1.msra.mxu0 0.0
    %1771 = vmatprep.subr.mxu0 0.0
    %1772 = vmatpush1.msra.mxu0 0.0
    %1773 = vmatprep.subr.mxu0 0.0
    %1774 = vmatpush1.msra.mxu0 0.0
    %1775 = vmatprep.subr.mxu0 0.0
    %1776 = vmatpush1.msra.mxu0 0.0
    %1777 = vmatprep.subr.mxu0 0.0
    %1778 = vmatpush1.msra.mxu0 0.0
    %1779 = vmatprep.subr.mxu0 0.0
    %1780 = vmatpush1.msra.mxu0 0.0
    %1781 = vmatprep.subr.mxu0 0.0
    %1782 = vmatpush1.msra.mxu0 0.0
    %1783 = vmatprep.subr.mxu0 0.0
    %1784 = vmatpush1.msra.mxu0 0.0
    %1785 = vmatprep.subr.mxu0 0.0
    %1786 = vmatpush1.msra.mxu0 0.0
    %1787 = vmatprep.subr.mxu0 0.0
    %1788 = vmatpush1.msra.mxu0 0.0
    %1789 = vmatprep.subr.mxu0 0.0
    %1790 = vmatpush1.msra.mxu0 0.0
    %1791 = vmatprep.subr.mxu0 0.0
    %1792 = vmatpush1.msra.mxu0 0.0
    %1793 = vmatprep.subr.mxu0 0.0
    %1794 = vmatpush1.msra.mxu0 0.0
    %1795 = vmatprep.subr.mxu0 0.0
    %1796 = vmatpush1.msra.mxu0 0.0
    %1797 = vmatprep.subr.mxu0 0.0
    %1798 = vmatpush1.msra.mxu0 0.0
    %1799 = vmatprep.subr.mxu0 0.0
    %1800 = vmatpush1.msra.mxu0 0.0
    %1801 = vmatprep.subr.mxu0 0.0
    %1802 = vmatpush1.msra.mxu0 0.0
    %1803 = vmatprep.subr.mxu0 0.0
    %1804 = vmatpush1.msra.mxu0 0.0
    %1805 = vmatprep.subr.mxu0 0.0
    %1806 = vmatpush1.msra.mxu0 0.0
    %1807 = vmatprep.subr.mxu0 0.0
    %1808 = vmatpush1.msra.mxu0 0.0
    %1809 = vmatprep.subr.mxu0 0.0
    %1810 = vmatpush1.msra.mxu0 0.0
    %1811 = vmatprep.subr.mxu0 0.0
    %1812 = vmatpush1.msra.mxu0 0.0
    %1813 = vmatprep.subr.mxu0 0.0
    %1814 = vmatpush1.msra.mxu0 0.0
    %1815 = vmatprep.subr.mxu0 0.0
    %1816 = vmatpush1.msra.mxu0 0.0
    %1817 = vmatprep.subr.mxu0 0.0
    %1818 = vmatpush1.msra.mxu0 0.0
    %1819 = vmatprep.subr.mxu0 0.0
    %1820 = vmatpush1.msra.mxu0 0.0
    %1821 = vmatprep.subr.mxu0 0.0
    %1822 = vmatpush1.msra.mxu0 0.0
    %1823 = vmatprep.subr.mxu0 0.0
    %1824 = vmatpush1.msra.mxu0 0.0
    %1825 = vmatprep.mubr.f32.mxu0 0.0
    %1826 = vmatmul.mubr.f32.gmra.mrb[0].mxu0 %v1756
    %v1827 = vpop.f32.mrb[0].mxu0
    %v1828 = vadd.f32 0.0, %v1827
    %v1829 = vpop.f32.mrb[0].mxu0
    %1830 = vmatprep.mubr.f32.mxu0 0.0
    %1831 = vmatmul.mubr.f32.gmra.mrb[0].mxu0 %v1759
    %v1832 = vpop.f32.mrb[0].mxu0
    %v1833 = vadd.f32 0.0, %v1832
    %v1834 = vpop.f32.mrb[0].mxu0
    %1835 = vdwg.mxu0
    %v1837 = vsel %vm61, %v1282, 0
    %v1840 = vsel %vm61, %v1283, 0
    %1842 = vmatprep.subr.mxu0 0.0
    %1843 = vmatpush1.msra.mxu0 %v632
    %1844 = vmatprep.subr.mxu0 0.0
    %1845 = vmatpush1.msra.mxu0 0.0
    %1846 = vmatprep.subr.mxu0 0.0
    %1847 = vmatpush1.msra.mxu0 0.0
    %1848 = vmatprep.subr.mxu0 0.0
    %1849 = vmatpush1.msra.mxu0 0.0
    %1850 = vmatprep.subr.mxu0 0.0
    %1851 = vmatpush1.msra.mxu0 0.0
    %1852 = vmatprep.subr.mxu0 0.0
    %1853 = vmatpush1.msra.mxu0 0.0
    %1854 = vmatprep.subr.mxu0 0.0
    %1855 = vmatpush1.msra.mxu0 0.0
    %1856 = vmatprep.subr.mxu0 0.0
    %1857 = vmatpush1.msra.mxu0 0.0
    %1858 = vmatprep.subr.mxu0 0.0
    %1859 = vmatpush1.msra.mxu0 0.0
    %1860 = vmatprep.subr.mxu0 0.0
    %1861 = vmatpush1.msra.mxu0 0.0
    %1862 = vmatprep.subr.mxu0 0.0
    %1863 = vmatpush1.msra.mxu0 0.0
    %1864 = vmatprep.subr.mxu0 0.0
    %1865 = vmatpush1.msra.mxu0 0.0
    %1866 = vmatprep.subr.mxu0 0.0
    %1867 = vmatpush1.msra.mxu0 0.0
    %1868 = vmatprep.subr.mxu0 0.0
    %1869 = vmatpush1.msra.mxu0 0.0
    %1870 = vmatprep.subr.mxu0 0.0
    %1871 = vmatpush1.msra.mxu0 0.0
    %1872 = vmatprep.subr.mxu0 0.0
    %1873 = vmatpush1.msra.mxu0 0.0
    %1874 = vmatprep.subr.mxu0 0.0
    %1875 = vmatpush1.msra.mxu0 0.0
    %1876 = vmatprep.subr.mxu0 0.0
    %1877 = vmatpush1.msra.mxu0 0.0
    %1878 = vmatprep.subr.mxu0 0.0
    %1879 = vmatpush1.msra.mxu0 0.0
    %1880 = vmatprep.subr.mxu0 0.0
    %1881 = vmatpush1.msra.mxu0 0.0
    %1882 = vmatprep.subr.mxu0 0.0
    %1883 = vmatpush1.msra.mxu0 0.0
    %1884 = vmatprep.subr.mxu0 0.0
    %1885 = vmatpush1.msra.mxu0 0.0
    %1886 = vmatprep.subr.mxu0 0.0
    %1887 = vmatpush1.msra.mxu0 0.0
    %1888 = vmatprep.subr.mxu0 0.0
    %1889 = vmatpush1.msra.mxu0 0.0
    %1890 = vmatprep.subr.mxu0 0.0
    %1891 = vmatpush1.msra.mxu0 0.0
    %1892 = vmatprep.subr.mxu0 0.0
    %1893 = vmatpush1.msra.mxu0 0.0
    %1894 = vmatprep.subr.mxu0 0.0
    %1895 = vmatpush1.msra.mxu0 0.0
    %1896 = vmatprep.subr.mxu0 0.0
    %1897 = vmatpush1.msra.mxu0 0.0
    %1898 = vmatprep.subr.mxu0 0.0
    %1899 = vmatpush1.msra.mxu0 0.0
    %1900 = vmatprep.subr.mxu0 0.0
    %1901 = vmatpush1.msra.mxu0 0.0
    %1902 = vmatprep.subr.mxu0 0.0
    %1903 = vmatpush1.msra.mxu0 0.0
    %1904 = vmatprep.subr.mxu0 0.0
    %1905 = vmatpush1.msra.mxu0 0.0
    %1906 = vmatprep.mubr.f32.mxu0 0.0
    %1907 = vmatmul.mubr.f32.gmra.mrb[0].mxu0 %v1837
    %v1908 = vpop.f32.mrb[0].mxu0
    %v1909 = vadd.f32 0.0, %v1908
    %v1910 = vpop.f32.mrb[0].mxu0
    %1911 = vmatprep.mubr.f32.mxu0 0.0
    %1912 = vmatmul.mubr.f32.gmra.mrb[0].mxu0 %v1840
    %v1913 = vpop.f32.mrb[0].mxu0
    %v1914 = vadd.f32 0.0, %v1913
    %v1915 = vpop.f32.mrb[0].mxu0
    %1916 = vdwg.mxu0
    %1917 = vset.pattern.permute.xlu0 0
    %1918 = vperm.xlu0 %1917, %v1282
    %v1919 = vpop.permute.xlu0 %1918
    %1921 = vset.pattern.permute.xlu0 0
    %1922 = vperm.xlu0 %1921, %v1283
    %v1923 = vpop.permute.xlu0 %1922
    %v1925 = vmul.f32 %v1919, %v1745
    %v1926 = vmul.f32 %v1923, %v1751
    %1927 = vset.pattern.permute.xlu0 1
    %1928 = vperm.xlu0 %1927, %v1282
    %v1929 = vpop.permute.xlu0 %1928
    %1931 = vset.pattern.permute.xlu0 1
    %1932 = vperm.xlu0 %1931, %v1283
    %v1933 = vpop.permute.xlu0 %1932
    %v1935 = vmul.f32 %v1929, %v1745
    %v1936 = vmul.f32 %v1933, %v1751
    %1939 = vrot.lane.b32.xlu0 %v1935, 80
    %v1940 = vpop.permute.xlu0 %1939
    %1941 = vrot.lane.b32.xlu0 %v1936, 80
    %v1942 = vpop.permute.xlu0 %1941
    %v1945 = vadd.f32 %v1925, %v1940
    %v1946 = vadd.f32 %v1926, %v1942
    %1947 = vset.pattern.permute.xlu0 2
    %1948 = vperm.xlu0 %1947, %v1282
    %v1949 = vpop.permute.xlu0 %1948
    %1951 = vset.pattern.permute.xlu0 2
    %1952 = vperm.xlu0 %1951, %v1283
    %v1953 = vpop.permute.xlu0 %1952
    %v1955 = vmul.f32 %v1949, %v1745
    %v1956 = vmul.f32 %v1949, %v1747
    %v1957 = vmul.f32 %v1953, %v1751
    %v1958 = vmul.f32 %v1953, %v1753
    %1963 = vrot.lane.b32.xlu0 %v1955, 32
    %v1964 = vpop.permute.xlu0 %1963
    %1965 = vrot.lane.b32.xlu0 %v1956, 32
    %v1966 = vpop.permute.xlu0 %1965
    %1967 = vrot.lane.b32.xlu0 %v1957, 32
    %v1968 = vpop.permute.xlu0 %1967
    %1969 = vrot.lane.b32.xlu0 %v1958, 32
    %v1970 = vpop.permute.xlu0 %1969
    %v1971 = vsel %vm543, %v1964, %v1966
    %v1972 = vsel %vm543, %v1968, %v1970
    %v1975 = vadd.f32 %v1945, %v1971
    %v1976 = vadd.f32 %v1946, %v1972
    %1977 = vset.pattern.permute.xlu0 3
    %1978 = vperm.xlu0 %1977, %v1282
    %v1979 = vpop.permute.xlu0 %1978
    %1981 = vset.pattern.permute.xlu0 3
    %1982 = vperm.xlu0 %1981, %v1283
    %v1983 = vpop.permute.xlu0 %1982
    %v1985 = vmul.f32 %v1979, %v1747
    %v1986 = vmul.f32 %v1983, %v1753
    %1989 = vrot.lane.b32.xlu0 %v1985, 112
    %v1990 = vpop.permute.xlu0 %1989
    %1991 = vrot.lane.b32.xlu0 %v1986, 112
    %v1992 = vpop.permute.xlu0 %1991
    %v1995 = vadd.f32 %v1975, %v1990
    %v1996 = vadd.f32 %v1976, %v1992
    %v1997 = vmul.f32 %v1919, %v1828
    %v1998 = vmul.f32 %v1923, %v1833
    %v1999 = vmul.f32 %v1929, %v1828
    %v2000 = vmul.f32 %v1933, %v1833
    %2003 = vrot.lane.b32.xlu0 %v1999, 96
    %v2004 = vpop.permute.xlu0 %2003
    %2005 = vrot.lane.b32.xlu0 %v2000, 96
    %v2006 = vpop.permute.xlu0 %2005
    %v2009 = vadd.f32 %v1997, %v2004
    %v2010 = vadd.f32 %v1998, %v2006
    %v2011 = vmul.f32 %v1949, %v1828
    %v2012 = vmul.f32 %v1953, %v1833
    %2015 = vrot.lane.b32.xlu0 %v2011, 64
    %v2016 = vpop.permute.xlu0 %2015
    %2017 = vrot.lane.b32.xlu0 %v2012, 64
    %v2018 = vpop.permute.xlu0 %2017
    %v2021 = vadd.f32 %v2009, %v2016
    %v2022 = vadd.f32 %v2010, %v2018
    %v2023 = vmul.f32 %v1979, %v1828
    %v2024 = vmul.f32 %v1983, %v1833
    %2027 = vrot.lane.b32.xlu0 %v2023, 32
    %v2028 = vpop.permute.xlu0 %2027
    %2029 = vrot.lane.b32.xlu0 %v2024, 32
    %v2030 = vpop.permute.xlu0 %2029
    %v2033 = vadd.f32 %v2021, %v2028
    %v2034 = vadd.f32 %v2022, %v2030
    %v2035 = vadd.f32 %v1995, %v2033
    %v2036 = vadd.f32 %v1996, %v2034
    %v2037 = vadd.f32 %v2035, %v1909
    %v2038 = vadd.f32 %v2036, %v1914
    %v2039 = vsub.f32 0.0, %v2037
    %v2040 = vsub.f32 0.0, %v2038
    %v2041 = vmul.f32 %v2039, 1.442695
    %v2042 = vpow.pop %v2041
    %v2043 = vmul.f32 %v2040, 1.442695
    %v2044 = vpow.pop %v2043
    %v2045 = vadd.f32 %v2042, 1.0
    %v2046 = vadd.f32 %v2044, 1.0
    %v2047 = vrcp.pop %v2045
    %v2048 = vrcp.pop %v2046
    %v2049 = vmul.f32 %v2047, %v1253
    %v2050 = vmul.f32 %v2048, %v1264
    %2051 = vmatprep.subr.mxu0 0.0
    %2052 = vmatpush1.msra.mxu0 %v2049
    %2053 = vmatprep.subr.mxu0 0.0
    %2054 = vmatpush1.msra.mxu0 0.0
    %2055 = vmatprep.subr.mxu0 0.0
    %2056 = vmatpush1.msra.mxu0 0.0
    %2057 = vmatprep.subr.mxu0 0.0
    %2058 = vmatpush1.msra.mxu0 0.0
    %2059 = vmatprep.subr.mxu0 0.0
    %2060 = vmatpush1.msra.mxu0 0.0
    %2061 = vmatprep.subr.mxu0 0.0
    %2062 = vmatpush1.msra.mxu0 0.0
    %2063 = vmatprep.subr.mxu0 0.0
    %2064 = vmatpush1.msra.mxu0 0.0
    %2065 = vmatprep.subr.mxu0 0.0
    %2066 = vmatpush1.msra.mxu0 0.0
    %2067 = vmatprep.subr.mxu0 0.0
    %2068 = vmatpush1.msra.mxu0 0.0
    %2069 = vmatprep.subr.mxu0 0.0
    %2070 = vmatpush1.msra.mxu0 0.0
    %2071 = vmatprep.subr.mxu0 0.0
    %2072 = vmatpush1.msra.mxu0 0.0
    %2073 = vmatprep.subr.mxu0 0.0
    %2074 = vmatpush1.msra.mxu0 0.0
    %2075 = vmatprep.subr.mxu0 0.0
    %2076 = vmatpush1.msra.mxu0 0.0
    %2077 = vmatprep.subr.mxu0 0.0
    %2078 = vmatpush1.msra.mxu0 0.0
    %2079 = vmatprep.subr.mxu0 0.0
    %2080 = vmatpush1.msra.mxu0 0.0
    %2081 = vmatprep.subr.mxu0 0.0
    %2082 = vmatpush1.msra.mxu0 0.0
    %2083 = vmatprep.subr.mxu0 0.0
    %2084 = vmatpush1.msra.mxu0 0.0
    %2085 = vmatprep.subr.mxu0 0.0
    %2086 = vmatpush1.msra.mxu0 0.0
    %2087 = vmatprep.subr.mxu0 0.0
    %2088 = vmatpush1.msra.mxu0 0.0
    %2089 = vmatprep.subr.mxu0 0.0
    %2090 = vmatpush1.msra.mxu0 0.0
    %2091 = vmatprep.subr.mxu0 0.0
    %2092 = vmatpush1.msra.mxu0 0.0
    %2093 = vmatprep.subr.mxu0 0.0
    %2094 = vmatpush1.msra.mxu0 0.0
    %2095 = vmatprep.subr.mxu0 0.0
    %2096 = vmatpush1.msra.mxu0 0.0
    %2097 = vmatprep.subr.mxu0 0.0
    %2098 = vmatpush1.msra.mxu0 0.0
    %2099 = vmatprep.subr.mxu0 0.0
    %2100 = vmatpush1.msra.mxu0 0.0
    %2101 = vmatprep.subr.mxu0 0.0
    %2102 = vmatpush1.msra.mxu0 0.0
    %2103 = vmatprep.subr.mxu0 0.0
    %2104 = vmatpush1.msra.mxu0 0.0
    %2105 = vmatprep.subr.mxu0 0.0
    %2106 = vmatpush1.msra.mxu0 0.0
    %2107 = vmatprep.subr.mxu0 0.0
    %2108 = vmatpush1.msra.mxu0 0.0
    %2109 = vmatprep.subr.mxu0 0.0
    %2110 = vmatpush1.msra.mxu0 0.0
    %2111 = vmatprep.subr.mxu0 0.0
    %2112 = vmatpush1.msra.mxu0 0.0
    %2113 = vmatprep.subr.mxu0 0.0
    %2114 = vmatpush1.msra.mxu0 0.0
    %2115 = vmatprep.mubr.f32.mxu0 0.0
    %2116 = vmatmul.mubr.f32.gmra.mrb[0].mxu0 %v1370
    %v2117 = vpop.f32.mrb[0].mxu0
    %v2118 = vadd.f32 0.0, %v2117
    %v2119 = vpop.f32.mrb[0].mxu0
    %2120 = vdwg.mxu0
    %2121 = vmatprep.subr.mxu0 0.0
    %2122 = vmatpush1.msra.mxu0 %v2050
    %2123 = vmatprep.subr.mxu0 0.0
    %2124 = vmatpush1.msra.mxu0 0.0
    %2125 = vmatprep.subr.mxu0 0.0
    %2126 = vmatpush1.msra.mxu0 0.0
    %2127 = vmatprep.subr.mxu0 0.0
    %2128 = vmatpush1.msra.mxu0 0.0
    %2129 = vmatprep.subr.mxu0 0.0
    %2130 = vmatpush1.msra.mxu0 0.0
    %2131 = vmatprep.subr.mxu0 0.0
    %2132 = vmatpush1.msra.mxu0 0.0
    %2133 = vmatprep.subr.mxu0 0.0
    %2134 = vmatpush1.msra.mxu0 0.0
    %2135 = vmatprep.subr.mxu0 0.0
    %2136 = vmatpush1.msra.mxu0 0.0
    %2137 = vmatprep.subr.mxu0 0.0
    %2138 = vmatpush1.msra.mxu0 0.0
    %2139 = vmatprep.subr.mxu0 0.0
    %2140 = vmatpush1.msra.mxu0 0.0
    %2141 = vmatprep.subr.mxu0 0.0
    %2142 = vmatpush1.msra.mxu0 0.0
    %2143 = vmatprep.subr.mxu0 0.0
    %2144 = vmatpush1.msra.mxu0 0.0
    %2145 = vmatprep.subr.mxu0 0.0
    %2146 = vmatpush1.msra.mxu0 0.0
    %2147 = vmatprep.subr.mxu0 0.0
    %2148 = vmatpush1.msra.mxu0 0.0
    %2149 = vmatprep.subr.mxu0 0.0
    %2150 = vmatpush1.msra.mxu0 0.0
    %2151 = vmatprep.subr.mxu0 0.0
    %2152 = vmatpush1.msra.mxu0 0.0
    %2153 = vmatprep.subr.mxu0 0.0
    %2154 = vmatpush1.msra.mxu0 0.0
    %2155 = vmatprep.subr.mxu0 0.0
    %2156 = vmatpush1.msra.mxu0 0.0
    %2157 = vmatprep.subr.mxu0 0.0
    %2158 = vmatpush1.msra.mxu0 0.0
    %2159 = vmatprep.subr.mxu0 0.0
    %2160 = vmatpush1.msra.mxu0 0.0
    %2161 = vmatprep.subr.mxu0 0.0
    %2162 = vmatpush1.msra.mxu0 0.0
    %2163 = vmatprep.subr.mxu0 0.0
    %2164 = vmatpush1.msra.mxu0 0.0
    %2165 = vmatprep.subr.mxu0 0.0
    %2166 = vmatpush1.msra.mxu0 0.0
    %2167 = vmatprep.subr.mxu0 0.0
    %2168 = vmatpush1.msra.mxu0 0.0
    %2169 = vmatprep.subr.mxu0 0.0
    %2170 = vmatpush1.msra.mxu0 0.0
    %2171 = vmatprep.subr.mxu0 0.0
    %2172 = vmatpush1.msra.mxu0 0.0
    %2173 = vmatprep.subr.mxu0 0.0
    %2174 = vmatpush1.msra.mxu0 0.0
    %2175 = vmatprep.subr.mxu0 0.0
    %2176 = vmatpush1.msra.mxu0 0.0
    %2177 = vmatprep.subr.mxu0 0.0
    %2178 = vmatpush1.msra.mxu0 0.0
    %2179 = vmatprep.subr.mxu0 0.0
    %2180 = vmatpush1.msra.mxu0 0.0
    %2181 = vmatprep.subr.mxu0 0.0
    %2182 = vmatpush1.msra.mxu0 0.0
    %2183 = vmatprep.subr.mxu0 0.0
    %2184 = vmatpush1.msra.mxu0 0.0
    %2185 = vmatprep.mubr.f32.mxu0 0.0
    %2186 = vmatmul.mubr.f32.gmra.mrb[0].mxu0 %v1370
    %v2187 = vpop.f32.mrb[0].mxu0
    %v2188 = vadd.f32 0.0, %v2187
    %v2189 = vpop.f32.mrb[0].mxu0
    %2190 = vdwg.mxu0
    %2193 = vrot.lane.b32.xlu0 %v2118, 16
    %v2194 = vpop.permute.xlu0 %2193
    %2195 = vrot.lane.b32.xlu0 %v2188, 16
    %v2196 = vpop.permute.xlu0 %2195
    %v2199 = vsel %vm450, %v2049, %v2194
    %v2200 = vsel %vm450, %v2050, %v2196
    %v2202 = vsel %vm543, %v2199, 0
    %v2205 = vsel %vm543, %v2200, 0
    %2207 = vmatprep.subr.mxu0 0.0
    %2208 = vmatpush1.msra.mxu0 %v47
    %2209 = vmatprep.subr.mxu0 0.0
    %2210 = vmatpush1.msra.mxu0 %v48
    %2211 = vmatprep.subr.mxu0 0.0
    %2212 = vmatpush1.msra.mxu0 %v49
    %2213 = vmatprep.subr.mxu0 0.0
    %2214 = vmatpush1.msra.mxu0 %v50
    %2215 = vmatprep.subr.mxu0 0.0
    %2216 = vmatpush1.msra.mxu0 0.0
    %2217 = vmatprep.subr.mxu0 0.0
    %2218 = vmatpush1.msra.mxu0 0.0
    %2219 = vmatprep.subr.mxu0 0.0
    %2220 = vmatpush1.msra.mxu0 0.0
    %2221 = vmatprep.subr.mxu0 0.0
    %2222 = vmatpush1.msra.mxu0 0.0
    %2223 = vmatprep.subr.mxu0 0.0
    %2224 = vmatpush1.msra.mxu0 0.0
    %2225 = vmatprep.subr.mxu0 0.0
    %2226 = vmatpush1.msra.mxu0 0.0
    %2227 = vmatprep.subr.mxu0 0.0
    %2228 = vmatpush1.msra.mxu0 0.0
    %2229 = vmatprep.subr.mxu0 0.0
    %2230 = vmatpush1.msra.mxu0 0.0
    %2231 = vmatprep.subr.mxu0 0.0
    %2232 = vmatpush1.msra.mxu0 0.0
    %2233 = vmatprep.subr.mxu0 0.0
    %2234 = vmatpush1.msra.mxu0 0.0
    %2235 = vmatprep.subr.mxu0 0.0
    %2236 = vmatpush1.msra.mxu0 0.0
    %2237 = vmatprep.subr.mxu0 0.0
    %2238 = vmatpush1.msra.mxu0 0.0
    %2239 = vmatprep.subr.mxu0 0.0
    %2240 = vmatpush1.msra.mxu0 0.0
    %2241 = vmatprep.subr.mxu0 0.0
    %2242 = vmatpush1.msra.mxu0 0.0
    %2243 = vmatprep.subr.mxu0 0.0
    %2244 = vmatpush1.msra.mxu0 0.0
    %2245 = vmatprep.subr.mxu0 0.0
    %2246 = vmatpush1.msra.mxu0 0.0
    %2247 = vmatprep.subr.mxu0 0.0
    %2248 = vmatpush1.msra.mxu0 0.0
    %2249 = vmatprep.subr.mxu0 0.0
    %2250 = vmatpush1.msra.mxu0 0.0
    %2251 = vmatprep.subr.mxu0 0.0
    %2252 = vmatpush1.msra.mxu0 0.0
    %2253 = vmatprep.subr.mxu0 0.0
    %2254 = vmatpush1.msra.mxu0 0.0
    %2255 = vmatprep.subr.mxu0 0.0
    %2256 = vmatpush1.msra.mxu0 0.0
    %2257 = vmatprep.subr.mxu0 0.0
    %2258 = vmatpush1.msra.mxu0 0.0
    %2259 = vmatprep.subr.mxu0 0.0
    %2260 = vmatpush1.msra.mxu0 0.0
    %2261 = vmatprep.subr.mxu0 0.0
    %2262 = vmatpush1.msra.mxu0 0.0
    %2263 = vmatprep.subr.mxu0 0.0
    %2264 = vmatpush1.msra.mxu0 0.0
    %2265 = vmatprep.subr.mxu0 0.0
    %2266 = vmatpush1.msra.mxu0 0.0
    %2267 = vmatprep.subr.mxu0 0.0
    %2268 = vmatpush1.msra.mxu0 0.0
    %2269 = vmatprep.subr.mxu0 0.0
    %2270 = vmatpush1.msra.mxu0 0.0
    %2271 = vmatprep.mubr.f32.mxu0 0.0
    %2272 = vmatmul.mubr.f32.gmra.mrb[0].mxu0 %v2202
    %v2273 = vpop.f32.mrb[0].mxu0
    %v2274 = vadd.f32 0.0, %v2273
    %v2275 = vpop.f32.mrb[0].mxu0
    %2276 = vmatprep.mubr.f32.mxu0 0.0
    %2277 = vmatmul.mubr.f32.gmra.mrb[0].mxu0 %v2205
    %v2278 = vpop.f32.mrb[0].mxu0
    %v2279 = vadd.f32 0.0, %v2278
    %v2280 = vpop.f32.mrb[0].mxu0
    %2281 = vdwg.mxu0
    %v2282 = vmul.f32 %v1919, %v2274
    %v2283 = vmul.f32 %v1923, %v2279
    %v2284 = vmul.f32 %v1929, %v2274
    %v2285 = vmul.f32 %v1933, %v2279
    %2288 = vrot.lane.b32.xlu0 %v2284, 112
    %v2289 = vpop.permute.xlu0 %2288
    %2290 = vrot.lane.b32.xlu0 %v2285, 112
    %v2291 = vpop.permute.xlu0 %2290
    %v2294 = vadd.f32 %v2282, %v2289
    %v2295 = vadd.f32 %v2283, %v2291
    %v2296 = vmul.f32 %v1949, %v2274
    %v2297 = vmul.f32 %v1953, %v2279
    %2300 = vrot.lane.b32.xlu0 %v2296, 96
    %v2301 = vpop.permute.xlu0 %2300
    %2302 = vrot.lane.b32.xlu0 %v2297, 96
    %v2303 = vpop.permute.xlu0 %2302
    %v2306 = vadd.f32 %v2294, %v2301
    %v2307 = vadd.f32 %v2295, %v2303
    %v2308 = vmul.f32 %v1979, %v2274
    %v2309 = vmul.f32 %v1983, %v2279
    %2312 = vrot.lane.b32.xlu0 %v2308, 80
    %v2313 = vpop.permute.xlu0 %2312
    %2314 = vrot.lane.b32.xlu0 %v2309, 80
    %v2315 = vpop.permute.xlu0 %2314
    %v2318 = vadd.f32 %v2306, %v2313
    %v2319 = vadd.f32 %v2307, %v2315
    %2322 = vrot.lane.b32.xlu0 %v2318, 32
    %v2323 = vpop.permute.xlu0 %2322
    %2324 = vrot.lane.b32.xlu0 %v2319, 32
    %v2325 = vpop.permute.xlu0 %2324
    %v2328 = vadd.f32 %v1995, %v2323
    %v2329 = vadd.f32 %v1996, %v2325
    %v2330 = vadd.f32 %v2328, %v1909
    %v2331 = vadd.f32 %v2329, %v1914
    %v2332 = vtanh.pop %v2330
    %v2333 = vtanh.pop %v2331
    %v2334 = vmul.f32 %v2047, %v1148
    %v2335 = vmul.f32 %v2048, %v1149
    %v2336 = vsub.f32 1.0, %v2047
    %v2337 = vsub.f32 1.0, %v2048
    %2340 = vrot.lane.b32.xlu0 %v2332, 112
    %v2341 = vpop.permute.xlu0 %2340
    %2342 = vrot.lane.b32.xlu0 %v2333, 112
    %v2343 = vpop.permute.xlu0 %2342
    %v2346 = vmul.f32 %v2336, %v2341
    %v2347 = vmul.f32 %v2337, %v2343
    %v2348 = vadd.f32 %v2334, %v2346
    %v2349 = vadd.f32 %v2335, %v2347
    %v2351 = vsel %vm299, %v1277, 0
    %v2354 = vsel %vm299, %v1278, 0
    %2356 = vmatprep.subr.mxu0 0.0
    %2357 = vmatpush1.msra.mxu0 %v1164
    %2358 = vmatprep.subr.mxu0 0.0
    %2359 = vmatpush1.msra.mxu0 0.0
    %2360 = vmatprep.subr.mxu0 0.0
    %2361 = vmatpush1.msra.mxu0 0.0
    %2362 = vmatprep.subr.mxu0 0.0
    %2363 = vmatpush1.msra.mxu0 0.0
    %2364 = vmatprep.subr.mxu0 0.0
    %2365 = vmatpush1.msra.mxu0 0.0
    %2366 = vmatprep.subr.mxu0 0.0
    %2367 = vmatpush1.msra.mxu0 0.0
    %2368 = vmatprep.subr.mxu0 0.0
    %2369 = vmatpush1.msra.mxu0 0.0
    %2370 = vmatprep.subr.mxu0 0.0
    %2371 = vmatpush1.msra.mxu0 0.0
    %2372 = vmatprep.subr.mxu0 0.0
    %2373 = vmatpush1.msra.mxu0 0.0
    %2374 = vmatprep.subr.mxu0 0.0
    %2375 = vmatpush1.msra.mxu0 0.0
    %2376 = vmatprep.subr.mxu0 0.0
    %2377 = vmatpush1.msra.mxu0 0.0
    %2378 = vmatprep.subr.mxu0 0.0
    %2379 = vmatpush1.msra.mxu0 0.0
    %2380 = vmatprep.subr.mxu0 0.0
    %2381 = vmatpush1.msra.mxu0 0.0
    %2382 = vmatprep.subr.mxu0 0.0
    %2383 = vmatpush1.msra.mxu0 0.0
    %2384 = vmatprep.subr.mxu0 0.0
    %2385 = vmatpush1.msra.mxu0 0.0
    %2386 = vmatprep.subr.mxu0 0.0
    %2387 = vmatpush1.msra.mxu0 0.0
    %2388 = vmatprep.subr.mxu0 0.0
    %2389 = vmatpush1.msra.mxu0 0.0
    %2390 = vmatprep.subr.mxu0 0.0
    %2391 = vmatpush1.msra.mxu0 0.0
    %2392 = vmatprep.subr.mxu0 0.0
    %2393 = vmatpush1.msra.mxu0 0.0
    %2394 = vmatprep.subr.mxu0 0.0
    %2395 = vmatpush1.msra.mxu0 0.0
    %2396 = vmatprep.subr.mxu0 0.0
    %2397 = vmatpush1.msra.mxu0 0.0
    %2398 = vmatprep.subr.mxu0 0.0
    %2399 = vmatpush1.msra.mxu0 0.0
    %2400 = vmatprep.subr.mxu0 0.0
    %2401 = vmatpush1.msra.mxu0 0.0
    %2402 = vmatprep.subr.mxu0 0.0
    %2403 = vmatpush1.msra.mxu0 0.0
    %2404 = vmatprep.subr.mxu0 0.0
    %2405 = vmatpush1.msra.mxu0 0.0
    %2406 = vmatprep.subr.mxu0 0.0
    %2407 = vmatpush1.msra.mxu0 0.0
    %2408 = vmatprep.subr.mxu0 0.0
    %2409 = vmatpush1.msra.mxu0 0.0
    %2410 = vmatprep.subr.mxu0 0.0
    %2411 = vmatpush1.msra.mxu0 0.0
    %2412 = vmatprep.subr.mxu0 0.0
    %2413 = vmatpush1.msra.mxu0 0.0
    %2414 = vmatprep.subr.mxu0 0.0
    %2415 = vmatpush1.msra.mxu0 0.0
    %2416 = vmatprep.subr.mxu0 0.0
    %2417 = vmatpush1.msra.mxu0 0.0
    %2418 = vmatprep.subr.mxu0 0.0
    %2419 = vmatpush1.msra.mxu0 0.0
    %2420 = vmatprep.mubr.f32.mxu0 0.0
    %2421 = vmatmul.mubr.f32.gmra.mrb[0].mxu0 %v2351
    %v2422 = vpop.f32.mrb[0].mxu0
    %v2423 = vadd.f32 %v1154, %v2422
    %v2424 = vpop.f32.mrb[0].mxu0
    %2425 = vmatprep.mubr.f32.mxu0 0.0
    %2426 = vmatmul.mubr.f32.gmra.mrb[0].mxu0 %v2354
    %v2427 = vpop.f32.mrb[0].mxu0
    %v2428 = vadd.f32 %v1154, %v2427
    %v2429 = vpop.f32.mrb[0].mxu0
    %2430 = vdwg.mxu0
    %2433 = vrot.lane.b32.xlu0 %v2423, 16
    %v2434 = vpop.permute.xlu0 %2433
    %2435 = vrot.lane.b32.xlu0 %v2428, 16
    %v2436 = vpop.permute.xlu0 %2435
    %v2439 = vadd.f32 %v2348, %v2434
    %v2440 = vadd.f32 %v2349, %v2436
    %2442 = vrot.lane.b32.xlu0 %v2348, 112
    %v2443 = vpop.permute.xlu0 %2442
    %s2445 = scalar_lea.vmem [#allocation4], 8
    %2446 = vst.msk [vmem:[%s2445] sm:$0xff] %vm450, %v2443
    %s2447 = scalar_lea.vmem [#allocation6], 8
    %2448 = vst.msk [vmem:[%s2447] sm:$0xff] %vm450, %v2423
    %2450 = vrot.lane.b32.xlu0 %v2439, 112
    %v2451 = vpop.permute.xlu0 %2450
    %s2453 = scalar_lea.vmem [#allocation2], 8
    %2454 = vst.msk [vmem:[%s2453] sm:$0xff] %vm450, %v2451
    %2456 = vrot.lane.b32.xlu0 %v2349, 112
    %v2457 = vpop.permute.xlu0 %2456
    %s2459 = scalar_lea.vmem [#allocation4], 40
    %2460 = vst.msk [vmem:[%s2459] sm:$0xff] %vm450, %v2457
    %s2461 = scalar_lea.vmem [#allocation6], 40
    %2462 = vst.msk [vmem:[%s2461] sm:$0xff] %vm450, %v2428
    %2464 = vrot.lane.b32.xlu0 %v2440, 112
    %v2465 = vpop.permute.xlu0 %2464
    %s2467 = scalar_lea.vmem [#allocation2], 40
    %2468 = vst.msk [vmem:[%s2467] sm:$0xff] %vm450, %v2465
    %s2469 = scalar_lea.vmem %s0, 32
    %v2470 = vld [vmem:[%s2469] sm:$0xff]
    %v2471 = vld [vmem:[%s2469 + $0x8] sm:$0xff]
    %s2472 = scalar_lea.vmem %s2, 16
    %v2473 = vld [vmem:[%s2472] sm:$0xff]
    %s2474 = scalar_lea.vmem %s3, 32
    %v2475 = vld [vmem:[%s2474] sm:$0xff]
    %v2476 = vld [vmem:[%s2474 + $0x8] sm:$0xff]
    %v2478 = vsel %vm61, %v2473, 0
    %2480 = vmatprep.subr.mxu0 0.0
    %2481 = vmatpush1.xpose.msra.mxu0 %v2478
    %2482 = vmatprep.subr.mxu0 0.0
    %2483 = vmatpush1.xpose.msra.mxu0 0.0
    %2484 = vmatprep.subr.mxu0 0.0
    %2485 = vmatpush1.xpose.msra.mxu0 0.0
    %2486 = vmatprep.subr.mxu0 0.0
    %2487 = vmatpush1.xpose.msra.mxu0 0.0
    %2488 = vmatprep.subr.mxu0 0.0
    %2489 = vmatpush1.xpose.msra.mxu0 0.0
    %2490 = vmatprep.subr.mxu0 0.0
    %2491 = vmatpush1.xpose.msra.mxu0 0.0
    %2492 = vmatprep.subr.mxu0 0.0
    %2493 = vmatpush1.xpose.msra.mxu0 0.0
    %2494 = vmatprep.subr.mxu0 0.0
    %2495 = vmatpush1.xpose.msra.mxu0 0.0
    %2496 = vmatprep.subr.mxu0 0.0
    %2497 = vmatpush1.xpose.msra.mxu0 0.0
    %2498 = vmatprep.subr.mxu0 0.0
    %2499 = vmatpush1.xpose.msra.mxu0 0.0
    %2500 = vmatprep.subr.mxu0 0.0
    %2501 = vmatpush1.xpose.msra.mxu0 0.0
    %2502 = vmatprep.subr.mxu0 0.0
    %2503 = vmatpush1.xpose.msra.mxu0 0.0
    %2504 = vmatprep.subr.mxu0 0.0
    %2505 = vmatpush1.xpose.msra.mxu0 0.0
    %2506 = vmatprep.subr.mxu0 0.0
    %2507 = vmatpush1.xpose.msra.mxu0 0.0
    %2508 = vmatprep.subr.mxu0 0.0
    %2509 = vmatpush1.xpose.msra.mxu0 0.0
    %2510 = vmatprep.subr.mxu0 0.0
    %2511 = vmatpush1.xpose.msra.mxu0 0.0
    %2512 = vmatprep.subr.mxu0 0.0
    %2513 = vmatpush1.xpose.msra.mxu0 0.0
    %2514 = vmatprep.subr.mxu0 0.0
    %2515 = vmatpush1.xpose.msra.mxu0 0.0
    %2516 = vmatprep.subr.mxu0 0.0
    %2517 = vmatpush1.xpose.msra.mxu0 0.0
    %2518 = vmatprep.subr.mxu0 0.0
    %2519 = vmatpush1.xpose.msra.mxu0 0.0
    %2520 = vmatprep.subr.mxu0 0.0
    %2521 = vmatpush1.xpose.msra.mxu0 0.0
    %2522 = vmatprep.subr.mxu0 0.0
    %2523 = vmatpush1.xpose.msra.mxu0 0.0
    %2524 = vmatprep.subr.mxu0 0.0
    %2525 = vmatpush1.xpose.msra.mxu0 0.0
    %2526 = vmatprep.subr.mxu0 0.0
    %2527 = vmatpush1.xpose.msra.mxu0 0.0
    %2528 = vmatprep.subr.mxu0 0.0
    %2529 = vmatpush1.xpose.msra.mxu0 0.0
    %2530 = vmatprep.subr.mxu0 0.0
    %2531 = vmatpush1.xpose.msra.mxu0 0.0
    %2532 = vmatprep.subr.mxu0 0.0
    %2533 = vmatpush1.xpose.msra.mxu0 0.0
    %2534 = vmatprep.subr.mxu0 0.0
    %2535 = vmatpush1.xpose.msra.mxu0 0.0
    %2536 = vmatprep.subr.mxu0 0.0
    %2537 = vmatpush1.xpose.msra.mxu0 0.0
    %2538 = vmatprep.subr.mxu0 0.0
    %2539 = vmatpush1.xpose.msra.mxu0 0.0
    %2540 = vmatprep.subr.mxu0 0.0
    %2541 = vmatpush1.xpose.msra.mxu0 0.0
    %2542 = vmatprep.subr.mxu0 0.0
    %2543 = vmatpush1.xpose.msra.mxu0 0.0
    %2544 = vmatprep.mubr.f32.mxu0 0.0
    %2545 = vmatmul.mubr.f32.gmra.mrb[0].mxu0 %v2478
    %v2546 = vpop.f32.mrb[0].mxu0
    %v2547 = vadd.f32 0.0, %v2546
    %v2548 = vpop.f32.mrb[0].mxu0
    %2549 = vdwg.mxu0
    %v2550 = vmax.f32 %v2547, 0.0
    %v2551 = vsel %vm136, %v2550, -inf
    %2552 = vmax.xlane.f32.xlu0 %v2551
    %v2553 = vpop.xlane.xlu0 %2552
    %v2554 = vsub.f32 %v2550, %v2553
    %v2555 = vmul.f32 %v2554, 1.442695
    %v2556 = vpow.pop %v2555
    %v2557 = vsel %vm136, %v2556, 0.0
    %2558 = vadd.xlane.f32.xlu0 %v2557
    %v2559 = vpop.xlane.xlu0 %2558
    %v2560 = vrcp.pop %v2559
    %v2561 = vmul.f32 %v2556, %v2560
    %v2563 = vsel %vm136, %v2561, 0
    %2565 = vmatprep.subr.mxu0 0.0
    %2566 = vmatpush1.msra.mxu0 %v2470
    %2567 = vmatprep.subr.mxu0 0.0
    %2568 = vmatpush1.msra.mxu0 0.0
    %2569 = vmatprep.subr.mxu0 0.0
    %2570 = vmatpush1.msra.mxu0 0.0
    %2571 = vmatprep.subr.mxu0 0.0
    %2572 = vmatpush1.msra.mxu0 0.0
    %2573 = vmatprep.subr.mxu0 0.0
    %2574 = vmatpush1.msra.mxu0 0.0
    %2575 = vmatprep.subr.mxu0 0.0
    %2576 = vmatpush1.msra.mxu0 0.0
    %2577 = vmatprep.subr.mxu0 0.0
    %2578 = vmatpush1.msra.mxu0 0.0
    %2579 = vmatprep.subr.mxu0 0.0
    %2580 = vmatpush1.msra.mxu0 0.0
    %2581 = vmatprep.subr.mxu0 0.0
    %2582 = vmatpush1.msra.mxu0 0.0
    %2583 = vmatprep.subr.mxu0 0.0
    %2584 = vmatpush1.msra.mxu0 0.0
    %2585 = vmatprep.subr.mxu0 0.0
    %2586 = vmatpush1.msra.mxu0 0.0
    %2587 = vmatprep.subr.mxu0 0.0
    %2588 = vmatpush1.msra.mxu0 0.0
    %2589 = vmatprep.subr.mxu0 0.0
    %2590 = vmatpush1.msra.mxu0 0.0
    %2591 = vmatprep.subr.mxu0 0.0
    %2592 = vmatpush1.msra.mxu0 0.0
    %2593 = vmatprep.subr.mxu0 0.0
    %2594 = vmatpush1.msra.mxu0 0.0
    %2595 = vmatprep.subr.mxu0 0.0
    %2596 = vmatpush1.msra.mxu0 0.0
    %2597 = vmatprep.subr.mxu0 0.0
    %2598 = vmatpush1.msra.mxu0 0.0
    %2599 = vmatprep.subr.mxu0 0.0
    %2600 = vmatpush1.msra.mxu0 0.0
    %2601 = vmatprep.subr.mxu0 0.0
    %2602 = vmatpush1.msra.mxu0 0.0
    %2603 = vmatprep.subr.mxu0 0.0
    %2604 = vmatpush1.msra.mxu0 0.0
    %2605 = vmatprep.subr.mxu0 0.0
    %2606 = vmatpush1.msra.mxu0 0.0
    %2607 = vmatprep.subr.mxu0 0.0
    %2608 = vmatpush1.msra.mxu0 0.0
    %2609 = vmatprep.subr.mxu0 0.0
    %2610 = vmatpush1.msra.mxu0 0.0
    %2611 = vmatprep.subr.mxu0 0.0
    %2612 = vmatpush1.msra.mxu0 0.0
    %2613 = vmatprep.subr.mxu0 0.0
    %2614 = vmatpush1.msra.mxu0 0.0
    %2615 = vmatprep.subr.mxu0 0.0
    %2616 = vmatpush1.msra.mxu0 0.0
    %2617 = vmatprep.subr.mxu0 0.0
    %2618 = vmatpush1.msra.mxu0 0.0
    %2619 = vmatprep.subr.mxu0 0.0
    %2620 = vmatpush1.msra.mxu0 0.0
    %2621 = vmatprep.subr.mxu0 0.0
    %2622 = vmatpush1.msra.mxu0 0.0
    %2623 = vmatprep.subr.mxu0 0.0
    %2624 = vmatpush1.msra.mxu0 0.0
    %2625 = vmatprep.subr.mxu0 0.0
    %2626 = vmatpush1.msra.mxu0 0.0
    %2627 = vmatprep.subr.mxu0 0.0
    %2628 = vmatpush1.msra.mxu0 0.0
    %2629 = vmatprep.mubr.f32.mxu0 0.0
    %2630 = vmatmul.mubr.f32.gmra.mrb[0].mxu0 %v2563
    %v2631 = vpop.f32.mrb[0].mxu0
    %v2632 = vadd.f32 0.0, %v2631
    %v2633 = vpop.f32.mrb[0].mxu0
    %2634 = vdwg.mxu0
    %2635 = vmatprep.subr.mxu0 0.0
    %2636 = vmatpush1.msra.mxu0 %v2471
    %2637 = vmatprep.subr.mxu0 0.0
    %2638 = vmatpush1.msra.mxu0 0.0
    %2639 = vmatprep.subr.mxu0 0.0
    %2640 = vmatpush1.msra.mxu0 0.0
    %2641 = vmatprep.subr.mxu0 0.0
    %2642 = vmatpush1.msra.mxu0 0.0
    %2643 = vmatprep.subr.mxu0 0.0
    %2644 = vmatpush1.msra.mxu0 0.0
    %2645 = vmatprep.subr.mxu0 0.0
    %2646 = vmatpush1.msra.mxu0 0.0
    %2647 = vmatprep.subr.mxu0 0.0
    %2648 = vmatpush1.msra.mxu0 0.0
    %2649 = vmatprep.subr.mxu0 0.0
    %2650 = vmatpush1.msra.mxu0 0.0
    %2651 = vmatprep.subr.mxu0 0.0
    %2652 = vmatpush1.msra.mxu0 0.0
    %2653 = vmatprep.subr.mxu0 0.0
    %2654 = vmatpush1.msra.mxu0 0.0
    %2655 = vmatprep.subr.mxu0 0.0
    %2656 = vmatpush1.msra.mxu0 0.0
    %2657 = vmatprep.subr.mxu0 0.0
    %2658 = vmatpush1.msra.mxu0 0.0
    %2659 = vmatprep.subr.mxu0 0.0
    %2660 = vmatpush1.msra.mxu0 0.0
    %2661 = vmatprep.subr.mxu0 0.0
    %2662 = vmatpush1.msra.mxu0 0.0
    %2663 = vmatprep.subr.mxu0 0.0
    %2664 = vmatpush1.msra.mxu0 0.0
    %2665 = vmatprep.subr.mxu0 0.0
    %2666 = vmatpush1.msra.mxu0 0.0
    %2667 = vmatprep.subr.mxu0 0.0
    %2668 = vmatpush1.msra.mxu0 0.0
    %2669 = vmatprep.subr.mxu0 0.0
    %2670 = vmatpush1.msra.mxu0 0.0
    %2671 = vmatprep.subr.mxu0 0.0
    %2672 = vmatpush1.msra.mxu0 0.0
    %2673 = vmatprep.subr.mxu0 0.0
    %2674 = vmatpush1.msra.mxu0 0.0
    %2675 = vmatprep.subr.mxu0 0.0
    %2676 = vmatpush1.msra.mxu0 0.0
    %2677 = vmatprep.subr.mxu0 0.0
    %2678 = vmatpush1.msra.mxu0 0.0
    %2679 = vmatprep.subr.mxu0 0.0
    %2680 = vmatpush1.msra.mxu0 0.0
    %2681 = vmatprep.subr.mxu0 0.0
    %2682 = vmatpush1.msra.mxu0 0.0
    %2683 = vmatprep.subr.mxu0 0.0
    %2684 = vmatpush1.msra.mxu0 0.0
    %2685 = vmatprep.subr.mxu0 0.0
    %2686 = vmatpush1.msra.mxu0 0.0
    %2687 = vmatprep.subr.mxu0 0.0
    %2688 = vmatpush1.msra.mxu0 0.0
    %2689 = vmatprep.subr.mxu0 0.0
    %2690 = vmatpush1.msra.mxu0 0.0
    %2691 = vmatprep.subr.mxu0 0.0
    %2692 = vmatpush1.msra.mxu0 0.0
    %2693 = vmatprep.subr.mxu0 0.0
    %2694 = vmatpush1.msra.mxu0 0.0
    %2695 = vmatprep.subr.mxu0 0.0
    %2696 = vmatpush1.msra.mxu0 0.0
    %2697 = vmatprep.subr.mxu0 0.0
    %2698 = vmatpush1.msra.mxu0 0.0
    %2699 = vmatprep.mubr.f32.mxu0 0.0
    %2700 = vmatmul.mubr.f32.gmra.mrb[0].mxu0 %v2563
    %v2701 = vpop.f32.mrb[0].mxu0
    %v2702 = vadd.f32 0.0, %v2701
    %v2703 = vpop.f32.mrb[0].mxu0
    %2704 = vdwg.mxu0
    %2707 = vrot.lane.b32.xlu0 %v2632, 2
    %v2708 = vpop.permute.xlu0 %2707
    %2709 = vrot.lane.b32.xlu0 %v2702, 2
    %v2710 = vpop.permute.xlu0 %2709
    %v2713 = vsel %vm299, %v2470, %v2708
    %v2714 = vsel %vm299, %v2471, %v2710
    %2715 = vmatprep.subr.mxu0 0.0
    %2716 = vmatpush1.msra.mxu0 %v2443
    %2717 = vmatprep.subr.mxu0 0.0
    %2718 = vmatpush1.msra.mxu0 0.0
    %2719 = vmatprep.subr.mxu0 0.0
    %2720 = vmatpush1.msra.mxu0 0.0
    %2721 = vmatprep.subr.mxu0 0.0
    %2722 = vmatpush1.msra.mxu0 0.0
    %2723 = vmatprep.subr.mxu0 0.0
    %2724 = vmatpush1.msra.mxu0 0.0
    %2725 = vmatprep.subr.mxu0 0.0
    %2726 = vmatpush1.msra.mxu0 0.0
    %2727 = vmatprep.subr.mxu0 0.0
    %2728 = vmatpush1.msra.mxu0 0.0
    %2729 = vmatprep.subr.mxu0 0.0
    %2730 = vmatpush1.msra.mxu0 0.0
    %2731 = vmatprep.subr.mxu0 0.0
    %2732 = vmatpush1.msra.mxu0 0.0
    %2733 = vmatprep.subr.mxu0 0.0
    %2734 = vmatpush1.msra.mxu0 0.0
    %2735 = vmatprep.subr.mxu0 0.0
    %2736 = vmatpush1.msra.mxu0 0.0
    %2737 = vmatprep.subr.mxu0 0.0
    %2738 = vmatpush1.msra.mxu0 0.0
    %2739 = vmatprep.subr.mxu0 0.0
    %2740 = vmatpush1.msra.mxu0 0.0
    %2741 = vmatprep.subr.mxu0 0.0
    %2742 = vmatpush1.msra.mxu0 0.0
    %2743 = vmatprep.subr.mxu0 0.0
    %2744 = vmatpush1.msra.mxu0 0.0
    %2745 = vmatprep.subr.mxu0 0.0
    %2746 = vmatpush1.msra.mxu0 0.0
    %2747 = vmatprep.subr.mxu0 0.0
    %2748 = vmatpush1.msra.mxu0 0.0
    %2749 = vmatprep.subr.mxu0 0.0
    %2750 = vmatpush1.msra.mxu0 0.0
    %2751 = vmatprep.subr.mxu0 0.0
    %2752 = vmatpush1.msra.mxu0 0.0
    %2753 = vmatprep.subr.mxu0 0.0
    %2754 = vmatpush1.msra.mxu0 0.0
    %2755 = vmatprep.subr.mxu0 0.0
    %2756 = vmatpush1.msra.mxu0 0.0
    %2757 = vmatprep.subr.mxu0 0.0
    %2758 = vmatpush1.msra.mxu0 0.0
    %2759 = vmatprep.subr.mxu0 0.0
    %2760 = vmatpush1.msra.mxu0 0.0
    %2761 = vmatprep.subr.mxu0 0.0
    %2762 = vmatpush1.msra.mxu0 0.0
    %2763 = vmatprep.subr.mxu0 0.0
    %2764 = vmatpush1.msra.mxu0 0.0
    %2765 = vmatprep.subr.mxu0 0.0
    %2766 = vmatpush1.msra.mxu0 0.0
    %2767 = vmatprep.subr.mxu0 0.0
    %2768 = vmatpush1.msra.mxu0 0.0
    %2769 = vmatprep.subr.mxu0 0.0
    %2770 = vmatpush1.msra.mxu0 0.0
    %2771 = vmatprep.subr.mxu0 0.0
    %2772 = vmatpush1.msra.mxu0 0.0
    %2773 = vmatprep.subr.mxu0 0.0
    %2774 = vmatpush1.msra.mxu0 0.0
    %2775 = vmatprep.subr.mxu0 0.0
    %2776 = vmatpush1.msra.mxu0 0.0
    %2777 = vmatprep.subr.mxu0 0.0
    %2778 = vmatpush1.msra.mxu0 0.0
    %2779 = vmatprep.mubr.f32.mxu0 0.0
    %2780 = vmatmul.mubr.f32.gmra.mrb[0].mxu0 %v2563
    %v2781 = vpop.f32.mrb[0].mxu0
    %v2782 = vadd.f32 0.0, %v2781
    %v2783 = vpop.f32.mrb[0].mxu0
    %2784 = vdwg.mxu0
    %2785 = vmatprep.subr.mxu0 0.0
    %2786 = vmatpush1.msra.mxu0 %v2457
    %2787 = vmatprep.subr.mxu0 0.0
    %2788 = vmatpush1.msra.mxu0 0.0
    %2789 = vmatprep.subr.mxu0 0.0
    %2790 = vmatpush1.msra.mxu0 0.0
    %2791 = vmatprep.subr.mxu0 0.0
    %2792 = vmatpush1.msra.mxu0 0.0
    %2793 = vmatprep.subr.mxu0 0.0
    %2794 = vmatpush1.msra.mxu0 0.0
    %2795 = vmatprep.subr.mxu0 0.0
    %2796 = vmatpush1.msra.mxu0 0.0
    %2797 = vmatprep.subr.mxu0 0.0
    %2798 = vmatpush1.msra.mxu0 0.0
    %2799 = vmatprep.subr.mxu0 0.0
    %2800 = vmatpush1.msra.mxu0 0.0
    %2801 = vmatprep.subr.mxu0 0.0
    %2802 = vmatpush1.msra.mxu0 0.0
    %2803 = vmatprep.subr.mxu0 0.0
    %2804 = vmatpush1.msra.mxu0 0.0
    %2805 = vmatprep.subr.mxu0 0.0
    %2806 = vmatpush1.msra.mxu0 0.0
    %2807 = vmatprep.subr.mxu0 0.0
    %2808 = vmatpush1.msra.mxu0 0.0
    %2809 = vmatprep.subr.mxu0 0.0
    %2810 = vmatpush1.msra.mxu0 0.0
    %2811 = vmatprep.subr.mxu0 0.0
    %2812 = vmatpush1.msra.mxu0 0.0
    %2813 = vmatprep.subr.mxu0 0.0
    %2814 = vmatpush1.msra.mxu0 0.0
    %2815 = vmatprep.subr.mxu0 0.0
    %2816 = vmatpush1.msra.mxu0 0.0
    %2817 = vmatprep.subr.mxu0 0.0
    %2818 = vmatpush1.msra.mxu0 0.0
    %2819 = vmatprep.subr.mxu0 0.0
    %2820 = vmatpush1.msra.mxu0 0.0
    %2821 = vmatprep.subr.mxu0 0.0
    %2822 = vmatpush1.msra.mxu0 0.0
    %2823 = vmatprep.subr.mxu0 0.0
    %2824 = vmatpush1.msra.mxu0 0.0
    %2825 = vmatprep.subr.mxu0 0.0
    %2826 = vmatpush1.msra.mxu0 0.0
    %2827 = vmatprep.subr.mxu0 0.0
    %2828 = vmatpush1.msra.mxu0 0.0
    %2829 = vmatprep.subr.mxu0 0.0
    %2830 = vmatpush1.msra.mxu0 0.0
    %2831 = vmatprep.subr.mxu0 0.0
    %2832 = vmatpush1.msra.mxu0 0.0
    %2833 = vmatprep.subr.mxu0 0.0
    %2834 = vmatpush1.msra.mxu0 0.0
    %2835 = vmatprep.subr.mxu0 0.0
    %2836 = vmatpush1.msra.mxu0 0.0
    %2837 = vmatprep.subr.mxu0 0.0
    %2838 = vmatpush1.msra.mxu0 0.0
    %2839 = vmatprep.subr.mxu0 0.0
    %2840 = vmatpush1.msra.mxu0 0.0
    %2841 = vmatprep.subr.mxu0 0.0
    %2842 = vmatpush1.msra.mxu0 0.0
    %2843 = vmatprep.subr.mxu0 0.0
    %2844 = vmatpush1.msra.mxu0 0.0
    %2845 = vmatprep.subr.mxu0 0.0
    %2846 = vmatpush1.msra.mxu0 0.0
    %2847 = vmatprep.subr.mxu0 0.0
    %2848 = vmatpush1.msra.mxu0 0.0
    %2849 = vmatprep.mubr.f32.mxu0 0.0
    %2850 = vmatmul.mubr.f32.gmra.mrb[0].mxu0 %v2563
    %v2851 = vpop.f32.mrb[0].mxu0
    %v2852 = vadd.f32 0.0, %v2851
    %v2853 = vpop.f32.mrb[0].mxu0
    %2854 = vdwg.mxu0
    %2857 = vrot.lane.b32.xlu0 %v2782, 16
    %v2858 = vpop.permute.xlu0 %2857
    %2859 = vrot.lane.b32.xlu0 %v2852, 16
    %v2860 = vpop.permute.xlu0 %2859
    %v2863 = vsel %vm450, %v2443, %v2858
    %v2864 = vsel %vm450, %v2457, %v2860
    %v2866 = vsel %vm61, %v2713, 0
    %v2869 = vsel %vm61, %v2714, 0
    %2871 = vmatprep.subr.mxu0 %v464
    %2872 = vmatpush1.msra.mxu0 %v462
    %2873 = vmatprep.subr.mxu0 0.0
    %2874 = vmatpush1.msra.mxu0 0.0
    %2875 = vmatprep.subr.mxu0 0.0
    %2876 = vmatpush1.msra.mxu0 0.0
    %2877 = vmatprep.subr.mxu0 0.0
    %2878 = vmatpush1.msra.mxu0 0.0
    %2879 = vmatprep.subr.mxu0 0.0
    %2880 = vmatpush1.msra.mxu0 0.0
    %2881 = vmatprep.subr.mxu0 0.0
    %2882 = vmatpush1.msra.mxu0 0.0
    %2883 = vmatprep.subr.mxu0 0.0
    %2884 = vmatpush1.msra.mxu0 0.0
    %2885 = vmatprep.subr.mxu0 0.0
    %2886 = vmatpush1.msra.mxu0 0.0
    %2887 = vmatprep.subr.mxu0 0.0
    %2888 = vmatpush1.msra.mxu0 0.0
    %2889 = vmatprep.subr.mxu0 0.0
    %2890 = vmatpush1.msra.mxu0 0.0
    %2891 = vmatprep.subr.mxu0 0.0
    %2892 = vmatpush1.msra.mxu0 0.0
    %2893 = vmatprep.subr.mxu0 0.0
    %2894 = vmatpush1.msra.mxu0 0.0
    %2895 = vmatprep.subr.mxu0 0.0
    %2896 = vmatpush1.msra.mxu0 0.0
    %2897 = vmatprep.subr.mxu0 0.0
    %2898 = vmatpush1.msra.mxu0 0.0
    %2899 = vmatprep.subr.mxu0 0.0
    %2900 = vmatpush1.msra.mxu0 0.0
    %2901 = vmatprep.subr.mxu0 0.0
    %2902 = vmatpush1.msra.mxu0 0.0
    %2903 = vmatprep.subr.mxu0 0.0
    %2904 = vmatpush1.msra.mxu0 0.0
    %2905 = vmatprep.subr.mxu0 0.0
    %2906 = vmatpush1.msra.mxu0 0.0
    %2907 = vmatprep.subr.mxu0 0.0
    %2908 = vmatpush1.msra.mxu0 0.0
    %2909 = vmatprep.subr.mxu0 0.0
    %2910 = vmatpush1.msra.mxu0 0.0
    %2911 = vmatprep.subr.mxu0 0.0
    %2912 = vmatpush1.msra.mxu0 0.0
    %2913 = vmatprep.subr.mxu0 0.0
    %2914 = vmatpush1.msra.mxu0 0.0
    %2915 = vmatprep.subr.mxu0 0.0
    %2916 = vmatpush1.msra.mxu0 0.0
    %2917 = vmatprep.subr.mxu0 0.0
    %2918 = vmatpush1.msra.mxu0 0.0
    %2919 = vmatprep.subr.mxu0 0.0
    %2920 = vmatpush1.msra.mxu0 0.0
    %2921 = vmatprep.subr.mxu0 0.0
    %2922 = vmatpush1.msra.mxu0 0.0
    %2923 = vmatprep.subr.mxu0 0.0
    %2924 = vmatpush1.msra.mxu0 0.0
    %2925 = vmatprep.subr.mxu0 0.0
    %2926 = vmatpush1.msra.mxu0 0.0
    %2927 = vmatprep.subr.mxu0 0.0
    %2928 = vmatpush1.msra.mxu0 0.0
    %2929 = vmatprep.subr.mxu0 0.0
    %2930 = vmatpush1.msra.mxu0 0.0
    %2931 = vmatprep.subr.mxu0 0.0
    %2932 = vmatpush1.msra.mxu0 0.0
    %2933 = vmatprep.subr.mxu0 0.0
    %2934 = vmatpush1.msra.mxu0 0.0
    %2935 = vmatprep.mubr.f32.mxu0 0.0
    %2936 = vmatmul.mubr.f32.gmra.mrb[0].mxu0 %v2866
    %v2937 = vpop.f32.mrb[0].mxu0
    %v2938 = vadd.f32 0.0, %v2937
    %v2939 = vpop.f32.mrb[0].mxu0
    %v2940 = vadd.f32 0.0, %v2939
    %2941 = vmatprep.mubr.f32.mxu0 0.0
    %2942 = vmatmul.mubr.f32.gmra.mrb[0].mxu0 %v2869
    %v2943 = vpop.f32.mrb[0].mxu0
    %v2944 = vadd.f32 0.0, %v2943
    %v2945 = vpop.f32.mrb[0].mxu0
    %v2946 = vadd.f32 0.0, %v2945
    %2947 = vdwg.mxu0
    %v2949 = vsel %vm543, %v2863, 0
    %v2952 = vsel %vm543, %v2864, 0
    %2954 = vmatprep.subr.mxu0 0.0
    %2955 = vmatpush1.msra.mxu0 %v43
    %2956 = vmatprep.subr.mxu0 0.0
    %2957 = vmatpush1.msra.mxu0 %v44
    %2958 = vmatprep.subr.mxu0 0.0
    %2959 = vmatpush1.msra.mxu0 %v45
    %2960 = vmatprep.subr.mxu0 0.0
    %2961 = vmatpush1.msra.mxu0 %v46
    %2962 = vmatprep.subr.mxu0 0.0
    %2963 = vmatpush1.msra.mxu0 0.0
    %2964 = vmatprep.subr.mxu0 0.0
    %2965 = vmatpush1.msra.mxu0 0.0
    %2966 = vmatprep.subr.mxu0 0.0
    %2967 = vmatpush1.msra.mxu0 0.0
    %2968 = vmatprep.subr.mxu0 0.0
    %2969 = vmatpush1.msra.mxu0 0.0
    %2970 = vmatprep.subr.mxu0 0.0
    %2971 = vmatpush1.msra.mxu0 0.0
    %2972 = vmatprep.subr.mxu0 0.0
    %2973 = vmatpush1.msra.mxu0 0.0
    %2974 = vmatprep.subr.mxu0 0.0
    %2975 = vmatpush1.msra.mxu0 0.0
    %2976 = vmatprep.subr.mxu0 0.0
    %2977 = vmatpush1.msra.mxu0 0.0
    %2978 = vmatprep.subr.mxu0 0.0
    %2979 = vmatpush1.msra.mxu0 0.0
    %2980 = vmatprep.subr.mxu0 0.0
    %2981 = vmatpush1.msra.mxu0 0.0
    %2982 = vmatprep.subr.mxu0 0.0
    %2983 = vmatpush1.msra.mxu0 0.0
    %2984 = vmatprep.subr.mxu0 0.0
    %2985 = vmatpush1.msra.mxu0 0.0
    %2986 = vmatprep.subr.mxu0 0.0
    %2987 = vmatpush1.msra.mxu0 0.0
    %2988 = vmatprep.subr.mxu0 0.0
    %2989 = vmatpush1.msra.mxu0 0.0
    %2990 = vmatprep.subr.mxu0 0.0
    %2991 = vmatpush1.msra.mxu0 0.0
    %2992 = vmatprep.subr.mxu0 0.0
    %2993 = vmatpush1.msra.mxu0 0.0
    %2994 = vmatprep.subr.mxu0 0.0
    %2995 = vmatpush1.msra.mxu0 0.0
    %2996 = vmatprep.subr.mxu0 0.0
    %2997 = vmatpush1.msra.mxu0 0.0
    %2998 = vmatprep.subr.mxu0 0.0
    %2999 = vmatpush1.msra.mxu0 0.0
    %3000 = vmatprep.subr.mxu0 0.0
    %3001 = vmatpush1.msra.mxu0 0.0
    %3002 = vmatprep.subr.mxu0 0.0
    %3003 = vmatpush1.msra.mxu0 0.0
    %3004 = vmatprep.subr.mxu0 0.0
    %3005 = vmatpush1.msra.mxu0 0.0
    %3006 = vmatprep.subr.mxu0 0.0
    %3007 = vmatpush1.msra.mxu0 0.0
    %3008 = vmatprep.subr.mxu0 0.0
    %3009 = vmatpush1.msra.mxu0 0.0
    %3010 = vmatprep.subr.mxu0 0.0
    %3011 = vmatpush1.msra.mxu0 0.0
    %3012 = vmatprep.subr.mxu0 0.0
    %3013 = vmatpush1.msra.mxu0 0.0
    %3014 = vmatprep.subr.mxu0 0.0
    %3015 = vmatpush1.msra.mxu0 0.0
    %3016 = vmatprep.subr.mxu0 0.0
    %3017 = vmatpush1.msra.mxu0 0.0
    %3018 = vmatprep.mubr.f32.mxu0 0.0
    %3019 = vmatmul.mubr.f32.gmra.mrb[0].mxu0 %v2949
    %v3020 = vpop.f32.mrb[0].mxu0
    %v3021 = vadd.f32 0.0, %v3020
    %v3022 = vpop.f32.mrb[0].mxu0
    %3023 = vmatprep.mubr.f32.mxu0 0.0
    %3024 = vmatmul.mubr.f32.gmra.mrb[0].mxu0 %v2952
    %v3025 = vpop.f32.mrb[0].mxu0
    %v3026 = vadd.f32 0.0, %v3025
    %v3027 = vpop.f32.mrb[0].mxu0
    %3028 = vdwg.mxu0
    %v3030 = vsel %vm61, %v2475, 0
    %v3033 = vsel %vm61, %v2476, 0
    %3035 = vmatprep.subr.mxu0 0.0
    %3036 = vmatpush1.msra.mxu0 %v632
    %3037 = vmatprep.subr.mxu0 0.0
    %3038 = vmatpush1.msra.mxu0 0.0
    %3039 = vmatprep.subr.mxu0 0.0
    %3040 = vmatpush1.msra.mxu0 0.0
    %3041 = vmatprep.subr.mxu0 0.0
    %3042 = vmatpush1.msra.mxu0 0.0
    %3043 = vmatprep.subr.mxu0 0.0
    %3044 = vmatpush1.msra.mxu0 0.0
    %3045 = vmatprep.subr.mxu0 0.0
    %3046 = vmatpush1.msra.mxu0 0.0
    %3047 = vmatprep.subr.mxu0 0.0
    %3048 = vmatpush1.msra.mxu0 0.0
    %3049 = vmatprep.subr.mxu0 0.0
    %3050 = vmatpush1.msra.mxu0 0.0
    %3051 = vmatprep.subr.mxu0 0.0
    %3052 = vmatpush1.msra.mxu0 0.0
    %3053 = vmatprep.subr.mxu0 0.0
    %3054 = vmatpush1.msra.mxu0 0.0
    %3055 = vmatprep.subr.mxu0 0.0
    %3056 = vmatpush1.msra.mxu0 0.0
    %3057 = vmatprep.subr.mxu0 0.0
    %3058 = vmatpush1.msra.mxu0 0.0
    %3059 = vmatprep.subr.mxu0 0.0
    %3060 = vmatpush1.msra.mxu0 0.0
    %3061 = vmatprep.subr.mxu0 0.0
    %3062 = vmatpush1.msra.mxu0 0.0
    %3063 = vmatprep.subr.mxu0 0.0
    %3064 = vmatpush1.msra.mxu0 0.0
    %3065 = vmatprep.subr.mxu0 0.0
    %3066 = vmatpush1.msra.mxu0 0.0
    %3067 = vmatprep.subr.mxu0 0.0
    %3068 = vmatpush1.msra.mxu0 0.0
    %3069 = vmatprep.subr.mxu0 0.0
    %3070 = vmatpush1.msra.mxu0 0.0
    %3071 = vmatprep.subr.mxu0 0.0
    %3072 = vmatpush1.msra.mxu0 0.0
    %3073 = vmatprep.subr.mxu0 0.0
    %3074 = vmatpush1.msra.mxu0 0.0
    %3075 = vmatprep.subr.mxu0 0.0
    %3076 = vmatpush1.msra.mxu0 0.0
    %3077 = vmatprep.subr.mxu0 0.0
    %3078 = vmatpush1.msra.mxu0 0.0
    %3079 = vmatprep.subr.mxu0 0.0
    %3080 = vmatpush1.msra.mxu0 0.0
    %3081 = vmatprep.subr.mxu0 0.0
    %3082 = vmatpush1.msra.mxu0 0.0
    %3083 = vmatprep.subr.mxu0 0.0
    %3084 = vmatpush1.msra.mxu0 0.0
    %3085 = vmatprep.subr.mxu0 0.0
    %3086 = vmatpush1.msra.mxu0 0.0
    %3087 = vmatprep.subr.mxu0 0.0
    %3088 = vmatpush1.msra.mxu0 0.0
    %3089 = vmatprep.subr.mxu0 0.0
    %3090 = vmatpush1.msra.mxu0 0.0
    %3091 = vmatprep.subr.mxu0 0.0
    %3092 = vmatpush1.msra.mxu0 0.0
    %3093 = vmatprep.subr.mxu0 0.0
    %3094 = vmatpush1.msra.mxu0 0.0
    %3095 = vmatprep.subr.mxu0 0.0
    %3096 = vmatpush1.msra.mxu0 0.0
    %3097 = vmatprep.subr.mxu0 0.0
    %3098 = vmatpush1.msra.mxu0 0.0
    %3099 = vmatprep.mubr.f32.mxu0 0.0
    %3100 = vmatmul.mubr.f32.gmra.mrb[0].mxu0 %v3030
    %v3101 = vpop.f32.mrb[0].mxu0
    %v3102 = vadd.f32 0.0, %v3101
    %v3103 = vpop.f32.mrb[0].mxu0
    %3104 = vmatprep.mubr.f32.mxu0 0.0
    %3105 = vmatmul.mubr.f32.gmra.mrb[0].mxu0 %v3033
    %v3106 = vpop.f32.mrb[0].mxu0
    %v3107 = vadd.f32 0.0, %v3106
    %v3108 = vpop.f32.mrb[0].mxu0
    %3109 = vdwg.mxu0
    %3110 = vset.pattern.permute.xlu0 0
    %3111 = vperm.xlu0 %3110, %v2475
    %v3112 = vpop.permute.xlu0 %3111
    %3114 = vset.pattern.permute.xlu0 0
    %3115 = vperm.xlu0 %3114, %v2476
    %v3116 = vpop.permute.xlu0 %3115
    %v3118 = vmul.f32 %v3112, %v2938
    %v3119 = vmul.f32 %v3116, %v2944
    %3120 = vset.pattern.permute.xlu0 1
    %3121 = vperm.xlu0 %3120, %v2475
    %v3122 = vpop.permute.xlu0 %3121
    %3124 = vset.pattern.permute.xlu0 1
    %3125 = vperm.xlu0 %3124, %v2476
    %v3126 = vpop.permute.xlu0 %3125
    %v3128 = vmul.f32 %v3122, %v2938
    %v3129 = vmul.f32 %v3126, %v2944
    %3132 = vrot.lane.b32.xlu0 %v3128, 80
    %v3133 = vpop.permute.xlu0 %3132
    %3134 = vrot.lane.b32.xlu0 %v3129, 80
    %v3135 = vpop.permute.xlu0 %3134
    %v3138 = vadd.f32 %v3118, %v3133
    %v3139 = vadd.f32 %v3119, %v3135
    %3140 = vset.pattern.permute.xlu0 2
    %3141 = vperm.xlu0 %3140, %v2475
    %v3142 = vpop.permute.xlu0 %3141
    %3144 = vset.pattern.permute.xlu0 2
    %3145 = vperm.xlu0 %3144, %v2476
    %v3146 = vpop.permute.xlu0 %3145
    %v3148 = vmul.f32 %v3142, %v2938
    %v3149 = vmul.f32 %v3142, %v2940
    %v3150 = vmul.f32 %v3146, %v2944
    %v3151 = vmul.f32 %v3146, %v2946
    %3156 = vrot.lane.b32.xlu0 %v3148, 32
    %v3157 = vpop.permute.xlu0 %3156
    %3158 = vrot.lane.b32.xlu0 %v3149, 32
    %v3159 = vpop.permute.xlu0 %3158
    %3160 = vrot.lane.b32.xlu0 %v3150, 32
    %v3161 = vpop.permute.xlu0 %3160
    %3162 = vrot.lane.b32.xlu0 %v3151, 32
    %v3163 = vpop.permute.xlu0 %3162
    %v3164 = vsel %vm543, %v3157, %v3159
    %v3165 = vsel %vm543, %v3161, %v3163
    %v3168 = vadd.f32 %v3138, %v3164
    %v3169 = vadd.f32 %v3139, %v3165
    %3170 = vset.pattern.permute.xlu0 3
    %3171 = vperm.xlu0 %3170, %v2475
    %v3172 = vpop.permute.xlu0 %3171
    %3174 = vset.pattern.permute.xlu0 3
    %3175 = vperm.xlu0 %3174, %v2476
    %v3176 = vpop.permute.xlu0 %3175
    %v3178 = vmul.f32 %v3172, %v2940
    %v3179 = vmul.f32 %v3176, %v2946
    %3182 = vrot.lane.b32.xlu0 %v3178, 112
    %v3183 = vpop.permute.xlu0 %3182
    %3184 = vrot.lane.b32.xlu0 %v3179, 112
    %v3185 = vpop.permute.xlu0 %3184
    %v3188 = vadd.f32 %v3168, %v3183
    %v3189 = vadd.f32 %v3169, %v3185
    %v3190 = vmul.f32 %v3112, %v3021
    %v3191 = vmul.f32 %v3116, %v3026
    %v3192 = vmul.f32 %v3122, %v3021
    %v3193 = vmul.f32 %v3126, %v3026
    %3196 = vrot.lane.b32.xlu0 %v3192, 96
    %v3197 = vpop.permute.xlu0 %3196
    %3198 = vrot.lane.b32.xlu0 %v3193, 96
    %v3199 = vpop.permute.xlu0 %3198
    %v3202 = vadd.f32 %v3190, %v3197
    %v3203 = vadd.f32 %v3191, %v3199
    %v3204 = vmul.f32 %v3142, %v3021
    %v3205 = vmul.f32 %v3146, %v3026
    %3208 = vrot.lane.b32.xlu0 %v3204, 64
    %v3209 = vpop.permute.xlu0 %3208
    %3210 = vrot.lane.b32.xlu0 %v3205, 64
    %v3211 = vpop.permute.xlu0 %3210
    %v3214 = vadd.f32 %v3202, %v3209
    %v3215 = vadd.f32 %v3203, %v3211
    %v3216 = vmul.f32 %v3172, %v3021
    %v3217 = vmul.f32 %v3176, %v3026
    %3220 = vrot.lane.b32.xlu0 %v3216, 32
    %v3221 = vpop.permute.xlu0 %3220
    %3222 = vrot.lane.b32.xlu0 %v3217, 32
    %v3223 = vpop.permute.xlu0 %3222
    %v3226 = vadd.f32 %v3214, %v3221
    %v3227 = vadd.f32 %v3215, %v3223
    %v3228 = vadd.f32 %v3188, %v3226
    %v3229 = vadd.f32 %v3189, %v3227
    %v3230 = vadd.f32 %v3228, %v3102
    %v3231 = vadd.f32 %v3229, %v3107
    %v3232 = vsub.f32 0.0, %v3230
    %v3233 = vsub.f32 0.0, %v3231
    %v3234 = vmul.f32 %v3232, 1.442695
    %v3235 = vpow.pop %v3234
    %v3236 = vmul.f32 %v3233, 1.442695
    %v3237 = vpow.pop %v3236
    %v3238 = vadd.f32 %v3235, 1.0
    %v3239 = vadd.f32 %v3237, 1.0
    %v3240 = vrcp.pop %v3238
    %v3241 = vrcp.pop %v3239
    %v3242 = vmul.f32 %v3240, %v2443
    %v3243 = vmul.f32 %v3241, %v2457
    %3244 = vmatprep.subr.mxu0 0.0
    %3245 = vmatpush1.msra.mxu0 %v3242
    %3246 = vmatprep.subr.mxu0 0.0
    %3247 = vmatpush1.msra.mxu0 0.0
    %3248 = vmatprep.subr.mxu0 0.0
    %3249 = vmatpush1.msra.mxu0 0.0
    %3250 = vmatprep.subr.mxu0 0.0
    %3251 = vmatpush1.msra.mxu0 0.0
    %3252 = vmatprep.subr.mxu0 0.0
    %3253 = vmatpush1.msra.mxu0 0.0
    %3254 = vmatprep.subr.mxu0 0.0
    %3255 = vmatpush1.msra.mxu0 0.0
    %3256 = vmatprep.subr.mxu0 0.0
    %3257 = vmatpush1.msra.mxu0 0.0
    %3258 = vmatprep.subr.mxu0 0.0
    %3259 = vmatpush1.msra.mxu0 0.0
    %3260 = vmatprep.subr.mxu0 0.0
    %3261 = vmatpush1.msra.mxu0 0.0
    %3262 = vmatprep.subr.mxu0 0.0
    %3263 = vmatpush1.msra.mxu0 0.0
    %3264 = vmatprep.subr.mxu0 0.0
    %3265 = vmatpush1.msra.mxu0 0.0
    %3266 = vmatprep.subr.mxu0 0.0
    %3267 = vmatpush1.msra.mxu0 0.0
    %3268 = vmatprep.subr.mxu0 0.0
    %3269 = vmatpush1.msra.mxu0 0.0
    %3270 = vmatprep.subr.mxu0 0.0
    %3271 = vmatpush1.msra.mxu0 0.0
    %3272 = vmatprep.subr.mxu0 0.0
    %3273 = vmatpush1.msra.mxu0 0.0
    %3274 = vmatprep.subr.mxu0 0.0
    %3275 = vmatpush1.msra.mxu0 0.0
    %3276 = vmatprep.subr.mxu0 0.0
    %3277 = vmatpush1.msra.mxu0 0.0
    %3278 = vmatprep.subr.mxu0 0.0
    %3279 = vmatpush1.msra.mxu0 0.0
    %3280 = vmatprep.subr.mxu0 0.0
    %3281 = vmatpush1.msra.mxu0 0.0
    %3282 = vmatprep.subr.mxu0 0.0
    %3283 = vmatpush1.msra.mxu0 0.0
    %3284 = vmatprep.subr.mxu0 0.0
    %3285 = vmatpush1.msra.mxu0 0.0
    %3286 = vmatprep.subr.mxu0 0.0
    %3287 = vmatpush1.msra.mxu0 0.0
    %3288 = vmatprep.subr.mxu0 0.0
    %3289 = vmatpush1.msra.mxu0 0.0
    %3290 = vmatprep.subr.mxu0 0.0
    %3291 = vmatpush1.msra.mxu0 0.0
    %3292 = vmatprep.subr.mxu0 0.0
    %3293 = vmatpush1.msra.mxu0 0.0
    %3294 = vmatprep.subr.mxu0 0.0
    %3295 = vmatpush1.msra.mxu0 0.0
    %3296 = vmatprep.subr.mxu0 0.0
    %3297 = vmatpush1.msra.mxu0 0.0
    %3298 = vmatprep.subr.mxu0 0.0
    %3299 = vmatpush1.msra.mxu0 0.0
    %3300 = vmatprep.subr.mxu0 0.0
    %3301 = vmatpush1.msra.mxu0 0.0
    %3302 = vmatprep.subr.mxu0 0.0
    %3303 = vmatpush1.msra.mxu0 0.0
    %3304 = vmatprep.subr.mxu0 0.0
    %3305 = vmatpush1.msra.mxu0 0.0
    %3306 = vmatprep.subr.mxu0 0.0
    %3307 = vmatpush1.msra.mxu0 0.0
    %3308 = vmatprep.mubr.f32.mxu0 0.0
    %3309 = vmatmul.mubr.f32.gmra.mrb[0].mxu0 %v2563
    %v3310 = vpop.f32.mrb[0].mxu0
    %v3311 = vadd.f32 0.0, %v3310
    %v3312 = vpop.f32.mrb[0].mxu0
    %3313 = vdwg.mxu0
    %3314 = vmatprep.subr.mxu0 0.0
    %3315 = vmatpush1.msra.mxu0 %v3243
    %3316 = vmatprep.subr.mxu0 0.0
    %3317 = vmatpush1.msra.mxu0 0.0
    %3318 = vmatprep.subr.mxu0 0.0
    %3319 = vmatpush1.msra.mxu0 0.0
    %3320 = vmatprep.subr.mxu0 0.0
    %3321 = vmatpush1.msra.mxu0 0.0
    %3322 = vmatprep.subr.mxu0 0.0
    %3323 = vmatpush1.msra.mxu0 0.0
    %3324 = vmatprep.subr.mxu0 0.0
    %3325 = vmatpush1.msra.mxu0 0.0
    %3326 = vmatprep.subr.mxu0 0.0
    %3327 = vmatpush1.msra.mxu0 0.0
    %3328 = vmatprep.subr.mxu0 0.0
    %3329 = vmatpush1.msra.mxu0 0.0
    %3330 = vmatprep.subr.mxu0 0.0
    %3331 = vmatpush1.msra.mxu0 0.0
    %3332 = vmatprep.subr.mxu0 0.0
    %3333 = vmatpush1.msra.mxu0 0.0
    %3334 = vmatprep.subr.mxu0 0.0
    %3335 = vmatpush1.msra.mxu0 0.0
    %3336 = vmatprep.subr.mxu0 0.0
    %3337 = vmatpush1.msra.mxu0 0.0
    %3338 = vmatprep.subr.mxu0 0.0
    %3339 = vmatpush1.msra.mxu0 0.0
    %3340 = vmatprep.subr.mxu0 0.0
    %3341 = vmatpush1.msra.mxu0 0.0
    %3342 = vmatprep.subr.mxu0 0.0
    %3343 = vmatpush1.msra.mxu0 0.0
    %3344 = vmatprep.subr.mxu0 0.0
    %3345 = vmatpush1.msra.mxu0 0.0
    %3346 = vmatprep.subr.mxu0 0.0
    %3347 = vmatpush1.msra.mxu0 0.0
    %3348 = vmatprep.subr.mxu0 0.0
    %3349 = vmatpush1.msra.mxu0 0.0
    %3350 = vmatprep.subr.mxu0 0.0
    %3351 = vmatpush1.msra.mxu0 0.0
    %3352 = vmatprep.subr.mxu0 0.0
    %3353 = vmatpush1.msra.mxu0 0.0
    %3354 = vmatprep.subr.mxu0 0.0
    %3355 = vmatpush1.msra.mxu0 0.0
    %3356 = vmatprep.subr.mxu0 0.0
    %3357 = vmatpush1.msra.mxu0 0.0
    %3358 = vmatprep.subr.mxu0 0.0
    %3359 = vmatpush1.msra.mxu0 0.0
    %3360 = vmatprep.subr.mxu0 0.0
    %3361 = vmatpush1.msra.mxu0 0.0
    %3362 = vmatprep.subr.mxu0 0.0
    %3363 = vmatpush1.msra.mxu0 0.0
    %3364 = vmatprep.subr.mxu0 0.0
    %3365 = vmatpush1.msra.mxu0 0.0
    %3366 = vmatprep.subr.mxu0 0.0
    %3367 = vmatpush1.msra.mxu0 0.0
    %3368 = vmatprep.subr.mxu0 0.0
    %3369 = vmatpush1.msra.mxu0 0.0
    %3370 = vmatprep.subr.mxu0 0.0
    %3371 = vmatpush1.msra.mxu0 0.0
    %3372 = vmatprep.subr.mxu0 0.0
    %3373 = vmatpush1.msra.mxu0 0.0
    %3374 = vmatprep.subr.mxu0 0.0
    %3375 = vmatpush1.msra.mxu0 0.0
    %3376 = vmatprep.subr.mxu0 0.0
    %3377 = vmatpush1.msra.mxu0 0.0
    %3378 = vmatprep.mubr.f32.mxu0 0.0
    %3379 = vmatmul.mubr.f32.gmra.mrb[0].mxu0 %v2563
    %v3380 = vpop.f32.mrb[0].mxu0
    %v3381 = vadd.f32 0.0, %v3380
    %v3382 = vpop.f32.mrb[0].mxu0
    %3383 = vdwg.mxu0
    %3386 = vrot.lane.b32.xlu0 %v3311, 16
    %v3387 = vpop.permute.xlu0 %3386
    %3388 = vrot.lane.b32.xlu0 %v3381, 16
    %v3389 = vpop.permute.xlu0 %3388
    %v3392 = vsel %vm450, %v3242, %v3387
    %v3393 = vsel %vm450, %v3243, %v3389
    %v3395 = vsel %vm543, %v3392, 0
    %v3398 = vsel %vm543, %v3393, 0
    %3400 = vmatprep.subr.mxu0 0.0
    %3401 = vmatpush1.msra.mxu0 %v47
    %3402 = vmatprep.subr.mxu0 0.0
    %3403 = vmatpush1.msra.mxu0 %v48
    %3404 = vmatprep.subr.mxu0 0.0
    %3405 = vmatpush1.msra.mxu0 %v49
    %3406 = vmatprep.subr.mxu0 0.0
    %3407 = vmatpush1.msra.mxu0 %v50
    %3408 = vmatprep.subr.mxu0 0.0
    %3409 = vmatpush1.msra.mxu0 0.0
    %3410 = vmatprep.subr.mxu0 0.0
    %3411 = vmatpush1.msra.mxu0 0.0
    %3412 = vmatprep.subr.mxu0 0.0
    %3413 = vmatpush1.msra.mxu0 0.0
    %3414 = vmatprep.subr.mxu0 0.0
    %3415 = vmatpush1.msra.mxu0 0.0
    %3416 = vmatprep.subr.mxu0 0.0
    %3417 = vmatpush1.msra.mxu0 0.0
    %3418 = vmatprep.subr.mxu0 0.0
    %3419 = vmatpush1.msra.mxu0 0.0
    %3420 = vmatprep.subr.mxu0 0.0
    %3421 = vmatpush1.msra.mxu0 0.0
    %3422 = vmatprep.subr.mxu0 0.0
    %3423 = vmatpush1.msra.mxu0 0.0
    %3424 = vmatprep.subr.mxu0 0.0
    %3425 = vmatpush1.msra.mxu0 0.0
    %3426 = vmatprep.subr.mxu0 0.0
    %3427 = vmatpush1.msra.mxu0 0.0
    %3428 = vmatprep.subr.mxu0 0.0
    %3429 = vmatpush1.msra.mxu0 0.0
    %3430 = vmatprep.subr.mxu0 0.0
    %3431 = vmatpush1.msra.mxu0 0.0
    %3432 = vmatprep.subr.mxu0 0.0
    %3433 = vmatpush1.msra.mxu0 0.0
    %3434 = vmatprep.subr.mxu0 0.0
    %3435 = vmatpush1.msra.mxu0 0.0
    %3436 = vmatprep.subr.mxu0 0.0
    %3437 = vmatpush1.msra.mxu0 0.0
    %3438 = vmatprep.subr.mxu0 0.0
    %3439 = vmatpush1.msra.mxu0 0.0
    %3440 = vmatprep.subr.mxu0 0.0
    %3441 = vmatpush1.msra.mxu0 0.0
    %3442 = vmatprep.subr.mxu0 0.0
    %3443 = vmatpush1.msra.mxu0 0.0
    %3444 = vmatprep.subr.mxu0 0.0
    %3445 = vmatpush1.msra.mxu0 0.0
    %3446 = vmatprep.subr.mxu0 0.0
    %3447 = vmatpush1.msra.mxu0 0.0
    %3448 = vmatprep.subr.mxu0 0.0
    %3449 = vmatpush1.msra.mxu0 0.0
    %3450 = vmatprep.subr.mxu0 0.0
    %3451 = vmatpush1.msra.mxu0 0.0
    %3452 = vmatprep.subr.mxu0 0.0
    %3453 = vmatpush1.msra.mxu0 0.0
    %3454 = vmatprep.subr.mxu0 0.0
    %3455 = vmatpush1.msra.mxu0 0.0
    %3456 = vmatprep.subr.mxu0 0.0
    %3457 = vmatpush1.msra.mxu0 0.0
    %3458 = vmatprep.subr.mxu0 0.0
    %3459 = vmatpush1.msra.mxu0 0.0
    %3460 = vmatprep.subr.mxu0 0.0
    %3461 = vmatpush1.msra.mxu0 0.0
    %3462 = vmatprep.subr.mxu0 0.0
    %3463 = vmatpush1.msra.mxu0 0.0
    %3464 = vmatprep.mubr.f32.mxu0 0.0
    %3465 = vmatmul.mubr.f32.gmra.mrb[0].mxu0 %v3395
    %v3466 = vpop.f32.mrb[0].mxu0
    %v3467 = vadd.f32 0.0, %v3466
    %v3468 = vpop.f32.mrb[0].mxu0
    %3469 = vmatprep.mubr.f32.mxu0 0.0
    %3470 = vmatmul.mubr.f32.gmra.mrb[0].mxu0 %v3398
    %v3471 = vpop.f32.mrb[0].mxu0
    %v3472 = vadd.f32 0.0, %v3471
    %v3473 = vpop.f32.mrb[0].mxu0
    %3474 = vdwg.mxu0
    %v3475 = vmul.f32 %v3112, %v3467
    %v3476 = vmul.f32 %v3116, %v3472
    %v3477 = vmul.f32 %v3122, %v3467
    %v3478 = vmul.f32 %v3126, %v3472
    %3481 = vrot.lane.b32.xlu0 %v3477, 112
    %v3482 = vpop.permute.xlu0 %3481
    %3483 = vrot.lane.b32.xlu0 %v3478, 112
    %v3484 = vpop.permute.xlu0 %3483
    %v3487 = vadd.f32 %v3475, %v3482
    %v3488 = vadd.f32 %v3476, %v3484
    %v3489 = vmul.f32 %v3142, %v3467
    %v3490 = vmul.f32 %v3146, %v3472
    %3493 = vrot.lane.b32.xlu0 %v3489, 96
    %v3494 = vpop.permute.xlu0 %3493
    %3495 = vrot.lane.b32.xlu0 %v3490, 96
    %v3496 = vpop.permute.xlu0 %3495
    %v3499 = vadd.f32 %v3487, %v3494
    %v3500 = vadd.f32 %v3488, %v3496
    %v3501 = vmul.f32 %v3172, %v3467
    %v3502 = vmul.f32 %v3176, %v3472
    %3505 = vrot.lane.b32.xlu0 %v3501, 80
    %v3506 = vpop.permute.xlu0 %3505
    %3507 = vrot.lane.b32.xlu0 %v3502, 80
    %v3508 = vpop.permute.xlu0 %3507
    %v3511 = vadd.f32 %v3499, %v3506
    %v3512 = vadd.f32 %v3500, %v3508
    %3515 = vrot.lane.b32.xlu0 %v3511, 32
    %v3516 = vpop.permute.xlu0 %3515
    %3517 = vrot.lane.b32.xlu0 %v3512, 32
    %v3518 = vpop.permute.xlu0 %3517
    %v3521 = vadd.f32 %v3188, %v3516
    %v3522 = vadd.f32 %v3189, %v3518
    %v3523 = vadd.f32 %v3521, %v3102
    %v3524 = vadd.f32 %v3522, %v3107
    %v3525 = vtanh.pop %v3523
    %v3526 = vtanh.pop %v3524
    %v3527 = vmul.f32 %v3240, %v2348
    %v3528 = vmul.f32 %v3241, %v2349
    %v3529 = vsub.f32 1.0, %v3240
    %v3530 = vsub.f32 1.0, %v3241
    %3533 = vrot.lane.b32.xlu0 %v3525, 112
    %v3534 = vpop.permute.xlu0 %3533
    %3535 = vrot.lane.b32.xlu0 %v3526, 112
    %v3536 = vpop.permute.xlu0 %3535
    %v3539 = vmul.f32 %v3529, %v3534
    %v3540 = vmul.f32 %v3530, %v3536
    %v3541 = vadd.f32 %v3527, %v3539
    %v3542 = vadd.f32 %v3528, %v3540
    %v3544 = vsel %vm299, %v2470, 0
    %v3547 = vsel %vm299, %v2471, 0
    %3549 = vmatprep.subr.mxu0 0.0
    %3550 = vmatpush1.msra.mxu0 %v1164
    %3551 = vmatprep.subr.mxu0 0.0
    %3552 = vmatpush1.msra.mxu0 0.0
    %3553 = vmatprep.subr.mxu0 0.0
    %3554 = vmatpush1.msra.mxu0 0.0
    %3555 = vmatprep.subr.mxu0 0.0
    %3556 = vmatpush1.msra.mxu0 0.0
    %3557 = vmatprep.subr.mxu0 0.0
    %3558 = vmatpush1.msra.mxu0 0.0
    %3559 = vmatprep.subr.mxu0 0.0
    %3560 = vmatpush1.msra.mxu0 0.0
    %3561 = vmatprep.subr.mxu0 0.0
    %3562 = vmatpush1.msra.mxu0 0.0
    %3563 = vmatprep.subr.mxu0 0.0
    %3564 = vmatpush1.msra.mxu0 0.0
    %3565 = vmatprep.subr.mxu0 0.0
    %3566 = vmatpush1.msra.mxu0 0.0
    %3567 = vmatprep.subr.mxu0 0.0
    %3568 = vmatpush1.msra.mxu0 0.0
    %3569 = vmatprep.subr.mxu0 0.0
    %3570 = vmatpush1.msra.mxu0 0.0
    %3571 = vmatprep.subr.mxu0 0.0
    %3572 = vmatpush1.msra.mxu0 0.0
    %3573 = vmatprep.subr.mxu0 0.0
    %3574 = vmatpush1.msra.mxu0 0.0
    %3575 = vmatprep.subr.mxu0 0.0
    %3576 = vmatpush1.msra.mxu0 0.0
    %3577 = vmatprep.subr.mxu0 0.0
    %3578 = vmatpush1.msra.mxu0 0.0
    %3579 = vmatprep.subr.mxu0 0.0
    %3580 = vmatpush1.msra.mxu0 0.0
    %3581 = vmatprep.subr.mxu0 0.0
    %3582 = vmatpush1.msra.mxu0 0.0
    %3583 = vmatprep.subr.mxu0 0.0
    %3584 = vmatpush1.msra.mxu0 0.0
    %3585 = vmatprep.subr.mxu0 0.0
    %3586 = vmatpush1.msra.mxu0 0.0
    %3587 = vmatprep.subr.mxu0 0.0
    %3588 = vmatpush1.msra.mxu0 0.0
    %3589 = vmatprep.subr.mxu0 0.0
    %3590 = vmatpush1.msra.mxu0 0.0
    %3591 = vmatprep.subr.mxu0 0.0
    %3592 = vmatpush1.msra.mxu0 0.0
    %3593 = vmatprep.subr.mxu0 0.0
    %3594 = vmatpush1.msra.mxu0 0.0
    %3595 = vmatprep.subr.mxu0 0.0
    %3596 = vmatpush1.msra.mxu0 0.0
    %3597 = vmatprep.subr.mxu0 0.0
    %3598 = vmatpush1.msra.mxu0 0.0
    %3599 = vmatprep.subr.mxu0 0.0
    %3600 = vmatpush1.msra.mxu0 0.0
    %3601 = vmatprep.subr.mxu0 0.0
    %3602 = vmatpush1.msra.mxu0 0.0
    %3603 = vmatprep.subr.mxu0 0.0
    %3604 = vmatpush1.msra.mxu0 0.0
    %3605 = vmatprep.subr.mxu0 0.0
    %3606 = vmatpush1.msra.mxu0 0.0
    %3607 = vmatprep.subr.mxu0 0.0
    %3608 = vmatpush1.msra.mxu0 0.0
    %3609 = vmatprep.subr.mxu0 0.0
    %3610 = vmatpush1.msra.mxu0 0.0
    %3611 = vmatprep.subr.mxu0 0.0
    %3612 = vmatpush1.msra.mxu0 0.0
    %3613 = vmatprep.mubr.f32.mxu0 0.0
    %3614 = vmatmul.mubr.f32.gmra.mrb[0].mxu0 %v3544
    %v3615 = vpop.f32.mrb[0].mxu0
    %v3616 = vadd.f32 %v1154, %v3615
    %v3617 = vpop.f32.mrb[0].mxu0
    %3618 = vmatprep.mubr.f32.mxu0 0.0
    %3619 = vmatmul.mubr.f32.gmra.mrb[0].mxu0 %v3547
    %v3620 = vpop.f32.mrb[0].mxu0
    %v3621 = vadd.f32 %v1154, %v3620
    %v3622 = vpop.f32.mrb[0].mxu0
    %3623 = vdwg.mxu0
    %3626 = vrot.lane.b32.xlu0 %v3616, 16
    %v3627 = vpop.permute.xlu0 %3626
    %3628 = vrot.lane.b32.xlu0 %v3621, 16
    %v3629 = vpop.permute.xlu0 %3628
    %v3632 = vadd.f32 %v3541, %v3627
    %v3633 = vadd.f32 %v3542, %v3629
    %3635 = vrot.lane.b32.xlu0 %v3541, 112
    %v3636 = vpop.permute.xlu0 %3635
    %s3638 = scalar_lea.vmem [#allocation4], 16
    %3639 = vst.msk [vmem:[%s3638] sm:$0xff] %vm450, %v3636
    %s3640 = scalar_lea.vmem [#allocation6], 16
    %3641 = vst.msk [vmem:[%s3640] sm:$0xff] %vm450, %v3616
    %3643 = vrot.lane.b32.xlu0 %v3632, 112
    %v3644 = vpop.permute.xlu0 %3643
    %s3646 = scalar_lea.vmem [#allocation2], 16
    %3647 = vst.msk [vmem:[%s3646] sm:$0xff] %vm450, %v3644
    %3649 = vrot.lane.b32.xlu0 %v3542, 112
    %v3650 = vpop.permute.xlu0 %3649
    %s3652 = scalar_lea.vmem [#allocation4], 48
    %3653 = vst.msk [vmem:[%s3652] sm:$0xff] %vm450, %v3650
    %s3654 = scalar_lea.vmem [#allocation6], 48
    %3655 = vst.msk [vmem:[%s3654] sm:$0xff] %vm450, %v3621
    %3657 = vrot.lane.b32.xlu0 %v3633, 112
    %v3658 = vpop.permute.xlu0 %3657
    %s3660 = scalar_lea.vmem [#allocation2], 48
    %3661 = vst.msk [vmem:[%s3660] sm:$0xff] %vm450, %v3658
    %s3662 = scalar_lea.vmem %s0, 48
    %v3663 = vld [vmem:[%s3662] sm:$0xff]
    %v3664 = vld [vmem:[%s3662 + $0x8] sm:$0xff]
    %s3665 = scalar_lea.vmem %s2, 24
    %v3666 = vld [vmem:[%s3665] sm:$0xff]
    %s3667 = scalar_lea.vmem %s3, 48
    %v3668 = vld [vmem:[%s3667] sm:$0xff]
    %v3669 = vld [vmem:[%s3667 + $0x8] sm:$0xff]
    %v3671 = vsel %vm61, %v3666, 0
    %3673 = vmatprep.subr.mxu0 0.0
    %3674 = vmatpush1.xpose.msra.mxu0 %v3671
    %3675 = vmatprep.subr.mxu0 0.0
    %3676 = vmatpush1.xpose.msra.mxu0 0.0
    %3677 = vmatprep.subr.mxu0 0.0
    %3678 = vmatpush1.xpose.msra.mxu0 0.0
    %3679 = vmatprep.subr.mxu0 0.0
    %3680 = vmatpush1.xpose.msra.mxu0 0.0
    %3681 = vmatprep.subr.mxu0 0.0
    %3682 = vmatpush1.xpose.msra.mxu0 0.0
    %3683 = vmatprep.subr.mxu0 0.0
    %3684 = vmatpush1.xpose.msra.mxu0 0.0
    %3685 = vmatprep.subr.mxu0 0.0
    %3686 = vmatpush1.xpose.msra.mxu0 0.0
    %3687 = vmatprep.subr.mxu0 0.0
    %3688 = vmatpush1.xpose.msra.mxu0 0.0
    %3689 = vmatprep.subr.mxu0 0.0
    %3690 = vmatpush1.xpose.msra.mxu0 0.0
    %3691 = vmatprep.subr.mxu0 0.0
    %3692 = vmatpush1.xpose.msra.mxu0 0.0
    %3693 = vmatprep.subr.mxu0 0.0
    %3694 = vmatpush1.xpose.msra.mxu0 0.0
    %3695 = vmatprep.subr.mxu0 0.0
    %3696 = vmatpush1.xpose.msra.mxu0 0.0
    %3697 = vmatprep.subr.mxu0 0.0
    %3698 = vmatpush1.xpose.msra.mxu0 0.0
    %3699 = vmatprep.subr.mxu0 0.0
    %3700 = vmatpush1.xpose.msra.mxu0 0.0
    %3701 = vmatprep.subr.mxu0 0.0
    %3702 = vmatpush1.xpose.msra.mxu0 0.0
    %3703 = vmatprep.subr.mxu0 0.0
    %3704 = vmatpush1.xpose.msra.mxu0 0.0
    %3705 = vmatprep.subr.mxu0 0.0
    %3706 = vmatpush1.xpose.msra.mxu0 0.0
    %3707 = vmatprep.subr.mxu0 0.0
    %3708 = vmatpush1.xpose.msra.mxu0 0.0
    %3709 = vmatprep.subr.mxu0 0.0
    %3710 = vmatpush1.xpose.msra.mxu0 0.0
    %3711 = vmatprep.subr.mxu0 0.0
    %3712 = vmatpush1.xpose.msra.mxu0 0.0
    %3713 = vmatprep.subr.mxu0 0.0
    %3714 = vmatpush1.xpose.msra.mxu0 0.0
    %3715 = vmatprep.subr.mxu0 0.0
    %3716 = vmatpush1.xpose.msra.mxu0 0.0
    %3717 = vmatprep.subr.mxu0 0.0
    %3718 = vmatpush1.xpose.msra.mxu0 0.0
    %3719 = vmatprep.subr.mxu0 0.0
    %3720 = vmatpush1.xpose.msra.mxu0 0.0
    %3721 = vmatprep.subr.mxu0 0.0
    %3722 = vmatpush1.xpose.msra.mxu0 0.0
    %3723 = vmatprep.subr.mxu0 0.0
    %3724 = vmatpush1.xpose.msra.mxu0 0.0
    %3725 = vmatprep.subr.mxu0 0.0
    %3726 = vmatpush1.xpose.msra.mxu0 0.0
    %3727 = vmatprep.subr.mxu0 0.0
    %3728 = vmatpush1.xpose.msra.mxu0 0.0
    %3729 = vmatprep.subr.mxu0 0.0
    %3730 = vmatpush1.xpose.msra.mxu0 0.0
    %3731 = vmatprep.subr.mxu0 0.0
    %3732 = vmatpush1.xpose.msra.mxu0 0.0
    %3733 = vmatprep.subr.mxu0 0.0
    %3734 = vmatpush1.xpose.msra.mxu0 0.0
    %3735 = vmatprep.subr.mxu0 0.0
    %3736 = vmatpush1.xpose.msra.mxu0 0.0
    %3737 = vmatprep.mubr.f32.mxu0 0.0
    %3738 = vmatmul.mubr.f32.gmra.mrb[0].mxu0 %v3671
    %v3739 = vpop.f32.mrb[0].mxu0
    %v3740 = vadd.f32 0.0, %v3739
    %v3741 = vpop.f32.mrb[0].mxu0
    %3742 = vdwg.mxu0
    %v3743 = vmax.f32 %v3740, 0.0
    %v3744 = vsel %vm136, %v3743, -inf
    %3745 = vmax.xlane.f32.xlu0 %v3744
    %v3746 = vpop.xlane.xlu0 %3745
    %v3747 = vsub.f32 %v3743, %v3746
    %v3748 = vmul.f32 %v3747, 1.442695
    %v3749 = vpow.pop %v3748
    %v3750 = vsel %vm136, %v3749, 0.0
    %3751 = vadd.xlane.f32.xlu0 %v3750
    %v3752 = vpop.xlane.xlu0 %3751
    %v3753 = vrcp.pop %v3752
    %v3754 = vmul.f32 %v3749, %v3753
    %v3756 = vsel %vm136, %v3754, 0
    %3758 = vmatprep.subr.mxu0 0.0
    %3759 = vmatpush1.msra.mxu0 %v3663
    %3760 = vmatprep.subr.mxu0 0.0
    %3761 = vmatpush1.msra.mxu0 0.0
    %3762 = vmatprep.subr.mxu0 0.0
    %3763 = vmatpush1.msra.mxu0 0.0
    %3764 = vmatprep.subr.mxu0 0.0
    %3765 = vmatpush1.msra.mxu0 0.0
    %3766 = vmatprep.subr.mxu0 0.0
    %3767 = vmatpush1.msra.mxu0 0.0
    %3768 = vmatprep.subr.mxu0 0.0
    %3769 = vmatpush1.msra.mxu0 0.0
    %3770 = vmatprep.subr.mxu0 0.0
    %3771 = vmatpush1.msra.mxu0 0.0
    %3772 = vmatprep.subr.mxu0 0.0
    %3773 = vmatpush1.msra.mxu0 0.0
    %3774 = vmatprep.subr.mxu0 0.0
    %3775 = vmatpush1.msra.mxu0 0.0
    %3776 = vmatprep.subr.mxu0 0.0
    %3777 = vmatpush1.msra.mxu0 0.0
    %3778 = vmatprep.subr.mxu0 0.0
    %3779 = vmatpush1.msra.mxu0 0.0
    %3780 = vmatprep.subr.mxu0 0.0
    %3781 = vmatpush1.msra.mxu0 0.0
    %3782 = vmatprep.subr.mxu0 0.0
    %3783 = vmatpush1.msra.mxu0 0.0
    %3784 = vmatprep.subr.mxu0 0.0
    %3785 = vmatpush1.msra.mxu0 0.0
    %3786 = vmatprep.subr.mxu0 0.0
    %3787 = vmatpush1.msra.mxu0 0.0
    %3788 = vmatprep.subr.mxu0 0.0
    %3789 = vmatpush1.msra.mxu0 0.0
    %3790 = vmatprep.subr.mxu0 0.0
    %3791 = vmatpush1.msra.mxu0 0.0
    %3792 = vmatprep.subr.mxu0 0.0
    %3793 = vmatpush1.msra.mxu0 0.0
    %3794 = vmatprep.subr.mxu0 0.0
    %3795 = vmatpush1.msra.mxu0 0.0
    %3796 = vmatprep.subr.mxu0 0.0
    %3797 = vmatpush1.msra.mxu0 0.0
    %3798 = vmatprep.subr.mxu0 0.0
    %3799 = vmatpush1.msra.mxu0 0.0
    %3800 = vmatprep.subr.mxu0 0.0
    %3801 = vmatpush1.msra.mxu0 0.0
    %3802 = vmatprep.subr.mxu0 0.0
    %3803 = vmatpush1.msra.mxu0 0.0
    %3804 = vmatprep.subr.mxu0 0.0
    %3805 = vmatpush1.msra.mxu0 0.0
    %3806 = vmatprep.subr.mxu0 0.0
    %3807 = vmatpush1.msra.mxu0 0.0
    %3808 = vmatprep.subr.mxu0 0.0
    %3809 = vmatpush1.msra.mxu0 0.0
    %3810 = vmatprep.subr.mxu0 0.0
    %3811 = vmatpush1.msra.mxu0 0.0
    %3812 = vmatprep.subr.mxu0 0.0
    %3813 = vmatpush1.msra.mxu0 0.0
    %3814 = vmatprep.subr.mxu0 0.0
    %3815 = vmatpush1.msra.mxu0 0.0
    %3816 = vmatprep.subr.mxu0 0.0
    %3817 = vmatpush1.msra.mxu0 0.0
    %3818 = vmatprep.subr.mxu0 0.0
    %3819 = vmatpush1.msra.mxu0 0.0
    %3820 = vmatprep.subr.mxu0 0.0
    %3821 = vmatpush1.msra.mxu0 0.0
    %3822 = vmatprep.mubr.f32.mxu0 0.0
    %3823 = vmatmul.mubr.f32.gmra.mrb[0].mxu0 %v3756
    %v3824 = vpop.f32.mrb[0].mxu0
    %v3825 = vadd.f32 0.0, %v3824
    %v3826 = vpop.f32.mrb[0].mxu0
    %3827 = vdwg.mxu0
    %3828 = vmatprep.subr.mxu0 0.0
    %3829 = vmatpush1.msra.mxu0 %v3664
    %3830 = vmatprep.subr.mxu0 0.0
    %3831 = vmatpush1.msra.mxu0 0.0
    %3832 = vmatprep.subr.mxu0 0.0
    %3833 = vmatpush1.msra.mxu0 0.0
    %3834 = vmatprep.subr.mxu0 0.0
    %3835 = vmatpush1.msra.mxu0 0.0
    %3836 = vmatprep.subr.mxu0 0.0
    %3837 = vmatpush1.msra.mxu0 0.0
    %3838 = vmatprep.subr.mxu0 0.0
    %3839 = vmatpush1.msra.mxu0 0.0
    %3840 = vmatprep.subr.mxu0 0.0
    %3841 = vmatpush1.msra.mxu0 0.0
    %3842 = vmatprep.subr.mxu0 0.0
    %3843 = vmatpush1.msra.mxu0 0.0
    %3844 = vmatprep.subr.mxu0 0.0
    %3845 = vmatpush1.msra.mxu0 0.0
    %3846 = vmatprep.subr.mxu0 0.0
    %3847 = vmatpush1.msra.mxu0 0.0
    %3848 = vmatprep.subr.mxu0 0.0
    %3849 = vmatpush1.msra.mxu0 0.0
    %3850 = vmatprep.subr.mxu0 0.0
    %3851 = vmatpush1.msra.mxu0 0.0
    %3852 = vmatprep.subr.mxu0 0.0
    %3853 = vmatpush1.msra.mxu0 0.0
    %3854 = vmatprep.subr.mxu0 0.0
    %3855 = vmatpush1.msra.mxu0 0.0
    %3856 = vmatprep.subr.mxu0 0.0
    %3857 = vmatpush1.msra.mxu0 0.0
    %3858 = vmatprep.subr.mxu0 0.0
    %3859 = vmatpush1.msra.mxu0 0.0
    %3860 = vmatprep.subr.mxu0 0.0
    %3861 = vmatpush1.msra.mxu0 0.0
    %3862 = vmatprep.subr.mxu0 0.0
    %3863 = vmatpush1.msra.mxu0 0.0
    %3864 = vmatprep.subr.mxu0 0.0
    %3865 = vmatpush1.msra.mxu0 0.0
    %3866 = vmatprep.subr.mxu0 0.0
    %3867 = vmatpush1.msra.mxu0 0.0
    %3868 = vmatprep.subr.mxu0 0.0
    %3869 = vmatpush1.msra.mxu0 0.0
    %3870 = vmatprep.subr.mxu0 0.0
    %3871 = vmatpush1.msra.mxu0 0.0
    %3872 = vmatprep.subr.mxu0 0.0
    %3873 = vmatpush1.msra.mxu0 0.0
    %3874 = vmatprep.subr.mxu0 0.0
    %3875 = vmatpush1.msra.mxu0 0.0
    %3876 = vmatprep.subr.mxu0 0.0
    %3877 = vmatpush1.msra.mxu0 0.0
    %3878 = vmatprep.subr.mxu0 0.0
    %3879 = vmatpush1.msra.mxu0 0.0
    %3880 = vmatprep.subr.mxu0 0.0
    %3881 = vmatpush1.msra.mxu0 0.0
    %3882 = vmatprep.subr.mxu0 0.0
    %3883 = vmatpush1.msra.mxu0 0.0
    %3884 = vmatprep.subr.mxu0 0.0
    %3885 = vmatpush1.msra.mxu0 0.0
    %3886 = vmatprep.subr.mxu0 0.0
    %3887 = vmatpush1.msra.mxu0 0.0
    %3888 = vmatprep.subr.mxu0 0.0
    %3889 = vmatpush1.msra.mxu0 0.0
    %3890 = vmatprep.subr.mxu0 0.0
    %3891 = vmatpush1.msra.mxu0 0.0
    %3892 = vmatprep.mubr.f32.mxu0 0.0
    %3893 = vmatmul.mubr.f32.gmra.mrb[0].mxu0 %v3756
    %v3894 = vpop.f32.mrb[0].mxu0
    %v3895 = vadd.f32 0.0, %v3894
    %v3896 = vpop.f32.mrb[0].mxu0
    %3897 = vdwg.mxu0
    %3900 = vrot.lane.b32.xlu0 %v3825, 2
    %v3901 = vpop.permute.xlu0 %3900
    %3902 = vrot.lane.b32.xlu0 %v3895, 2
    %v3903 = vpop.permute.xlu0 %3902
    %v3906 = vsel %vm299, %v3663, %v3901
    %v3907 = vsel %vm299, %v3664, %v3903
    %3908 = vmatprep.subr.mxu0 0.0
    %3909 = vmatpush1.msra.mxu0 %v3636
    %3910 = vmatprep.subr.mxu0 0.0
    %3911 = vmatpush1.msra.mxu0 0.0
    %3912 = vmatprep.subr.mxu0 0.0
    %3913 = vmatpush1.msra.mxu0 0.0
    %3914 = vmatprep.subr.mxu0 0.0
    %3915 = vmatpush1.msra.mxu0 0.0
    %3916 = vmatprep.subr.mxu0 0.0
    %3917 = vmatpush1.msra.mxu0 0.0
    %3918 = vmatprep.subr.mxu0 0.0
    %3919 = vmatpush1.msra.mxu0 0.0
    %3920 = vmatprep.subr.mxu0 0.0
    %3921 = vmatpush1.msra.mxu0 0.0
    %3922 = vmatprep.subr.mxu0 0.0
    %3923 = vmatpush1.msra.mxu0 0.0
    %3924 = vmatprep.subr.mxu0 0.0
    %3925 = vmatpush1.msra.mxu0 0.0
    %3926 = vmatprep.subr.mxu0 0.0
    %3927 = vmatpush1.msra.mxu0 0.0
    %3928 = vmatprep.subr.mxu0 0.0
    %3929 = vmatpush1.msra.mxu0 0.0
    %3930 = vmatprep.subr.mxu0 0.0
    %3931 = vmatpush1.msra.mxu0 0.0
    %3932 = vmatprep.subr.mxu0 0.0
    %3933 = vmatpush1.msra.mxu0 0.0
    %3934 = vmatprep.subr.mxu0 0.0
    %3935 = vmatpush1.msra.mxu0 0.0
    %3936 = vmatprep.subr.mxu0 0.0
    %3937 = vmatpush1.msra.mxu0 0.0
    %3938 = vmatprep.subr.mxu0 0.0
    %3939 = vmatpush1.msra.mxu0 0.0
    %3940 = vmatprep.subr.mxu0 0.0
    %3941 = vmatpush1.msra.mxu0 0.0
    %3942 = vmatprep.subr.mxu0 0.0
    %3943 = vmatpush1.msra.mxu0 0.0
    %3944 = vmatprep.subr.mxu0 0.0
    %3945 = vmatpush1.msra.mxu0 0.0
    %3946 = vmatprep.subr.mxu0 0.0
    %3947 = vmatpush1.msra.mxu0 0.0
    %3948 = vmatprep.subr.mxu0 0.0
    %3949 = vmatpush1.msra.mxu0 0.0
    %3950 = vmatprep.subr.mxu0 0.0
    %3951 = vmatpush1.msra.mxu0 0.0
    %3952 = vmatprep.subr.mxu0 0.0
    %3953 = vmatpush1.msra.mxu0 0.0
    %3954 = vmatprep.subr.mxu0 0.0
    %3955 = vmatpush1.msra.mxu0 0.0
    %3956 = vmatprep.subr.mxu0 0.0
    %3957 = vmatpush1.msra.mxu0 0.0
    %3958 = vmatprep.subr.mxu0 0.0
    %3959 = vmatpush1.msra.mxu0 0.0
    %3960 = vmatprep.subr.mxu0 0.0
    %3961 = vmatpush1.msra.mxu0 0.0
    %3962 = vmatprep.subr.mxu0 0.0
    %3963 = vmatpush1.msra.mxu0 0.0
    %3964 = vmatprep.subr.mxu0 0.0
    %3965 = vmatpush1.msra.mxu0 0.0
    %3966 = vmatprep.subr.mxu0 0.0
    %3967 = vmatpush1.msra.mxu0 0.0
    %3968 = vmatprep.subr.mxu0 0.0
    %3969 = vmatpush1.msra.mxu0 0.0
    %3970 = vmatprep.subr.mxu0 0.0
    %3971 = vmatpush1.msra.mxu0 0.0
    %3972 = vmatprep.mubr.f32.mxu0 0.0
    %3973 = vmatmul.mubr.f32.gmra.mrb[0].mxu0 %v3756
    %v3974 = vpop.f32.mrb[0].mxu0
    %v3975 = vadd.f32 0.0, %v3974
    %v3976 = vpop.f32.mrb[0].mxu0
    %3977 = vdwg.mxu0
    %3978 = vmatprep.subr.mxu0 0.0
    %3979 = vmatpush1.msra.mxu0 %v3650
    %3980 = vmatprep.subr.mxu0 0.0
    %3981 = vmatpush1.msra.mxu0 0.0
    %3982 = vmatprep.subr.mxu0 0.0
    %3983 = vmatpush1.msra.mxu0 0.0
    %3984 = vmatprep.subr.mxu0 0.0
    %3985 = vmatpush1.msra.mxu0 0.0
    %3986 = vmatprep.subr.mxu0 0.0
    %3987 = vmatpush1.msra.mxu0 0.0
    %3988 = vmatprep.subr.mxu0 0.0
    %3989 = vmatpush1.msra.mxu0 0.0
    %3990 = vmatprep.subr.mxu0 0.0
    %3991 = vmatpush1.msra.mxu0 0.0
    %3992 = vmatprep.subr.mxu0 0.0
    %3993 = vmatpush1.msra.mxu0 0.0
    %3994 = vmatprep.subr.mxu0 0.0
    %3995 = vmatpush1.msra.mxu0 0.0
    %3996 = vmatprep.subr.mxu0 0.0
    %3997 = vmatpush1.msra.mxu0 0.0
    %3998 = vmatprep.subr.mxu0 0.0
    %3999 = vmatpush1.msra.mxu0 0.0
    %4000 = vmatprep.subr.mxu0 0.0
    %4001 = vmatpush1.msra.mxu0 0.0
    %4002 = vmatprep.subr.mxu0 0.0
    %4003 = vmatpush1.msra.mxu0 0.0
    %4004 = vmatprep.subr.mxu0 0.0
    %4005 = vmatpush1.msra.mxu0 0.0
    %4006 = vmatprep.subr.mxu0 0.0
    %4007 = vmatpush1.msra.mxu0 0.0
    %4008 = vmatprep.subr.mxu0 0.0
    %4009 = vmatpush1.msra.mxu0 0.0
    %4010 = vmatprep.subr.mxu0 0.0
    %4011 = vmatpush1.msra.mxu0 0.0
    %4012 = vmatprep.subr.mxu0 0.0
    %4013 = vmatpush1.msra.mxu0 0.0
    %4014 = vmatprep.subr.mxu0 0.0
    %4015 = vmatpush1.msra.mxu0 0.0
    %4016 = vmatprep.subr.mxu0 0.0
    %4017 = vmatpush1.msra.mxu0 0.0
    %4018 = vmatprep.subr.mxu0 0.0
    %4019 = vmatpush1.msra.mxu0 0.0
    %4020 = vmatprep.subr.mxu0 0.0
    %4021 = vmatpush1.msra.mxu0 0.0
    %4022 = vmatprep.subr.mxu0 0.0
    %4023 = vmatpush1.msra.mxu0 0.0
    %4024 = vmatprep.subr.mxu0 0.0
    %4025 = vmatpush1.msra.mxu0 0.0
    %4026 = vmatprep.subr.mxu0 0.0
    %4027 = vmatpush1.msra.mxu0 0.0
    %4028 = vmatprep.subr.mxu0 0.0
    %4029 = vmatpush1.msra.mxu0 0.0
    %4030 = vmatprep.subr.mxu0 0.0
    %4031 = vmatpush1.msra.mxu0 0.0
    %4032 = vmatprep.subr.mxu0 0.0
    %4033 = vmatpush1.msra.mxu0 0.0
    %4034 = vmatprep.subr.mxu0 0.0
    %4035 = vmatpush1.msra.mxu0 0.0
    %4036 = vmatprep.subr.mxu0 0.0
    %4037 = vmatpush1.msra.mxu0 0.0
    %4038 = vmatprep.subr.mxu0 0.0
    %4039 = vmatpush1.msra.mxu0 0.0
    %4040 = vmatprep.subr.mxu0 0.0
    %4041 = vmatpush1.msra.mxu0 0.0
    %4042 = vmatprep.mubr.f32.mxu0 0.0
    %4043 = vmatmul.mubr.f32.gmra.mrb[0].mxu0 %v3756
    %v4044 = vpop.f32.mrb[0].mxu0
    %v4045 = vadd.f32 0.0, %v4044
    %v4046 = vpop.f32.mrb[0].mxu0
    %4047 = vdwg.mxu0
    %4050 = vrot.lane.b32.xlu0 %v3975, 16
    %v4051 = vpop.permute.xlu0 %4050
    %4052 = vrot.lane.b32.xlu0 %v4045, 16
    %v4053 = vpop.permute.xlu0 %4052
    %v4056 = vsel %vm450, %v3636, %v4051
    %v4057 = vsel %vm450, %v3650, %v4053
    %v4059 = vsel %vm61, %v3906, 0
    %v4062 = vsel %vm61, %v3907, 0
    %4064 = vmatprep.subr.mxu0 %v464
    %4065 = vmatpush1.msra.mxu0 %v462
    %4066 = vmatprep.subr.mxu0 0.0
    %4067 = vmatpush1.msra.mxu0 0.0
    %4068 = vmatprep.subr.mxu0 0.0
    %4069 = vmatpush1.msra.mxu0 0.0
    %4070 = vmatprep.subr.mxu0 0.0
    %4071 = vmatpush1.msra.mxu0 0.0
    %4072 = vmatprep.subr.mxu0 0.0
    %4073 = vmatpush1.msra.mxu0 0.0
    %4074 = vmatprep.subr.mxu0 0.0
    %4075 = vmatpush1.msra.mxu0 0.0
    %4076 = vmatprep.subr.mxu0 0.0
    %4077 = vmatpush1.msra.mxu0 0.0
    %4078 = vmatprep.subr.mxu0 0.0
    %4079 = vmatpush1.msra.mxu0 0.0
    %4080 = vmatprep.subr.mxu0 0.0
    %4081 = vmatpush1.msra.mxu0 0.0
    %4082 = vmatprep.subr.mxu0 0.0
    %4083 = vmatpush1.msra.mxu0 0.0
    %4084 = vmatprep.subr.mxu0 0.0
    %4085 = vmatpush1.msra.mxu0 0.0
    %4086 = vmatprep.subr.mxu0 0.0
    %4087 = vmatpush1.msra.mxu0 0.0
    %4088 = vmatprep.subr.mxu0 0.0
    %4089 = vmatpush1.msra.mxu0 0.0
    %4090 = vmatprep.subr.mxu0 0.0
    %4091 = vmatpush1.msra.mxu0 0.0
    %4092 = vmatprep.subr.mxu0 0.0
    %4093 = vmatpush1.msra.mxu0 0.0
    %4094 = vmatprep.subr.mxu0 0.0
    %4095 = vmatpush1.msra.mxu0 0.0
    %4096 = vmatprep.subr.mxu0 0.0
    %4097 = vmatpush1.msra.mxu0 0.0
    %4098 = vmatprep.subr.mxu0 0.0
    %4099 = vmatpush1.msra.mxu0 0.0
    %4100 = vmatprep.subr.mxu0 0.0
    %4101 = vmatpush1.msra.mxu0 0.0
    %4102 = vmatprep.subr.mxu0 0.0
    %4103 = vmatpush1.msra.mxu0 0.0
    %4104 = vmatprep.subr.mxu0 0.0
    %4105 = vmatpush1.msra.mxu0 0.0
    %4106 = vmatprep.subr.mxu0 0.0
    %4107 = vmatpush1.msra.mxu0 0.0
    %4108 = vmatprep.subr.mxu0 0.0
    %4109 = vmatpush1.msra.mxu0 0.0
    %4110 = vmatprep.subr.mxu0 0.0
    %4111 = vmatpush1.msra.mxu0 0.0
    %4112 = vmatprep.subr.mxu0 0.0
    %4113 = vmatpush1.msra.mxu0 0.0
    %4114 = vmatprep.subr.mxu0 0.0
    %4115 = vmatpush1.msra.mxu0 0.0
    %4116 = vmatprep.subr.mxu0 0.0
    %4117 = vmatpush1.msra.mxu0 0.0
    %4118 = vmatprep.subr.mxu0 0.0
    %4119 = vmatpush1.msra.mxu0 0.0
    %4120 = vmatprep.subr.mxu0 0.0
    %4121 = vmatpush1.msra.mxu0 0.0
    %4122 = vmatprep.subr.mxu0 0.0
    %4123 = vmatpush1.msra.mxu0 0.0
    %4124 = vmatprep.subr.mxu0 0.0
    %4125 = vmatpush1.msra.mxu0 0.0
    %4126 = vmatprep.subr.mxu0 0.0
    %4127 = vmatpush1.msra.mxu0 0.0
    %4128 = vmatprep.mubr.f32.mxu0 0.0
    %4129 = vmatmul.mubr.f32.gmra.mrb[0].mxu0 %v4059
    %v4130 = vpop.f32.mrb[0].mxu0
    %v4131 = vadd.f32 0.0, %v4130
    %v4132 = vpop.f32.mrb[0].mxu0
    %v4133 = vadd.f32 0.0, %v4132
    %4134 = vmatprep.mubr.f32.mxu0 0.0
    %4135 = vmatmul.mubr.f32.gmra.mrb[0].mxu0 %v4062
    %v4136 = vpop.f32.mrb[0].mxu0
    %v4137 = vadd.f32 0.0, %v4136
    %v4138 = vpop.f32.mrb[0].mxu0
    %v4139 = vadd.f32 0.0, %v4138
    %4140 = vdwg.mxu0
    %v4142 = vsel %vm543, %v4056, 0
    %v4145 = vsel %vm543, %v4057, 0
    %4147 = vmatprep.subr.mxu0 0.0
    %4148 = vmatpush1.msra.mxu0 %v43
    %4149 = vmatprep.subr.mxu0 0.0
    %4150 = vmatpush1.msra.mxu0 %v44
    %4151 = vmatprep.subr.mxu0 0.0
    %4152 = vmatpush1.msra.mxu0 %v45
    %4153 = vmatprep.subr.mxu0 0.0
    %4154 = vmatpush1.msra.mxu0 %v46
    %4155 = vmatprep.subr.mxu0 0.0
    %4156 = vmatpush1.msra.mxu0 0.0
    %4157 = vmatprep.subr.mxu0 0.0
    %4158 = vmatpush1.msra.mxu0 0.0
    %4159 = vmatprep.subr.mxu0 0.0
    %4160 = vmatpush1.msra.mxu0 0.0
    %4161 = vmatprep.subr.mxu0 0.0
    %4162 = vmatpush1.msra.mxu0 0.0
    %4163 = vmatprep.subr.mxu0 0.0
    %4164 = vmatpush1.msra.mxu0 0.0
    %4165 = vmatprep.subr.mxu0 0.0
    %4166 = vmatpush1.msra.mxu0 0.0
    %4167 = vmatprep.subr.mxu0 0.0
    %4168 = vmatpush1.msra.mxu0 0.0
    %4169 = vmatprep.subr.mxu0 0.0
    %4170 = vmatpush1.msra.mxu0 0.0
    %4171 = vmatprep.subr.mxu0 0.0
    %4172 = vmatpush1.msra.mxu0 0.0
    %4173 = vmatprep.subr.mxu0 0.0
    %4174 = vmatpush1.msra.mxu0 0.0
    %4175 = vmatprep.subr.mxu0 0.0
    %4176 = vmatpush1.msra.mxu0 0.0
    %4177 = vmatprep.subr.mxu0 0.0
    %4178 = vmatpush1.msra.mxu0 0.0
    %4179 = vmatprep.subr.mxu0 0.0
    %4180 = vmatpush1.msra.mxu0 0.0
    %4181 = vmatprep.subr.mxu0 0.0
    %4182 = vmatpush1.msra.mxu0 0.0
    %4183 = vmatprep.subr.mxu0 0.0
    %4184 = vmatpush1.msra.mxu0 0.0
    %4185 = vmatprep.subr.mxu0 0.0
    %4186 = vmatpush1.msra.mxu0 0.0
    %4187 = vmatprep.subr.mxu0 0.0
    %4188 = vmatpush1.msra.mxu0 0.0
    %4189 = vmatprep.subr.mxu0 0.0
    %4190 = vmatpush1.msra.mxu0 0.0
    %4191 = vmatprep.subr.mxu0 0.0
    %4192 = vmatpush1.msra.mxu0 0.0
    %4193 = vmatprep.subr.mxu0 0.0
    %4194 = vmatpush1.msra.mxu0 0.0
    %4195 = vmatprep.subr.mxu0 0.0
    %4196 = vmatpush1.msra.mxu0 0.0
    %4197 = vmatprep.subr.mxu0 0.0
    %4198 = vmatpush1.msra.mxu0 0.0
    %4199 = vmatprep.subr.mxu0 0.0
    %4200 = vmatpush1.msra.mxu0 0.0
    %4201 = vmatprep.subr.mxu0 0.0
    %4202 = vmatpush1.msra.mxu0 0.0
    %4203 = vmatprep.subr.mxu0 0.0
    %4204 = vmatpush1.msra.mxu0 0.0
    %4205 = vmatprep.subr.mxu0 0.0
    %4206 = vmatpush1.msra.mxu0 0.0
    %4207 = vmatprep.subr.mxu0 0.0
    %4208 = vmatpush1.msra.mxu0 0.0
    %4209 = vmatprep.subr.mxu0 0.0
    %4210 = vmatpush1.msra.mxu0 0.0
    %4211 = vmatprep.mubr.f32.mxu0 0.0
    %4212 = vmatmul.mubr.f32.gmra.mrb[0].mxu0 %v4142
    %v4213 = vpop.f32.mrb[0].mxu0
    %v4214 = vadd.f32 0.0, %v4213
    %v4215 = vpop.f32.mrb[0].mxu0
    %4216 = vmatprep.mubr.f32.mxu0 0.0
    %4217 = vmatmul.mubr.f32.gmra.mrb[0].mxu0 %v4145
    %v4218 = vpop.f32.mrb[0].mxu0
    %v4219 = vadd.f32 0.0, %v4218
    %v4220 = vpop.f32.mrb[0].mxu0
    %4221 = vdwg.mxu0
    %v4223 = vsel %vm61, %v3668, 0
    %v4226 = vsel %vm61, %v3669, 0
    %4228 = vmatprep.subr.mxu0 0.0
    %4229 = vmatpush1.msra.mxu0 %v632
    %4230 = vmatprep.subr.mxu0 0.0
    %4231 = vmatpush1.msra.mxu0 0.0
    %4232 = vmatprep.subr.mxu0 0.0
    %4233 = vmatpush1.msra.mxu0 0.0
    %4234 = vmatprep.subr.mxu0 0.0
    %4235 = vmatpush1.msra.mxu0 0.0
    %4236 = vmatprep.subr.mxu0 0.0
    %4237 = vmatpush1.msra.mxu0 0.0
    %4238 = vmatprep.subr.mxu0 0.0
    %4239 = vmatpush1.msra.mxu0 0.0
    %4240 = vmatprep.subr.mxu0 0.0
    %4241 = vmatpush1.msra.mxu0 0.0
    %4242 = vmatprep.subr.mxu0 0.0
    %4243 = vmatpush1.msra.mxu0 0.0
    %4244 = vmatprep.subr.mxu0 0.0
    %4245 = vmatpush1.msra.mxu0 0.0
    %4246 = vmatprep.subr.mxu0 0.0
    %4247 = vmatpush1.msra.mxu0 0.0
    %4248 = vmatprep.subr.mxu0 0.0
    %4249 = vmatpush1.msra.mxu0 0.0
    %4250 = vmatprep.subr.mxu0 0.0
    %4251 = vmatpush1.msra.mxu0 0.0
    %4252 = vmatprep.subr.mxu0 0.0
    %4253 = vmatpush1.msra.mxu0 0.0
    %4254 = vmatprep.subr.mxu0 0.0
    %4255 = vmatpush1.msra.mxu0 0.0
    %4256 = vmatprep.subr.mxu0 0.0
    %4257 = vmatpush1.msra.mxu0 0.0
    %4258 = vmatprep.subr.mxu0 0.0
    %4259 = vmatpush1.msra.mxu0 0.0
    %4260 = vmatprep.subr.mxu0 0.0
    %4261 = vmatpush1.msra.mxu0 0.0
    %4262 = vmatprep.subr.mxu0 0.0
    %4263 = vmatpush1.msra.mxu0 0.0
    %4264 = vmatprep.subr.mxu0 0.0
    %4265 = vmatpush1.msra.mxu0 0.0
    %4266 = vmatprep.subr.mxu0 0.0
    %4267 = vmatpush1.msra.mxu0 0.0
    %4268 = vmatprep.subr.mxu0 0.0
    %4269 = vmatpush1.msra.mxu0 0.0
    %4270 = vmatprep.subr.mxu0 0.0
    %4271 = vmatpush1.msra.mxu0 0.0
    %4272 = vmatprep.subr.mxu0 0.0
    %4273 = vmatpush1.msra.mxu0 0.0
    %4274 = vmatprep.subr.mxu0 0.0
    %4275 = vmatpush1.msra.mxu0 0.0
    %4276 = vmatprep.subr.mxu0 0.0
    %4277 = vmatpush1.msra.mxu0 0.0
    %4278 = vmatprep.subr.mxu0 0.0
    %4279 = vmatpush1.msra.mxu0 0.0
    %4280 = vmatprep.subr.mxu0 0.0
    %4281 = vmatpush1.msra.mxu0 0.0
    %4282 = vmatprep.subr.mxu0 0.0
    %4283 = vmatpush1.msra.mxu0 0.0
    %4284 = vmatprep.subr.mxu0 0.0
    %4285 = vmatpush1.msra.mxu0 0.0
    %4286 = vmatprep.subr.mxu0 0.0
    %4287 = vmatpush1.msra.mxu0 0.0
    %4288 = vmatprep.subr.mxu0 0.0
    %4289 = vmatpush1.msra.mxu0 0.0
    %4290 = vmatprep.subr.mxu0 0.0
    %4291 = vmatpush1.msra.mxu0 0.0
    %4292 = vmatprep.mubr.f32.mxu0 0.0
    %4293 = vmatmul.mubr.f32.gmra.mrb[0].mxu0 %v4223
    %v4294 = vpop.f32.mrb[0].mxu0
    %v4295 = vadd.f32 0.0, %v4294
    %v4296 = vpop.f32.mrb[0].mxu0
    %4297 = vmatprep.mubr.f32.mxu0 0.0
    %4298 = vmatmul.mubr.f32.gmra.mrb[0].mxu0 %v4226
    %v4299 = vpop.f32.mrb[0].mxu0
    %v4300 = vadd.f32 0.0, %v4299
    %v4301 = vpop.f32.mrb[0].mxu0
    %4302 = vdwg.mxu0
    %4303 = vset.pattern.permute.xlu0 0
    %4304 = vperm.xlu0 %4303, %v3668
    %v4305 = vpop.permute.xlu0 %4304
    %4307 = vset.pattern.permute.xlu0 0
    %4308 = vperm.xlu0 %4307, %v3669
    %v4309 = vpop.permute.xlu0 %4308
    %v4311 = vmul.f32 %v4305, %v4131
    %v4312 = vmul.f32 %v4309, %v4137
    %4313 = vset.pattern.permute.xlu0 1
    %4314 = vperm.xlu0 %4313, %v3668
    %v4315 = vpop.permute.xlu0 %4314
    %4317 = vset.pattern.permute.xlu0 1
    %4318 = vperm.xlu0 %4317, %v3669
    %v4319 = vpop.permute.xlu0 %4318
    %v4321 = vmul.f32 %v4315, %v4131
    %v4322 = vmul.f32 %v4319, %v4137
    %4325 = vrot.lane.b32.xlu0 %v4321, 80
    %v4326 = vpop.permute.xlu0 %4325
    %4327 = vrot.lane.b32.xlu0 %v4322, 80
    %v4328 = vpop.permute.xlu0 %4327
    %v4331 = vadd.f32 %v4311, %v4326
    %v4332 = vadd.f32 %v4312, %v4328
    %4333 = vset.pattern.permute.xlu0 2
    %4334 = vperm.xlu0 %4333, %v3668
    %v4335 = vpop.permute.xlu0 %4334
    %4337 = vset.pattern.permute.xlu0 2
    %4338 = vperm.xlu0 %4337, %v3669
    %v4339 = vpop.permute.xlu0 %4338
    %v4341 = vmul.f32 %v4335, %v4131
    %v4342 = vmul.f32 %v4335, %v4133
    %v4343 = vmul.f32 %v4339, %v4137
    %v4344 = vmul.f32 %v4339, %v4139
    %4349 = vrot.lane.b32.xlu0 %v4341, 32
    %v4350 = vpop.permute.xlu0 %4349
    %4351 = vrot.lane.b32.xlu0 %v4342, 32
    %v4352 = vpop.permute.xlu0 %4351
    %4353 = vrot.lane.b32.xlu0 %v4343, 32
    %v4354 = vpop.permute.xlu0 %4353
    %4355 = vrot.lane.b32.xlu0 %v4344, 32
    %v4356 = vpop.permute.xlu0 %4355
    %v4357 = vsel %vm543, %v4350, %v4352
    %v4358 = vsel %vm543, %v4354, %v4356
    %v4361 = vadd.f32 %v4331, %v4357
    %v4362 = vadd.f32 %v4332, %v4358
    %4363 = vset.pattern.permute.xlu0 3
    %4364 = vperm.xlu0 %4363, %v3668
    %v4365 = vpop.permute.xlu0 %4364
    %4367 = vset.pattern.permute.xlu0 3
    %4368 = vperm.xlu0 %4367, %v3669
    %v4369 = vpop.permute.xlu0 %4368
    %v4371 = vmul.f32 %v4365, %v4133
    %v4372 = vmul.f32 %v4369, %v4139
    %4375 = vrot.lane.b32.xlu0 %v4371, 112
    %v4376 = vpop.permute.xlu0 %4375
    %4377 = vrot.lane.b32.xlu0 %v4372, 112
    %v4378 = vpop.permute.xlu0 %4377
    %v4381 = vadd.f32 %v4361, %v4376
    %v4382 = vadd.f32 %v4362, %v4378
    %v4383 = vmul.f32 %v4305, %v4214
    %v4384 = vmul.f32 %v4309, %v4219
    %v4385 = vmul.f32 %v4315, %v4214
    %v4386 = vmul.f32 %v4319, %v4219
    %4389 = vrot.lane.b32.xlu0 %v4385, 96
    %v4390 = vpop.permute.xlu0 %4389
    %4391 = vrot.lane.b32.xlu0 %v4386, 96
    %v4392 = vpop.permute.xlu0 %4391
    %v4395 = vadd.f32 %v4383, %v4390
    %v4396 = vadd.f32 %v4384, %v4392
    %v4397 = vmul.f32 %v4335, %v4214
    %v4398 = vmul.f32 %v4339, %v4219
    %4401 = vrot.lane.b32.xlu0 %v4397, 64
    %v4402 = vpop.permute.xlu0 %4401
    %4403 = vrot.lane.b32.xlu0 %v4398, 64
    %v4404 = vpop.permute.xlu0 %4403
    %v4407 = vadd.f32 %v4395, %v4402
    %v4408 = vadd.f32 %v4396, %v4404
    %v4409 = vmul.f32 %v4365, %v4214
    %v4410 = vmul.f32 %v4369, %v4219
    %4413 = vrot.lane.b32.xlu0 %v4409, 32
    %v4414 = vpop.permute.xlu0 %4413
    %4415 = vrot.lane.b32.xlu0 %v4410, 32
    %v4416 = vpop.permute.xlu0 %4415
    %v4419 = vadd.f32 %v4407, %v4414
    %v4420 = vadd.f32 %v4408, %v4416
    %v4421 = vadd.f32 %v4381, %v4419
    %v4422 = vadd.f32 %v4382, %v4420
    %v4423 = vadd.f32 %v4421, %v4295
    %v4424 = vadd.f32 %v4422, %v4300
    %v4425 = vsub.f32 0.0, %v4423
    %v4426 = vsub.f32 0.0, %v4424
    %v4427 = vmul.f32 %v4425, 1.442695
    %v4428 = vpow.pop %v4427
    %v4429 = vmul.f32 %v4426, 1.442695
    %v4430 = vpow.pop %v4429
    %v4431 = vadd.f32 %v4428, 1.0
    %v4432 = vadd.f32 %v4430, 1.0
    %v4433 = vrcp.pop %v4431
    %v4434 = vrcp.pop %v4432
    %v4435 = vmul.f32 %v4433, %v3636
    %v4436 = vmul.f32 %v4434, %v3650
    %4437 = vmatprep.subr.mxu0 0.0
    %4438 = vmatpush1.msra.mxu0 %v4435
    %4439 = vmatprep.subr.mxu0 0.0
    %4440 = vmatpush1.msra.mxu0 0.0
    %4441 = vmatprep.subr.mxu0 0.0
    %4442 = vmatpush1.msra.mxu0 0.0
    %4443 = vmatprep.subr.mxu0 0.0
    %4444 = vmatpush1.msra.mxu0 0.0
    %4445 = vmatprep.subr.mxu0 0.0
    %4446 = vmatpush1.msra.mxu0 0.0
    %4447 = vmatprep.subr.mxu0 0.0
    %4448 = vmatpush1.msra.mxu0 0.0
    %4449 = vmatprep.subr.mxu0 0.0
    %4450 = vmatpush1.msra.mxu0 0.0
    %4451 = vmatprep.subr.mxu0 0.0
    %4452 = vmatpush1.msra.mxu0 0.0
    %4453 = vmatprep.subr.mxu0 0.0
    %4454 = vmatpush1.msra.mxu0 0.0
    %4455 = vmatprep.subr.mxu0 0.0
    %4456 = vmatpush1.msra.mxu0 0.0
    %4457 = vmatprep.subr.mxu0 0.0
    %4458 = vmatpush1.msra.mxu0 0.0
    %4459 = vmatprep.subr.mxu0 0.0
    %4460 = vmatpush1.msra.mxu0 0.0
    %4461 = vmatprep.subr.mxu0 0.0
    %4462 = vmatpush1.msra.mxu0 0.0
    %4463 = vmatprep.subr.mxu0 0.0
    %4464 = vmatpush1.msra.mxu0 0.0
    %4465 = vmatprep.subr.mxu0 0.0
    %4466 = vmatpush1.msra.mxu0 0.0
    %4467 = vmatprep.subr.mxu0 0.0
    %4468 = vmatpush1.msra.mxu0 0.0
    %4469 = vmatprep.subr.mxu0 0.0
    %4470 = vmatpush1.msra.mxu0 0.0
    %4471 = vmatprep.subr.mxu0 0.0
    %4472 = vmatpush1.msra.mxu0 0.0
    %4473 = vmatprep.subr.mxu0 0.0
    %4474 = vmatpush1.msra.mxu0 0.0
    %4475 = vmatprep.subr.mxu0 0.0
    %4476 = vmatpush1.msra.mxu0 0.0
    %4477 = vmatprep.subr.mxu0 0.0
    %4478 = vmatpush1.msra.mxu0 0.0
    %4479 = vmatprep.subr.mxu0 0.0
    %4480 = vmatpush1.msra.mxu0 0.0
    %4481 = vmatprep.subr.mxu0 0.0
    %4482 = vmatpush1.msra.mxu0 0.0
    %4483 = vmatprep.subr.mxu0 0.0
    %4484 = vmatpush1.msra.mxu0 0.0
    %4485 = vmatprep.subr.mxu0 0.0
    %4486 = vmatpush1.msra.mxu0 0.0
    %4487 = vmatprep.subr.mxu0 0.0
    %4488 = vmatpush1.msra.mxu0 0.0
    %4489 = vmatprep.subr.mxu0 0.0
    %4490 = vmatpush1.msra.mxu0 0.0
    %4491 = vmatprep.subr.mxu0 0.0
    %4492 = vmatpush1.msra.mxu0 0.0
    %4493 = vmatprep.subr.mxu0 0.0
    %4494 = vmatpush1.msra.mxu0 0.0
    %4495 = vmatprep.subr.mxu0 0.0
    %4496 = vmatpush1.msra.mxu0 0.0
    %4497 = vmatprep.subr.mxu0 0.0
    %4498 = vmatpush1.msra.mxu0 0.0
    %4499 = vmatprep.subr.mxu0 0.0
    %4500 = vmatpush1.msra.mxu0 0.0
    %4501 = vmatprep.mubr.f32.mxu0 0.0
    %4502 = vmatmul.mubr.f32.gmra.mrb[0].mxu0 %v3756
    %v4503 = vpop.f32.mrb[0].mxu0
    %v4504 = vadd.f32 0.0, %v4503
    %v4505 = vpop.f32.mrb[0].mxu0
    %4506 = vdwg.mxu0
    %4507 = vmatprep.subr.mxu0 0.0
    %4508 = vmatpush1.msra.mxu0 %v4436
    %4509 = vmatprep.subr.mxu0 0.0
    %4510 = vmatpush1.msra.mxu0 0.0
    %4511 = vmatprep.subr.mxu0 0.0
    %4512 = vmatpush1.msra.mxu0 0.0
    %4513 = vmatprep.subr.mxu0 0.0
    %4514 = vmatpush1.msra.mxu0 0.0
    %4515 = vmatprep.subr.mxu0 0.0
    %4516 = vmatpush1.msra.mxu0 0.0
    %4517 = vmatprep.subr.mxu0 0.0
    %4518 = vmatpush1.msra.mxu0 0.0
    %4519 = vmatprep.subr.mxu0 0.0
    %4520 = vmatpush1.msra.mxu0 0.0
    %4521 = vmatprep.subr.mxu0 0.0
    %4522 = vmatpush1.msra.mxu0 0.0
    %4523 = vmatprep.subr.mxu0 0.0
    %4524 = vmatpush1.msra.mxu0 0.0
    %4525 = vmatprep.subr.mxu0 0.0
    %4526 = vmatpush1.msra.mxu0 0.0
    %4527 = vmatprep.subr.mxu0 0.0
    %4528 = vmatpush1.msra.mxu0 0.0
    %4529 = vmatprep.subr.mxu0 0.0
    %4530 = vmatpush1.msra.mxu0 0.0
    %4531 = vmatprep.subr.mxu0 0.0
    %4532 = vmatpush1.msra.mxu0 0.0
    %4533 = vmatprep.subr.mxu0 0.0
    %4534 = vmatpush1.msra.mxu0 0.0
    %4535 = vmatprep.subr.mxu0 0.0
    %4536 = vmatpush1.msra.mxu0 0.0
    %4537 = vmatprep.subr.mxu0 0.0
    %4538 = vmatpush1.msra.mxu0 0.0
    %4539 = vmatprep.subr.mxu0 0.0
    %4540 = vmatpush1.msra.mxu0 0.0
    %4541 = vmatprep.subr.mxu0 0.0
    %4542 = vmatpush1.msra.mxu0 0.0
    %4543 = vmatprep.subr.mxu0 0.0
    %4544 = vmatpush1.msra.mxu0 0.0
    %4545 = vmatprep.subr.mxu0 0.0
    %4546 = vmatpush1.msra.mxu0 0.0
    %4547 = vmatprep.subr.mxu0 0.0
    %4548 = vmatpush1.msra.mxu0 0.0
    %4549 = vmatprep.subr.mxu0 0.0
    %4550 = vmatpush1.msra.mxu0 0.0
    %4551 = vmatprep.subr.mxu0 0.0
    %4552 = vmatpush1.msra.mxu0 0.0
    %4553 = vmatprep.subr.mxu0 0.0
    %4554 = vmatpush1.msra.mxu0 0.0
    %4555 = vmatprep.subr.mxu0 0.0
    %4556 = vmatpush1.msra.mxu0 0.0
    %4557 = vmatprep.subr.mxu0 0.0
    %4558 = vmatpush1.msra.mxu0 0.0
    %4559 = vmatprep.subr.mxu0 0.0
    %4560 = vmatpush1.msra.mxu0 0.0
    %4561 = vmatprep.subr.mxu0 0.0
    %4562 = vmatpush1.msra.mxu0 0.0
    %4563 = vmatprep.subr.mxu0 0.0
    %4564 = vmatpush1.msra.mxu0 0.0
    %4565 = vmatprep.subr.mxu0 0.0
    %4566 = vmatpush1.msra.mxu0 0.0
    %4567 = vmatprep.subr.mxu0 0.0
    %4568 = vmatpush1.msra.mxu0 0.0
    %4569 = vmatprep.subr.mxu0 0.0
    %4570 = vmatpush1.msra.mxu0 0.0
    %4571 = vmatprep.mubr.f32.mxu0 0.0
    %4572 = vmatmul.mubr.f32.gmra.mrb[0].mxu0 %v3756
    %v4573 = vpop.f32.mrb[0].mxu0
    %v4574 = vadd.f32 0.0, %v4573
    %v4575 = vpop.f32.mrb[0].mxu0
    %4576 = vdwg.mxu0
    %4579 = vrot.lane.b32.xlu0 %v4504, 16
    %v4580 = vpop.permute.xlu0 %4579
    %4581 = vrot.lane.b32.xlu0 %v4574, 16
    %v4582 = vpop.permute.xlu0 %4581
    %v4585 = vsel %vm450, %v4435, %v4580
    %v4586 = vsel %vm450, %v4436, %v4582
    %v4588 = vsel %vm543, %v4585, 0
    %v4591 = vsel %vm543, %v4586, 0
    %4593 = vmatprep.subr.mxu0 0.0
    %4594 = vmatpush1.msra.mxu0 %v47
    %4595 = vmatprep.subr.mxu0 0.0
    %4596 = vmatpush1.msra.mxu0 %v48
    %4597 = vmatprep.subr.mxu0 0.0
    %4598 = vmatpush1.msra.mxu0 %v49
    %4599 = vmatprep.subr.mxu0 0.0
    %4600 = vmatpush1.msra.mxu0 %v50
    %4601 = vmatprep.subr.mxu0 0.0
    %4602 = vmatpush1.msra.mxu0 0.0
    %4603 = vmatprep.subr.mxu0 0.0
    %4604 = vmatpush1.msra.mxu0 0.0
    %4605 = vmatprep.subr.mxu0 0.0
    %4606 = vmatpush1.msra.mxu0 0.0
    %4607 = vmatprep.subr.mxu0 0.0
    %4608 = vmatpush1.msra.mxu0 0.0
    %4609 = vmatprep.subr.mxu0 0.0
    %4610 = vmatpush1.msra.mxu0 0.0
    %4611 = vmatprep.subr.mxu0 0.0
    %4612 = vmatpush1.msra.mxu0 0.0
    %4613 = vmatprep.subr.mxu0 0.0
    %4614 = vmatpush1.msra.mxu0 0.0
    %4615 = vmatprep.subr.mxu0 0.0
    %4616 = vmatpush1.msra.mxu0 0.0
    %4617 = vmatprep.subr.mxu0 0.0
    %4618 = vmatpush1.msra.mxu0 0.0
    %4619 = vmatprep.subr.mxu0 0.0
    %4620 = vmatpush1.msra.mxu0 0.0
    %4621 = vmatprep.subr.mxu0 0.0
    %4622 = vmatpush1.msra.mxu0 0.0
    %4623 = vmatprep.subr.mxu0 0.0
    %4624 = vmatpush1.msra.mxu0 0.0
    %4625 = vmatprep.subr.mxu0 0.0
    %4626 = vmatpush1.msra.mxu0 0.0
    %4627 = vmatprep.subr.mxu0 0.0
    %4628 = vmatpush1.msra.mxu0 0.0
    %4629 = vmatprep.subr.mxu0 0.0
    %4630 = vmatpush1.msra.mxu0 0.0
    %4631 = vmatprep.subr.mxu0 0.0
    %4632 = vmatpush1.msra.mxu0 0.0
    %4633 = vmatprep.subr.mxu0 0.0
    %4634 = vmatpush1.msra.mxu0 0.0
    %4635 = vmatprep.subr.mxu0 0.0
    %4636 = vmatpush1.msra.mxu0 0.0
    %4637 = vmatprep.subr.mxu0 0.0
    %4638 = vmatpush1.msra.mxu0 0.0
    %4639 = vmatprep.subr.mxu0 0.0
    %4640 = vmatpush1.msra.mxu0 0.0
    %4641 = vmatprep.subr.mxu0 0.0
    %4642 = vmatpush1.msra.mxu0 0.0
    %4643 = vmatprep.subr.mxu0 0.0
    %4644 = vmatpush1.msra.mxu0 0.0
    %4645 = vmatprep.subr.mxu0 0.0
    %4646 = vmatpush1.msra.mxu0 0.0
    %4647 = vmatprep.subr.mxu0 0.0
    %4648 = vmatpush1.msra.mxu0 0.0
    %4649 = vmatprep.subr.mxu0 0.0
    %4650 = vmatpush1.msra.mxu0 0.0
    %4651 = vmatprep.subr.mxu0 0.0
    %4652 = vmatpush1.msra.mxu0 0.0
    %4653 = vmatprep.subr.mxu0 0.0
    %4654 = vmatpush1.msra.mxu0 0.0
    %4655 = vmatprep.subr.mxu0 0.0
    %4656 = vmatpush1.msra.mxu0 0.0
    %4657 = vmatprep.mubr.f32.mxu0 0.0
    %4658 = vmatmul.mubr.f32.gmra.mrb[0].mxu0 %v4588
    %v4659 = vpop.f32.mrb[0].mxu0
    %v4660 = vadd.f32 0.0, %v4659
    %v4661 = vpop.f32.mrb[0].mxu0
    %4662 = vmatprep.mubr.f32.mxu0 0.0
    %4663 = vmatmul.mubr.f32.gmra.mrb[0].mxu0 %v4591
    %v4664 = vpop.f32.mrb[0].mxu0
    %v4665 = vadd.f32 0.0, %v4664
    %v4666 = vpop.f32.mrb[0].mxu0
    %4667 = vdwg.mxu0
    %v4668 = vmul.f32 %v4305, %v4660
    %v4669 = vmul.f32 %v4309, %v4665
    %v4670 = vmul.f32 %v4315, %v4660
    %v4671 = vmul.f32 %v4319, %v4665
    %4674 = vrot.lane.b32.xlu0 %v4670, 112
    %v4675 = vpop.permute.xlu0 %4674
    %4676 = vrot.lane.b32.xlu0 %v4671, 112
    %v4677 = vpop.permute.xlu0 %4676
    %v4680 = vadd.f32 %v4668, %v4675
    %v4681 = vadd.f32 %v4669, %v4677
    %v4682 = vmul.f32 %v4335, %v4660
    %v4683 = vmul.f32 %v4339, %v4665
    %4686 = vrot.lane.b32.xlu0 %v4682, 96
    %v4687 = vpop.permute.xlu0 %4686
    %4688 = vrot.lane.b32.xlu0 %v4683, 96
    %v4689 = vpop.permute.xlu0 %4688
    %v4692 = vadd.f32 %v4680, %v4687
    %v4693 = vadd.f32 %v4681, %v4689
    %v4694 = vmul.f32 %v4365, %v4660
    %v4695 = vmul.f32 %v4369, %v4665
    %4698 = vrot.lane.b32.xlu0 %v4694, 80
    %v4699 = vpop.permute.xlu0 %4698
    %4700 = vrot.lane.b32.xlu0 %v4695, 80
    %v4701 = vpop.permute.xlu0 %4700
    %v4704 = vadd.f32 %v4692, %v4699
    %v4705 = vadd.f32 %v4693, %v4701
    %4708 = vrot.lane.b32.xlu0 %v4704, 32
    %v4709 = vpop.permute.xlu0 %4708
    %4710 = vrot.lane.b32.xlu0 %v4705, 32
    %v4711 = vpop.permute.xlu0 %4710
    %v4714 = vadd.f32 %v4381, %v4709
    %v4715 = vadd.f32 %v4382, %v4711
    %v4716 = vadd.f32 %v4714, %v4295
    %v4717 = vadd.f32 %v4715, %v4300
    %v4718 = vtanh.pop %v4716
    %v4719 = vtanh.pop %v4717
    %v4720 = vmul.f32 %v4433, %v3541
    %v4721 = vmul.f32 %v4434, %v3542
    %v4722 = vsub.f32 1.0, %v4433
    %v4723 = vsub.f32 1.0, %v4434
    %4726 = vrot.lane.b32.xlu0 %v4718, 112
    %v4727 = vpop.permute.xlu0 %4726
    %4728 = vrot.lane.b32.xlu0 %v4719, 112
    %v4729 = vpop.permute.xlu0 %4728
    %v4732 = vmul.f32 %v4722, %v4727
    %v4733 = vmul.f32 %v4723, %v4729
    %v4734 = vadd.f32 %v4720, %v4732
    %v4735 = vadd.f32 %v4721, %v4733
    %v4737 = vsel %vm299, %v3663, 0
    %v4740 = vsel %vm299, %v3664, 0
    %4742 = vmatprep.subr.mxu0 0.0
    %4743 = vmatpush1.msra.mxu0 %v1164
    %4744 = vmatprep.subr.mxu0 0.0
    %4745 = vmatpush1.msra.mxu0 0.0
    %4746 = vmatprep.subr.mxu0 0.0
    %4747 = vmatpush1.msra.mxu0 0.0
    %4748 = vmatprep.subr.mxu0 0.0
    %4749 = vmatpush1.msra.mxu0 0.0
    %4750 = vmatprep.subr.mxu0 0.0
    %4751 = vmatpush1.msra.mxu0 0.0
    %4752 = vmatprep.subr.mxu0 0.0
    %4753 = vmatpush1.msra.mxu0 0.0
    %4754 = vmatprep.subr.mxu0 0.0
    %4755 = vmatpush1.msra.mxu0 0.0
    %4756 = vmatprep.subr.mxu0 0.0
    %4757 = vmatpush1.msra.mxu0 0.0
    %4758 = vmatprep.subr.mxu0 0.0
    %4759 = vmatpush1.msra.mxu0 0.0
    %4760 = vmatprep.subr.mxu0 0.0
    %4761 = vmatpush1.msra.mxu0 0.0
    %4762 = vmatprep.subr.mxu0 0.0
    %4763 = vmatpush1.msra.mxu0 0.0
    %4764 = vmatprep.subr.mxu0 0.0
    %4765 = vmatpush1.msra.mxu0 0.0
    %4766 = vmatprep.subr.mxu0 0.0
    %4767 = vmatpush1.msra.mxu0 0.0
    %4768 = vmatprep.subr.mxu0 0.0
    %4769 = vmatpush1.msra.mxu0 0.0
    %4770 = vmatprep.subr.mxu0 0.0
    %4771 = vmatpush1.msra.mxu0 0.0
    %4772 = vmatprep.subr.mxu0 0.0
    %4773 = vmatpush1.msra.mxu0 0.0
    %4774 = vmatprep.subr.mxu0 0.0
    %4775 = vmatpush1.msra.mxu0 0.0
    %4776 = vmatprep.subr.mxu0 0.0
    %4777 = vmatpush1.msra.mxu0 0.0
    %4778 = vmatprep.subr.mxu0 0.0
    %4779 = vmatpush1.msra.mxu0 0.0
    %4780 = vmatprep.subr.mxu0 0.0
    %4781 = vmatpush1.msra.mxu0 0.0
    %4782 = vmatprep.subr.mxu0 0.0
    %4783 = vmatpush1.msra.mxu0 0.0
    %4784 = vmatprep.subr.mxu0 0.0
    %4785 = vmatpush1.msra.mxu0 0.0
    %4786 = vmatprep.subr.mxu0 0.0
    %4787 = vmatpush1.msra.mxu0 0.0
    %4788 = vmatprep.subr.mxu0 0.0
    %4789 = vmatpush1.msra.mxu0 0.0
    %4790 = vmatprep.subr.mxu0 0.0
    %4791 = vmatpush1.msra.mxu0 0.0
    %4792 = vmatprep.subr.mxu0 0.0
    %4793 = vmatpush1.msra.mxu0 0.0
    %4794 = vmatprep.subr.mxu0 0.0
    %4795 = vmatpush1.msra.mxu0 0.0
    %4796 = vmatprep.subr.mxu0 0.0
    %4797 = vmatpush1.msra.mxu0 0.0
    %4798 = vmatprep.subr.mxu0 0.0
    %4799 = vmatpush1.msra.mxu0 0.0
    %4800 = vmatprep.subr.mxu0 0.0
    %4801 = vmatpush1.msra.mxu0 0.0
    %4802 = vmatprep.subr.mxu0 0.0
    %4803 = vmatpush1.msra.mxu0 0.0
    %4804 = vmatprep.subr.mxu0 0.0
    %4805 = vmatpush1.msra.mxu0 0.0
    %4806 = vmatprep.mubr.f32.mxu0 0.0
    %4807 = vmatmul.mubr.f32.gmra.mrb[0].mxu0 %v4737
    %v4808 = vpop.f32.mrb[0].mxu0
    %v4809 = vadd.f32 %v1154, %v4808
    %v4810 = vpop.f32.mrb[0].mxu0
    %4811 = vmatprep.mubr.f32.mxu0 0.0
    %4812 = vmatmul.mubr.f32.gmra.mrb[0].mxu0 %v4740
    %v4813 = vpop.f32.mrb[0].mxu0
    %v4814 = vadd.f32 %v1154, %v4813
    %v4815 = vpop.f32.mrb[0].mxu0
    %4816 = vdwg.mxu0
    %4819 = vrot.lane.b32.xlu0 %v4809, 16
    %v4820 = vpop.permute.xlu0 %4819
    %4821 = vrot.lane.b32.xlu0 %v4814, 16
    %v4822 = vpop.permute.xlu0 %4821
    %v4825 = vadd.f32 %v4734, %v4820
    %v4826 = vadd.f32 %v4735, %v4822
    %4828 = vrot.lane.b32.xlu0 %v4734, 112
    %v4829 = vpop.permute.xlu0 %4828
    %s4831 = scalar_lea.vmem [#allocation4], 24
    %4832 = vst.msk [vmem:[%s4831] sm:$0xff] %vm450, %v4829
    %s4833 = scalar_lea.vmem [#allocation6], 24
    %4834 = vst.msk [vmem:[%s4833] sm:$0xff] %vm450, %v4809
    %4836 = vrot.lane.b32.xlu0 %v4825, 112
    %v4837 = vpop.permute.xlu0 %4836
    %s4839 = scalar_lea.vmem [#allocation2], 24
    %4840 = vst.msk [vmem:[%s4839] sm:$0xff] %vm450, %v4837
    %4842 = vrot.lane.b32.xlu0 %v4735, 112
    %v4843 = vpop.permute.xlu0 %4842
    %s4845 = scalar_lea.vmem [#allocation4], 56
    %4846 = vst.msk [vmem:[%s4845] sm:$0xff] %vm450, %v4843
    %s4847 = scalar_lea.vmem [#allocation6], 56
    %4848 = vst.msk [vmem:[%s4847] sm:$0xff] %vm450, %v4814
    %4850 = vrot.lane.b32.xlu0 %v4826, 112
    %v4851 = vpop.permute.xlu0 %4850
    %s4853 = scalar_lea.vmem [#allocation2], 56
    %4854 = vst.msk [vmem:[%s4853] sm:$0xff] %vm450, %v4851
    %4855 = vst.msk [vmem:[#allocation7] sm:$0xff] %vm450, %v4829
    %s4856 = scalar_lea.vmem [#allocation7], 8
    %4857 = vst.msk [vmem:[%s4856] sm:$0xff] %vm450, %v4843
    // Predicated region
    $region42: #{ddgcn_forward.1} parent=1 // pred_check
      _
    $region43: #{ddgcn_forward.1} parent=1 // pred_check_branch
      %4859 = sbr.rel (0) target = $region45
    $region44: #{ddgcn_forward.1} parent=1 // pred_region
      %s4861 = ssub.s32 1024, 1024
      %4862 = vsyncadd [#allocation3], %s4861
      %s4863 = sshll.u32 [#allocation2], 4
      %s4864 = int_to_ptr.vmem [resolvable:$true] %s4863
      %4869 = dma.vmem_to_hbm [thread:$0]  %s4864, 1024, %s10, [#allocation3], 128, 128, 8
    $region45: #{ddgcn_forward.1} parent=1 // pred_fallthru
      _
    // Predicated region
    $region46: #{ddgcn_forward.1} parent=1 // pred_check
      _
    $region47: #{ddgcn_forward.1} parent=1 // pred_check_branch
      %4871 = sbr.rel (0) target = $region49
    $region48: #{ddgcn_forward.1} parent=1 // pred_region
      %s4873 = ssub.s32 1024, 1024
      %4874 = vsyncadd [#allocation5], %s4873
      %s4875 = sshll.u32 [#allocation4], 4
      %s4876 = int_to_ptr.vmem [resolvable:$true] %s4875
      %4881 = dma.vmem_to_hbm [thread:$0]  %s4876, 1024, %s11, [#allocation5], 128, 128, 8
    $region49: #{ddgcn_forward.1} parent=1 // pred_fallthru
      _
    // Predicated region
    $region50: #{ddgcn_forward.1} parent=1 // pred_check
      _
    $region51: #{ddgcn_forward.1} parent=1 // pred_check_branch
      %4883 = sbr.rel (0) target = $region53
    $region52: #{ddgcn_forward.1} parent=1 // pred_region
      %s4885 = ssub.s32 1024, 1024
      %4886 = vsyncadd [#allocation5], %s4885
      %s4887 = sshll.u32 [#allocation6], 4
      %s4888 = int_to_ptr.vmem [resolvable:$true] %s4887
      %4893 = dma.vmem_to_hbm [thread:$0]  %s4888, 1024, %s12, [#allocation5], 128, 128, 8
    $region53: #{ddgcn_forward.1} parent=1 // pred_fallthru
      _
    // Predicated region
    $region54: #{ddgcn_forward.1} parent=1 // pred_check
      _
    $region55: #{ddgcn_forward.1} parent=1 // pred_check_branch
      %4895 = sbr.rel (0) target = $region57
    $region56: #{ddgcn_forward.1} parent=1 // pred_region
      %s4897 = ssub.s32 256, 256
      %4898 = vsyncadd [#allocation8], %s4897
      %s4899 = sshll.u32 [#allocation7], 4
      %s4900 = int_to_ptr.vmem [resolvable:$true] %s4899
      %4905 = dma.vmem_to_hbm [thread:$0]  %s4900, 256, %s13, [#allocation8], 128, 128, 8
    $region57: #{ddgcn_forward.1} parent=1 // pred_fallthru
      _
    // Predicated region
    $region58: #{ddgcn_forward.1} parent=1 // pred_check
      _
    $region59: #{ddgcn_forward.1} parent=1 // pred_check_branch
      %4907 = sbr.rel (0) target = $region61
    $region60: #{ddgcn_forward.1} parent=1 // pred_region
      %4908 = dma.done [#allocation3], 1024
    $region61: #{ddgcn_forward.1} parent=1 // pred_fallthru
      _
    // Predicated region
    $region62: #{ddgcn_forward.1} parent=1 // pred_check
      _
    $region63: #{ddgcn_forward.1} parent=1 // pred_check_branch
      %4910 = sbr.rel (0) target = $region65
    $region64: #{ddgcn_forward.1} parent=1 // pred_region
      %4911 = dma.done [#allocation5], 1024
    $region65: #{ddgcn_forward.1} parent=1 // pred_fallthru
      _
    // Predicated region
    $region66: #{ddgcn_forward.1} parent=1 // pred_check
      _
    $region67: #{ddgcn_forward.1} parent=1 // pred_check_branch
      %4913 = sbr.rel (0) target = $region69
    $region68: #{ddgcn_forward.1} parent=1 // pred_region
      %4914 = dma.done [#allocation5], 1024
    $region69: #{ddgcn_forward.1} parent=1 // pred_fallthru
      _
    // Predicated region
    $region70: #{ddgcn_forward.1} parent=1 // pred_check
      _
    $region71: #{ddgcn_forward.1} parent=1 // pred_check_branch
      %4916 = sbr.rel (0) target = $region73
    $region72: #{ddgcn_forward.1} parent=1 // pred_region
      %4917 = dma.done [#allocation8], 256
    $region73: #{ddgcn_forward.1} parent=1 // pred_fallthru
      _
    %4918 = vsyncpa [#allocation3], 1
    %4919 = vsyncpa [#allocation5], 1
    %4920 = vsyncpa [#allocation8], 1

</llo_original>
